<compile_context>
chip_gen: v5e
topology: v5e:2x2
jax: 0.10.0
libtpu: 0.0.40
codegen_flags: <defaults>
</compile_context>

<pallas_src>
import functools

import jax
import jax.numpy as jnp
from jax import lax
from jax.experimental import pallas as pl
from jax.experimental.pallas import tpu as pltpu

BN_EPS = 1e-5
NUM_STAT_CORES = 2        # v7x has 2 TensorCores; harmless (2 sequential outer steps) elsewhere
TARGET_TILE_ROWS = 2048   # ~2K output rows per tile amortizes the ~0.35us per-grid-step overhead


def _vmem_limit_bytes():
    """Per-generation scoped-VMEM limit (don't hardcode 32 MiB)."""
    cap = 128 * 1024 * 1024
    try:
        cap = int(getattr(pltpu.get_tpu_info(), "vmem_capacity_bytes", cap))
    except Exception:
        pass
    # ~3/4 of physical, capped at 100 MiB (v5e/v6e -> ~96 MiB, v7x -> ~48 MiB), floor 32 MiB.
    return max(32 * 1024 * 1024, min((cap * 3) // 4, 100 * 1024 * 1024))


VMEM_LIMIT_BYTES = _vmem_limit_bytes()


def _conv_tile(slab_ref, w_ref, bt, H, W, cin):
    """3x3 conv of one image-group tile as a single big-K MXU matmul.

    slab_ref: (bt, H+2, W+2, cin) bf16  zero-padded NHWC images
    w_ref:    (9*cin, cout8)      bf16  tap-major (kh, kw, cin) weights, resident
    returns:  (bt*H*W, cout8)     f32
    """
    slab = slab_ref[...]
    cols = []
    for kh in range(3):
        for kw in range(3):
            cols.append(slab[:, kh:kh + H, kw:kw + W, :])      # (bt, H, W, cin)
    patches = jnp.concatenate(cols, axis=-1)                   # (bt, H, W, 9*cin)
    patches = patches.reshape(bt * H * W, 9 * cin)             # leading-dim collapse (free)
    return jnp.dot(patches, w_ref[...], preferred_element_type=jnp.float32)


def _stats_kernel(slab_ref, w_ref, stats_ref, *, bt, H, W, cin, n_tiles, tiles_per_core):
    """Pass 1: per-channel sum / sum-of-squares of the conv output (per-core partials)."""
    c = pl.program_id(0)
    k = pl.program_id(1)

    @pl.when(k == 0)
    def _():
        stats_ref[...] = jnp.zeros_like(stats_ref)

    @pl.when(c * tiles_per_core + k < n_tiles)
    def _():
        y = _conv_tile(slab_ref, w_ref, bt, H, W, cin)          # (tile_m, cout8) f32
        stats_ref[...] += jnp.concatenate(
            [jnp.sum(y, axis=0, keepdims=True),
             jnp.sum(y * y, axis=0, keepdims=True)], axis=0)    # (2, cout8)


def _norm_kernel(slab_ref, w_ref, ss_ref, o_ref, *, bt, H, W, cin):
    """Pass 2: recompute conv tile, apply BN scale/shift + ReLU, lane-dense store."""
    y = _conv_tile(slab_ref, w_ref, bt, H, W, cin)              # (tile_m, cout8) f32
    y = jnp.maximum(y * ss_ref[0:1, :] + ss_ref[1:2, :], 0.0)   # BN + ReLU in f32
    # (cout8, tile_m): sublane = cout8 (multiple of 8), lane = tile_m -> unmasked stores.
    o_ref[...] = jnp.transpose(y).astype(o_ref.dtype)


def _pick_images_per_tile(N, H, W, target_rows=TARGET_TILE_ROWS):
    """Largest divisor of N whose tile (bt*H*W rows) stays near the ~2K-row sweet spot."""
    best = 1
    for d in range(1, N + 1):
        if N % d == 0 and d * H * W <= max(H * W, target_rows):
            best = d
    return best


@jax.jit
def conv_bn_relu_other(x, weight):
    """x: (N, Cin, H, W) f32; weight: (Cout, Cin, 3, 3) f32 -> (N, Cout, H, W) f32."""
    N, Cin, H, W = x.shape
    Cout = weight.shape[0]
    cout8 = ((Cout + 7) // 8) * 8          # sublane pad only; never pad channels to 128
    bt = _pick_images_per_tile(N, H, W)    # images per tile (no halo overlap across tiles)
    S = N // bt                            # number of tiles
    tile_m = bt * H * W
    M = N * H * W                          # BatchNorm reduction count
    K = 9 * Cin

    # Host glue: NHWC + bf16 + spatial zero-pad (fused by XLA). No halo gather needed since
    # tiles are whole images.
    # TODO(synk): for very large single images (H*W >> 64K rows) switch to in-kernel row
    # tiling with manual halo DMA (memory_space=pl.ANY + pltpu.make_async_copy).
    x_pad = jnp.pad(jnp.transpose(x, (0, 2, 3, 1)).astype(jnp.bfloat16),
                    ((0, 0), (1, 1), (1, 1), (0, 0)))            # (N, H+2, W+2, Cin)

    # Weights: (Cout, Cin, 3, 3) -> (kh, kw, cin, cout) -> (9*Cin, cout8) bf16, resident.
    w2d = jnp.transpose(weight, (2, 3, 1, 0)).reshape(K, Cout)
    w2d = jnp.pad(w2d, ((0, 0), (0, cout8 - Cout))).astype(jnp.bfloat16)

    # ---- pass 1: per-channel sum / sum-of-squares, sharded across TensorCores ------------
    tiles_per_core = pl.cdiv(S, NUM_STAT_CORES)

    def _slab_map_p1(c, k):
        return (jnp.minimum(c * tiles_per_core + k, S - 1), 0, 0, 0)

    stats_partial = pl.pallas_call(
        functools.partial(_stats_kernel, bt=bt, H=H, W=W, cin=Cin,
                          n_tiles=S, tiles_per_core=tiles_per_core),
        out_shape=jax.ShapeDtypeStruct((NUM_STAT_CORES, 2, cout8), jnp.float32),
        grid=(NUM_STAT_CORES, tiles_per_core),
        in_specs=[pl.BlockSpec((bt, H + 2, W + 2, Cin), _slab_map_p1),
                  pl.BlockSpec((K, cout8), lambda c, k: (0, 0))],
        out_specs=pl.BlockSpec((None, 2, cout8), lambda c, k: (c, 0, 0)),
        compiler_params=pltpu.CompilerParams(
            dimension_semantics=("parallel", "arbitrary"),
            vmem_limit_bytes=VMEM_LIMIT_BYTES),
    )(x_pad, w2d)

    stats = jnp.sum(stats_partial, axis=0)                       # (2, cout8) f32
    mean = stats[0] / M
    var = jnp.maximum(stats[1] / M - mean * mean, 0.0)           # biased (training) variance
    rstd = lax.rsqrt(var + BN_EPS)
    scale_shift = jnp.stack([rstd, -mean * rstd])                # (2, cout8) f32

    # ---- pass 2: recompute conv per tile, BN + ReLU, compact lane-dense output -----------
    out_tiles = pl.pallas_call(
        functools.partial(_norm_kernel, bt=bt, H=H, W=W, cin=Cin),
        out_shape=jax.ShapeDtypeStruct((S, cout8, tile_m), jnp.float32),
        grid=(S,),
        in_specs=[pl.BlockSpec((bt, H + 2, W + 2, Cin), lambda s: (s, 0, 0, 0)),
                  pl.BlockSpec((K, cout8), lambda s: (0, 0)),
                  pl.BlockSpec((2, cout8), lambda s: (0, 0))],
        out_specs=pl.BlockSpec((None, cout8, tile_m), lambda s: (s, 0, 0)),
        compiler_params=pltpu.CompilerParams(
            dimension_semantics=("parallel",),
            vmem_limit_bytes=VMEM_LIMIT_BYTES),
    )(x_pad, w2d, scale_shift)

    # (S, cout8, bt*H*W) -> (N, Cout, H, W): cheap permutation on the compact channel count.
    out = out_tiles.reshape(S, cout8, bt, H, W)
    out = jnp.transpose(out, (0, 2, 1, 3, 4)).reshape(N, cout8, H, W)
    return out[:, :Cout]


def reference(x, weight):
    y = lax.conv_general_dilated(
        x.astype(jnp.float32), weight.astype(jnp.float32),
        window_strides=(1, 1), padding=((1, 1), (1, 1)),
        dimension_numbers=("NCHW", "OIHW", "NCHW"))
    mean = jnp.mean(y, axis=(0, 2, 3), keepdims=True)
    var = jnp.mean((y - mean) ** 2, axis=(0, 2, 3), keepdims=True)
    return jnp.maximum((y - mean) * lax.rsqrt(var + BN_EPS), 0.0)


if __name__ == "__main__":
    key = jax.random.PRNGKey(0)
    kx, kw = jax.random.split(key)

    N, Cin, H, W = 2, 4, 16, 16
    Cout = 8

    x = jax.random.normal(kx, (N, Cin, H, W), dtype=jnp.float32)
    # Deterministic synthetic conv weight (matches nn.Conv2d(in, out, 3, padding=1, bias=False)).
    weight = 0.1 * jax.random.normal(kw, (Cout, Cin, 3, 3), dtype=jnp.float32)

    out = jax.block_until_ready(conv_bn_relu_other(x, weight))
    ref = jax.block_until_ready(reference(x, weight))

    assert out.shape == (N, Cout, H, W)
    # bf16 MXU inputs (f32 accumulation / BN math) -> loosened tolerance vs pure-f32 reference.
    assert jnp.allclose(out, ref, atol=5e-2, rtol=5e-2), float(jnp.max(jnp.abs(out - ref)))
    print("KERNEL_OK")
</pallas_src>

<mosaic_0001>
module attributes {stable_mosaic.version = 11 : i64} {
  func.func @_norm_kernel(%arg0: i32, %arg1: memref<2x18x18x4xbf16, #tpu.memory_space<vmem>>, %arg2: memref<36x8xbf16, #tpu.memory_space<vmem>>, %arg3: memref<2x8xf32, #tpu.memory_space<vmem>>, %arg4: memref<1x8x512xf32, #tpu.memory_space<vmem>>) attributes {dimension_semantics = [#tpu.dimension_semantics<parallel>], iteration_bounds = array<i64: 1>, scalar_prefetch = 0 : i64, scratch_operands = 0 : i64, tpu.core_type = #tpu.core_type<tc>, window_params = [{transform_indices = @transform_0, window_bounds = array<i64: 2, 18, 18, 4>}, {pipeline_mode = #tpu.pipeline_mode<synchronous>, transform_indices = @transform_1, window_bounds = array<i64: 36, 8>}, {pipeline_mode = #tpu.pipeline_mode<synchronous>, transform_indices = @transform_2, window_bounds = array<i64: 2, 8>}, {transform_indices = @transform_3, window_bounds = array<i64: 1, 8, 512>}]} {
    %c0 = arith.constant 0 : index
    %c0_0 = arith.constant 0 : index
    %c0_1 = arith.constant 0 : index
    %c0_2 = arith.constant 0 : index
    %0 = vector.load %arg1[%c0, %c0_0, %c0_1, %c0_2] : memref<2x18x18x4xbf16, #tpu.memory_space<vmem>>, vector<2x18x18x4xbf16>
    %1 = vector.extract_strided_slice %0 {offsets = [0, 0, 0, 0], sizes = [2, 16, 16, 4], strides = [1, 1, 1, 1]} : vector<2x18x18x4xbf16> to vector<2x16x16x4xbf16>
    %2 = vector.extract_strided_slice %0 {offsets = [0, 0, 1, 0], sizes = [2, 16, 16, 4], strides = [1, 1, 1, 1]} : vector<2x18x18x4xbf16> to vector<2x16x16x4xbf16>
    %3 = vector.extract_strided_slice %0 {offsets = [0, 0, 2, 0], sizes = [2, 16, 16, 4], strides = [1, 1, 1, 1]} : vector<2x18x18x4xbf16> to vector<2x16x16x4xbf16>
    %4 = vector.extract_strided_slice %0 {offsets = [0, 1, 0, 0], sizes = [2, 16, 16, 4], strides = [1, 1, 1, 1]} : vector<2x18x18x4xbf16> to vector<2x16x16x4xbf16>
    %5 = vector.extract_strided_slice %0 {offsets = [0, 1, 1, 0], sizes = [2, 16, 16, 4], strides = [1, 1, 1, 1]} : vector<2x18x18x4xbf16> to vector<2x16x16x4xbf16>
    %6 = vector.extract_strided_slice %0 {offsets = [0, 1, 2, 0], sizes = [2, 16, 16, 4], strides = [1, 1, 1, 1]} : vector<2x18x18x4xbf16> to vector<2x16x16x4xbf16>
    %7 = vector.extract_strided_slice %0 {offsets = [0, 2, 0, 0], sizes = [2, 16, 16, 4], strides = [1, 1, 1, 1]} : vector<2x18x18x4xbf16> to vector<2x16x16x4xbf16>
    %8 = vector.extract_strided_slice %0 {offsets = [0, 2, 1, 0], sizes = [2, 16, 16, 4], strides = [1, 1, 1, 1]} : vector<2x18x18x4xbf16> to vector<2x16x16x4xbf16>
    %9 = vector.extract_strided_slice %0 {offsets = [0, 2, 2, 0], sizes = [2, 16, 16, 4], strides = [1, 1, 1, 1]} : vector<2x18x18x4xbf16> to vector<2x16x16x4xbf16>
    %10 = tpu.concatenate %1, %2, %3, %4, %5, %6, %7, %8, %9 in 3 : vector<2x16x16x4xbf16>, vector<2x16x16x4xbf16>, vector<2x16x16x4xbf16>, vector<2x16x16x4xbf16>, vector<2x16x16x4xbf16>, vector<2x16x16x4xbf16>, vector<2x16x16x4xbf16>, vector<2x16x16x4xbf16>, vector<2x16x16x4xbf16> -> vector<2x16x16x36xbf16>
    %11 = vector.shape_cast %10 : vector<2x16x16x36xbf16> to vector<512x36xbf16>
    %c0_3 = arith.constant 0 : index
    %c0_4 = arith.constant 0 : index
    %12 = vector.load %arg2[%c0_3, %c0_4] : memref<36x8xbf16, #tpu.memory_space<vmem>>, vector<36x8xbf16>
    %cst = arith.constant dense<0.000000e+00> : vector<512x8xf32>
    %13 = tpu.matmul %11, %12, %cst {dimension_numbers = #tpu.dot_dimension_numbers<[1], [0], [0], [1], [0, 0, 1, 1], [], []>} : vector<512x36xbf16>, vector<36x8xbf16>, vector<512x8xf32> -> vector<512x8xf32>
    %c0_5 = arith.constant 0 : index
    %c0_6 = arith.constant 0 : index
    %14 = vector.load %arg3[%c0_5, %c0_6] : memref<2x8xf32, #tpu.memory_space<vmem>>, vector<1x8xf32>
    %15 = vector.broadcast %14 : vector<1x8xf32> to vector<512x8xf32>
    %16 = arith.mulf %13, %15 : vector<512x8xf32>
    %c1 = arith.constant 1 : index
    %c0_7 = arith.constant 0 : index
    %17 = vector.load %arg3[%c1, %c0_7] : memref<2x8xf32, #tpu.memory_space<vmem>>, vector<1x8xf32>
    %18 = vector.broadcast %17 : vector<1x8xf32> to vector<512x8xf32>
    %19 = arith.addf %16, %18 : vector<512x8xf32>
    %cst_8 = arith.constant 0.000000e+00 : f32
    %20 = vector.broadcast %cst_8 : f32 to vector<512x8xf32>
    %21 = arith.maximumf %19, %20 : vector<512x8xf32>
    %22 = tpu.transpose %21, [1, 0] : vector<512x8xf32> -> vector<8x512xf32>
    %c0_9 = arith.constant 0 : index
    %c0_10 = arith.constant 0 : index
    %c0_11 = arith.constant 0 : index
    %23 = vector.load %arg4[%c0_9, %c0_10, %c0_11] : memref<1x8x512xf32, #tpu.memory_space<vmem>>, vector<1x8x512xf32>
    %24 = vector.shape_cast %23 : vector<1x8x512xf32> to vector<8x512xf32>
    %25 = vector.shape_cast %22 : vector<8x512xf32> to vector<1x8x512xf32>
    tpu.vector_store %arg4[%c0_9, %c0_10, %c0_11], %25 {strides = array<i32>} : memref<1x8x512xf32, #tpu.memory_space<vmem>>, vector<1x8x512xf32>,
    return
  }
  func.func @transform_0(%arg0: i32) -> (i32, i32, i32, i32) {
    %c0_i32 = arith.constant 0 : i32
    %c0_i32_0 = arith.constant 0 : i32
    %c0_i32_1 = arith.constant 0 : i32
    %c0_i32_2 = arith.constant 0 : i32
    return %arg0, %c0_i32, %c0_i32_0, %c0_i32_1 : i32, i32, i32, i32
  }
  func.func @transform_1(%arg0: i32) -> (i32, i32) {
    %c0_i32 = arith.constant 0 : i32
    %c0_i32_0 = arith.constant 0 : i32
    %c0_i32_1 = arith.constant 0 : i32
    return %c0_i32, %c0_i32_0 : i32, i32
  }
  func.func @transform_2(%arg0: i32) -> (i32, i32) {
    %c0_i32 = arith.constant 0 : i32
    %c0_i32_0 = arith.constant 0 : i32
    %c0_i32_1 = arith.constant 0 : i32
    return %c0_i32, %c0_i32_0 : i32, i32
  }
  func.func @transform_3(%arg0: i32) -> (i32, i32, i32) {
    %c0_i32 = arith.constant 0 : i32
    %c0_i32_0 = arith.constant 0 : i32
    %c0_i32_1 = arith.constant 0 : i32
    return %arg0, %c0_i32, %c0_i32_0 : i32, i32, i32
  }
}

module attributes {stable_mosaic.version = 11 : i64} {
  func.func @_stats_kernel(%arg0: i32, %arg1: i32, %arg2: memref<2x18x18x4xbf16, #tpu.memory_space<vmem>>, %arg3: memref<36x8xbf16, #tpu.memory_space<vmem>>, %arg4: memref<1x2x8xf32, #tpu.memory_space<vmem>>) attributes {dimension_semantics = [#tpu.dimension_semantics<parallel>, #tpu.dimension_semantics<arbitrary>], iteration_bounds = array<i64: 2, 1>, scalar_prefetch = 0 : i64, scratch_operands = 0 : i64, tpu.core_type = #tpu.core_type<tc>, window_params = [{transform_indices = @transform_0, window_bounds = array<i64: 2, 18, 18, 4>}, {pipeline_mode = #tpu.pipeline_mode<synchronous>, transform_indices = @transform_1, window_bounds = array<i64: 36, 8>}, {transform_indices = @transform_2, window_bounds = array<i64: 1, 2, 8>}]} {
    %c0_i32 = arith.constant 0 : i32
    %0 = arith.cmpi eq, %arg1, %c0_i32 : i32
    %1 = arith.extui %0 : i1 to i32
    %c0_i32_0 = arith.constant 0 : i32
    %2 = arith.cmpi ne, %1, %c0_i32_0 : i32
    scf.if %2 {
      %cst = arith.constant 0.000000e+00 : f32
      %8 = vector.broadcast %cst : f32 to vector<2x8xf32>
      %c0 = arith.constant 0 : index
      %c0_3 = arith.constant 0 : index
      %c0_4 = arith.constant 0 : index
      %9 = vector.load %arg4[%c0, %c0_3, %c0_4] : memref<1x2x8xf32, #tpu.memory_space<vmem>>, vector<1x2x8xf32>
      %10 = vector.shape_cast %9 : vector<1x2x8xf32> to vector<2x8xf32>
      %11 = vector.shape_cast %8 : vector<2x8xf32> to vector<1x2x8xf32>
      tpu.vector_store %arg4[%c0, %c0_3, %c0_4], %11 {strides = array<i32>} : memref<1x2x8xf32, #tpu.memory_space<vmem>>, vector<1x2x8xf32>,
    } else {
    }
    %c1_i32 = arith.constant 1 : i32
    %3 = arith.muli %arg0, %c1_i32 : i32
    %4 = arith.addi %3, %arg1 : i32
    %c1_i32_1 = arith.constant 1 : i32
    %5 = arith.cmpi slt, %4, %c1_i32_1 : i32
    %6 = arith.extui %5 : i1 to i32
    %c0_i32_2 = arith.constant 0 : i32
    %7 = arith.cmpi ne, %6, %c0_i32_2 : i32
    scf.if %7 {
      %c0 = arith.constant 0 : index
      %c0_3 = arith.constant 0 : index
      %c0_4 = arith.constant 0 : index
      %c0_5 = arith.constant 0 : index
      %8 = vector.load %arg2[%c0, %c0_3, %c0_4, %c0_5] : memref<2x18x18x4xbf16, #tpu.memory_space<vmem>>, vector<2x18x18x4xbf16>
      %9 = vector.extract_strided_slice %8 {offsets = [0, 0, 0, 0], sizes = [2, 16, 16, 4], strides = [1, 1, 1, 1]} : vector<2x18x18x4xbf16> to vector<2x16x16x4xbf16>
      %10 = vector.extract_strided_slice %8 {offsets = [0, 0, 1, 0], sizes = [2, 16, 16, 4], strides = [1, 1, 1, 1]} : vector<2x18x18x4xbf16> to vector<2x16x16x4xbf16>
      %11 = vector.extract_strided_slice %8 {offsets = [0, 0, 2, 0], sizes = [2, 16, 16, 4], strides = [1, 1, 1, 1]} : vector<2x18x18x4xbf16> to vector<2x16x16x4xbf16>
      %12 = vector.extract_strided_slice %8 {offsets = [0, 1, 0, 0], sizes = [2, 16, 16, 4], strides = [1, 1, 1, 1]} : vector<2x18x18x4xbf16> to vector<2x16x16x4xbf16>
      %13 = vector.extract_strided_slice %8 {offsets = [0, 1, 1, 0], sizes = [2, 16, 16, 4], strides = [1, 1, 1, 1]} : vector<2x18x18x4xbf16> to vector<2x16x16x4xbf16>
      %14 = vector.extract_strided_slice %8 {offsets = [0, 1, 2, 0], sizes = [2, 16, 16, 4], strides = [1, 1, 1, 1]} : vector<2x18x18x4xbf16> to vector<2x16x16x4xbf16>
      %15 = vector.extract_strided_slice %8 {offsets = [0, 2, 0, 0], sizes = [2, 16, 16, 4], strides = [1, 1, 1, 1]} : vector<2x18x18x4xbf16> to vector<2x16x16x4xbf16>
      %16 = vector.extract_strided_slice %8 {offsets = [0, 2, 1, 0], sizes = [2, 16, 16, 4], strides = [1, 1, 1, 1]} : vector<2x18x18x4xbf16> to vector<2x16x16x4xbf16>
      %17 = vector.extract_strided_slice %8 {offsets = [0, 2, 2, 0], sizes = [2, 16, 16, 4], strides = [1, 1, 1, 1]} : vector<2x18x18x4xbf16> to vector<2x16x16x4xbf16>
      %18 = tpu.concatenate %9, %10, %11, %12, %13, %14, %15, %16, %17 in 3 : vector<2x16x16x4xbf16>, vector<2x16x16x4xbf16>, vector<2x16x16x4xbf16>, vector<2x16x16x4xbf16>, vector<2x16x16x4xbf16>, vector<2x16x16x4xbf16>, vector<2x16x16x4xbf16>, vector<2x16x16x4xbf16>, vector<2x16x16x4xbf16> -> vector<2x16x16x36xbf16>
      %19 = vector.shape_cast %18 : vector<2x16x16x36xbf16> to vector<512x36xbf16>
      %c0_6 = arith.constant 0 : index
      %c0_7 = arith.constant 0 : index
      %20 = vector.load %arg3[%c0_6, %c0_7] : memref<36x8xbf16, #tpu.memory_space<vmem>>, vector<36x8xbf16>
      %cst = arith.constant dense<0.000000e+00> : vector<512x8xf32>
      %21 = tpu.matmul %19, %20, %cst {dimension_numbers = #tpu.dot_dimension_numbers<[1], [0], [0], [1], [0, 0, 1, 1], [], []>} : vector<512x36xbf16>, vector<36x8xbf16>, vector<512x8xf32> -> vector<512x8xf32>
      %c0_8 = arith.constant 0 : index
      %c0_9 = arith.constant 0 : index
      %c0_10 = arith.constant 0 : index
      %22 = vector.load %arg4[%c0_8, %c0_9, %c0_10] : memref<1x2x8xf32, #tpu.memory_space<vmem>>, vector<1x2x8xf32>
      %23 = vector.shape_cast %22 : vector<1x2x8xf32> to vector<2x8xf32>
      %cst_11 = arith.constant dense<0.000000e+00> : vector<8xf32>
      %24 = vector.multi_reduction <add>, %21, %cst_11 [0] : vector<512x8xf32> to vector<8xf32>
      %25 = vector.shape_cast %24 : vector<8xf32> to vector<1x8xf32>
      %26 = arith.mulf %21, %21 : vector<512x8xf32>
      %cst_12 = arith.constant dense<0.000000e+00> : vector<8xf32>
      %27 = vector.multi_reduction <add>, %26, %cst_12 [0] : vector<512x8xf32> to vector<8xf32>
      %28 = vector.shape_cast %27 : vector<8xf32> to vector<1x8xf32>
      %29 = tpu.concatenate %25, %28 in 0 : vector<1x8xf32>, vector<1x8xf32> -> vector<2x8xf32>
      %30 = arith.addf %23, %29 : vector<2x8xf32>
      %c0_13 = arith.constant 0 : index
      %c0_14 = arith.constant 0 : index
      %c0_15 = arith.constant 0 : index
      %31 = vector.load %arg4[%c0_13, %c0_14, %c0_15] : memref<1x2x8xf32, #tpu.memory_space<vmem>>, vector<1x2x8xf32>
      %32 = vector.shape_cast %31 : vector<1x2x8xf32> to vector<2x8xf32>
      %33 = vector.shape_cast %30 : vector<2x8xf32> to vector<1x2x8xf32>
      tpu.vector_store %arg4[%c0_13, %c0_14, %c0_15], %33 {strides = array<i32>} : memref<1x2x8xf32, #tpu.memory_space<vmem>>, vector<1x2x8xf32>,
    } else {
    }
    return
  }
  func.func @transform_0(%arg0: i32, %arg1: i32) -> (i32, i32, i32, i32) {
    %c1_i32 = arith.constant 1 : i32
    %0 = arith.muli %arg0, %c1_i32 : i32
    %1 = arith.addi %0, %arg1 : i32
    %c0_i32 = arith.constant 0 : i32
    %2 = arith.minsi %1, %c0_i32 : i32
    %c0_i32_0 = arith.constant 0 : i32
    %c0_i32_1 = arith.constant 0 : i32
    %c0_i32_2 = arith.constant 0 : i32
    %c0_i32_3 = arith.constant 0 : i32
    return %2, %c0_i32_0, %c0_i32_1, %c0_i32_2 : i32, i32, i32, i32
  }
  func.func @transform_1(%arg0: i32, %arg1: i32) -> (i32, i32) {
    %c0_i32 = arith.constant 0 : i32
    %c0_i32_0 = arith.constant 0 : i32
    %c0_i32_1 = arith.constant 0 : i32
    return %c0_i32, %c0_i32_0 : i32, i32
  }
  func.func @transform_2(%arg0: i32, %arg1: i32) -> (i32, i32, i32) {
    %c0_i32 = arith.constant 0 : i32
    %c0_i32_0 = arith.constant 0 : i32
    %c0_i32_1 = arith.constant 0 : i32
    return %arg0, %c0_i32, %c0_i32_0 : i32, i32, i32
  }
}

</mosaic_0001>

<llo_original>
// kernel: conv_bn_relu_other.3
$region0: #{conv_bn_relu_other.3}
  #allocation0 [shape = 'u32[]', space=smem, size = 0x4, offset = 0x4, fixed_abs, tag = 'smem constant byte address 0x4 - core index']
  #allocation1 [shape = 'u32[72,128]{1,0:T(1,128)}', space=vmem, size = 0x9000, scoped, tag = 'internal scratch']
  %s0 = inlined_call_operand.vmem [shape: bf16[2,18,18,4], index: 0, kind: input, shape index: {}]
  %s1 = inlined_call_operand.vmem [shape: bf16[36,8], index: 1, kind: input, shape index: {}]
  %s2 = inlined_call_operand.vmem [shape: f32[2,8], index: 2, kind: input, shape index: {}]
  %s3 = inlined_call_operand.vmem [shape: f32[1,8,512], index: 3, kind: output, shape index: {}]
  %s4 = sld [smem:[#allocation0]]
  $region22: #{conv_bn_relu_other.3} parent=0
    _
  %s6 = ssub.s32 1, %s4
  %s7 = scalar_select 0, %s6, %s4
  // Predicated region
  $region2: #{conv_bn_relu_other.3} parent=0 // pred_check
    _
  $region3: #{conv_bn_relu_other.3} parent=0 // pred_check_branch
    %9 = sbr.rel (0) target = $region5
  $region4: #{conv_bn_relu_other.3} parent=0 // pred_region
    _
  $region5: #{conv_bn_relu_other.3} parent=0 // pred_fallthru
    _
  // Predicated region
  $region6: #{conv_bn_relu_other.3} parent=0 // pred_check
    _
  $region7: #{conv_bn_relu_other.3} parent=0 // pred_check_branch
    %11 = sbr.rel (0) target = $region9
  $region8: #{conv_bn_relu_other.3} parent=0 // pred_region
    _
  $region9: #{conv_bn_relu_other.3} parent=0 // pred_fallthru
    _
  // Predicated region
  $region10: #{conv_bn_relu_other.3} parent=0 // pred_check
    _
  $region11: #{conv_bn_relu_other.3} parent=0 // pred_check_branch
    %13 = sbr.rel (0) target = $region13
  $region12: #{conv_bn_relu_other.3} parent=0 // pred_region
    _
  $region13: #{conv_bn_relu_other.3} parent=0 // pred_fallthru
    _
  %v15 = vld [vmem:[%s0] sm:$0xf]
  %v16 = vld [vmem:[%s0 + $0x4] sm:$0xf]
  %v17 = vld [vmem:[%s0 + $0x8] sm:$0x1]
  %v18 = vld [vmem:[%s0 + $0xc] sm:$0xf]
  %v19 = vld [vmem:[%s0 + $0x10] sm:$0xf]
  %v20 = vld [vmem:[%s0 + $0x14] sm:$0x1]
  %v21 = vld [vmem:[%s0 + $0x18] sm:$0xf]
  %v22 = vld [vmem:[%s0 + $0x1c] sm:$0xf]
  %v23 = vld [vmem:[%s0 + $0x20] sm:$0x1]
  %v24 = vld [vmem:[%s0 + $0x24] sm:$0xf]
  %v25 = vld [vmem:[%s0 + $0x28] sm:$0xf]
  %v26 = vld [vmem:[%s0 + $0x2c] sm:$0x1]
  %v27 = vld [vmem:[%s0 + $0x30] sm:$0xf]
  %v28 = vld [vmem:[%s0 + $0x34] sm:$0xf]
  %v29 = vld [vmem:[%s0 + $0x38] sm:$0x1]
  %v30 = vld [vmem:[%s0 + $0x3c] sm:$0xf]
  %v31 = vld [vmem:[%s0 + $0x40] sm:$0xf]
  %v32 = vld [vmem:[%s0 + $0x44] sm:$0x1]
  %v33 = vld [vmem:[%s0 + $0x48] sm:$0xf]
  %v34 = vld [vmem:[%s0 + $0x4c] sm:$0xf]
  %v35 = vld [vmem:[%s0 + $0x50] sm:$0x1]
  %v36 = vld [vmem:[%s0 + $0x54] sm:$0xf]
  %v37 = vld [vmem:[%s0 + $0x58] sm:$0xf]
  %v38 = vld [vmem:[%s0 + $0x5c] sm:$0x1]
  %v39 = vld [vmem:[%s0 + $0x60] sm:$0xf]
  %v40 = vld [vmem:[%s0 + $0x64] sm:$0xf]
  %v41 = vld [vmem:[%s0 + $0x68] sm:$0x1]
  %v42 = vld [vmem:[%s0 + $0x6c] sm:$0xf]
  %v43 = vld [vmem:[%s0 + $0x70] sm:$0xf]
  %v44 = vld [vmem:[%s0 + $0x74] sm:$0x1]
  %v45 = vld [vmem:[%s0 + $0x78] sm:$0xf]
  %v46 = vld [vmem:[%s0 + $0x7c] sm:$0xf]
  %v47 = vld [vmem:[%s0 + $0x80] sm:$0x1]
  %v48 = vld [vmem:[%s0 + $0x84] sm:$0xf]
  %v49 = vld [vmem:[%s0 + $0x88] sm:$0xf]
  %v50 = vld [vmem:[%s0 + $0x8c] sm:$0x1]
  %v51 = vld [vmem:[%s0 + $0x90] sm:$0xf]
  %v52 = vld [vmem:[%s0 + $0x94] sm:$0xf]
  %v53 = vld [vmem:[%s0 + $0x98] sm:$0x1]
  %v54 = vld [vmem:[%s0 + $0x9c] sm:$0xf]
  %v55 = vld [vmem:[%s0 + $0xa0] sm:$0xf]
  %v56 = vld [vmem:[%s0 + $0xa4] sm:$0x1]
  %v57 = vld [vmem:[%s0 + $0xa8] sm:$0xf]
  %v58 = vld [vmem:[%s0 + $0xac] sm:$0xf]
  %v59 = vld [vmem:[%s0 + $0xb0] sm:$0x1]
  %v60 = vld [vmem:[%s0 + $0xb4] sm:$0xf]
  %v61 = vld [vmem:[%s0 + $0xb8] sm:$0xf]
  %v62 = vld [vmem:[%s0 + $0xbc] sm:$0x1]
  %v63 = vld [vmem:[%s0 + $0xc0] sm:$0xf]
  %v64 = vld [vmem:[%s0 + $0xc4] sm:$0xf]
  %v65 = vld [vmem:[%s0 + $0xc8] sm:$0x1]
  %v66 = vld [vmem:[%s0 + $0xcc] sm:$0xf]
  %v67 = vld [vmem:[%s0 + $0xd0] sm:$0xf]
  %v68 = vld [vmem:[%s0 + $0xd4] sm:$0x1]
  %v69 = vld [vmem:[%s0 + $0xd8] sm:$0xf]
  %v70 = vld [vmem:[%s0 + $0xdc] sm:$0xf]
  %v71 = vld [vmem:[%s0 + $0xe0] sm:$0x1]
  %v72 = vld [vmem:[%s0 + $0xe4] sm:$0xf]
  %v73 = vld [vmem:[%s0 + $0xe8] sm:$0xf]
  %v74 = vld [vmem:[%s0 + $0xec] sm:$0x1]
  %v75 = vld [vmem:[%s0 + $0xf0] sm:$0xf]
  %v76 = vld [vmem:[%s0 + $0xf4] sm:$0xf]
  %v77 = vld [vmem:[%s0 + $0xf8] sm:$0x1]
  %v78 = vld [vmem:[%s0 + $0xfc] sm:$0xf]
  %v79 = vld [vmem:[%s0 + $0x100] sm:$0xf]
  %v80 = vld [vmem:[%s0 + $0x104] sm:$0x1]
  %v81 = vld [vmem:[%s0 + $0x108] sm:$0xf]
  %v82 = vld [vmem:[%s0 + $0x10c] sm:$0xf]
  %v83 = vld [vmem:[%s0 + $0x110] sm:$0x1]
  %v84 = vld [vmem:[%s0 + $0x114] sm:$0xf]
  %v85 = vld [vmem:[%s0 + $0x118] sm:$0xf]
  %v86 = vld [vmem:[%s0 + $0x11c] sm:$0x1]
  %v87 = vld [vmem:[%s0 + $0x120] sm:$0xf]
  %v88 = vld [vmem:[%s0 + $0x124] sm:$0xf]
  %v89 = vld [vmem:[%s0 + $0x128] sm:$0x1]
  %v90 = vld [vmem:[%s0 + $0x12c] sm:$0xf]
  %v91 = vld [vmem:[%s0 + $0x130] sm:$0xf]
  %v92 = vld [vmem:[%s0 + $0x134] sm:$0x1]
  %v93 = vld [vmem:[%s0 + $0x138] sm:$0xf]
  %v94 = vld [vmem:[%s0 + $0x13c] sm:$0xf]
  %v95 = vld [vmem:[%s0 + $0x140] sm:$0x1]
  %v96 = vld [vmem:[%s0 + $0x144] sm:$0xf]
  %v97 = vld [vmem:[%s0 + $0x148] sm:$0xf]
  %v98 = vld [vmem:[%s0 + $0x14c] sm:$0x1]
  %v99 = vld [vmem:[%s0 + $0x150] sm:$0xf]
  %v100 = vld [vmem:[%s0 + $0x154] sm:$0xf]
  %v101 = vld [vmem:[%s0 + $0x158] sm:$0x1]
  %v102 = vld [vmem:[%s0 + $0x15c] sm:$0xf]
  %v103 = vld [vmem:[%s0 + $0x160] sm:$0xf]
  %v104 = vld [vmem:[%s0 + $0x164] sm:$0x1]
  %v105 = vld [vmem:[%s0 + $0x168] sm:$0xf]
  %v106 = vld [vmem:[%s0 + $0x16c] sm:$0xf]
  %v107 = vld [vmem:[%s0 + $0x170] sm:$0x1]
  %v108 = vld [vmem:[%s0 + $0x174] sm:$0xf]
  %v109 = vld [vmem:[%s0 + $0x178] sm:$0xf]
  %v110 = vld [vmem:[%s0 + $0x17c] sm:$0x1]
  %v111 = vld [vmem:[%s0 + $0x180] sm:$0xf]
  %v112 = vld [vmem:[%s0 + $0x184] sm:$0xf]
  %v113 = vld [vmem:[%s0 + $0x188] sm:$0x1]
  %v114 = vld [vmem:[%s0 + $0x18c] sm:$0xf]
  %v115 = vld [vmem:[%s0 + $0x190] sm:$0xf]
  %v116 = vld [vmem:[%s0 + $0x194] sm:$0x1]
  %v117 = vld [vmem:[%s0 + $0x198] sm:$0xf]
  %v118 = vld [vmem:[%s0 + $0x19c] sm:$0xf]
  %v119 = vld [vmem:[%s0 + $0x1a0] sm:$0x1]
  %v120 = vld [vmem:[%s0 + $0x1a4] sm:$0xf]
  %v121 = vld [vmem:[%s0 + $0x1a8] sm:$0xf]
  %v122 = vld [vmem:[%s0 + $0x1ac] sm:$0x1]
  %v187 = vunpack.c.l.b16 %v15
  %v188 = vunpack.c.l.b16 %v16
  %v189 = vunpack.c.l.b16 %v18
  %v190 = vunpack.c.l.b16 %v19
  %v191 = vunpack.c.l.b16 %v21
  %v192 = vunpack.c.l.b16 %v22
  %v193 = vunpack.c.l.b16 %v24
  %v194 = vunpack.c.l.b16 %v25
  %v195 = vunpack.c.l.b16 %v27
  %v196 = vunpack.c.l.b16 %v28
  %v197 = vunpack.c.l.b16 %v30
  %v198 = vunpack.c.l.b16 %v31
  %v199 = vunpack.c.l.b16 %v33
  %v200 = vunpack.c.l.b16 %v34
  %v201 = vunpack.c.l.b16 %v36
  %v202 = vunpack.c.l.b16 %v37
  %v203 = vunpack.c.l.b16 %v39
  %v204 = vunpack.c.l.b16 %v40
  %v205 = vunpack.c.l.b16 %v42
  %v206 = vunpack.c.l.b16 %v43
  %v207 = vunpack.c.l.b16 %v45
  %v208 = vunpack.c.l.b16 %v46
  %v209 = vunpack.c.l.b16 %v48
  %v210 = vunpack.c.l.b16 %v49
  %v211 = vunpack.c.l.b16 %v51
  %v212 = vunpack.c.l.b16 %v52
  %v213 = vunpack.c.l.b16 %v54
  %v214 = vunpack.c.l.b16 %v55
  %v215 = vunpack.c.l.b16 %v57
  %v216 = vunpack.c.l.b16 %v58
  %v217 = vunpack.c.l.b16 %v60
  %v218 = vunpack.c.l.b16 %v61
  %v219 = vunpack.c.l.b16 %v69
  %v220 = vunpack.c.l.b16 %v70
  %v221 = vunpack.c.l.b16 %v72
  %v222 = vunpack.c.l.b16 %v73
  %v223 = vunpack.c.l.b16 %v75
  %v224 = vunpack.c.l.b16 %v76
  %v225 = vunpack.c.l.b16 %v78
  %v226 = vunpack.c.l.b16 %v79
  %v227 = vunpack.c.l.b16 %v81
  %v228 = vunpack.c.l.b16 %v82
  %v229 = vunpack.c.l.b16 %v84
  %v230 = vunpack.c.l.b16 %v85
  %v231 = vunpack.c.l.b16 %v87
  %v232 = vunpack.c.l.b16 %v88
  %v233 = vunpack.c.l.b16 %v90
  %v234 = vunpack.c.l.b16 %v91
  %v235 = vunpack.c.l.b16 %v93
  %v236 = vunpack.c.l.b16 %v94
  %v237 = vunpack.c.l.b16 %v96
  %v238 = vunpack.c.l.b16 %v97
  %v239 = vunpack.c.l.b16 %v99
  %v240 = vunpack.c.l.b16 %v100
  %v241 = vunpack.c.l.b16 %v102
  %v242 = vunpack.c.l.b16 %v103
  %v243 = vunpack.c.l.b16 %v105
  %v244 = vunpack.c.l.b16 %v106
  %v245 = vunpack.c.l.b16 %v108
  %v246 = vunpack.c.l.b16 %v109
  %v247 = vunpack.c.l.b16 %v111
  %v248 = vunpack.c.l.b16 %v112
  %v249 = vunpack.c.l.b16 %v114
  %v250 = vunpack.c.l.b16 %v115
  %v251 = vpack.c.b16 %v188, %v187
  %v252 = vpack.c.b16 %v190, %v189
  %v253 = vpack.c.b16 %v192, %v191
  %v254 = vpack.c.b16 %v194, %v193
  %v255 = vpack.c.b16 %v196, %v195
  %v256 = vpack.c.b16 %v198, %v197
  %v257 = vpack.c.b16 %v200, %v199
  %v258 = vpack.c.b16 %v202, %v201
  %v259 = vpack.c.b16 %v204, %v203
  %v260 = vpack.c.b16 %v206, %v205
  %v261 = vpack.c.b16 %v208, %v207
  %v262 = vpack.c.b16 %v210, %v209
  %v263 = vpack.c.b16 %v212, %v211
  %v264 = vpack.c.b16 %v214, %v213
  %v265 = vpack.c.b16 %v216, %v215
  %v266 = vpack.c.b16 %v218, %v217
  %v267 = vpack.c.b16 %v220, %v219
  %v268 = vpack.c.b16 %v222, %v221
  %v269 = vpack.c.b16 %v224, %v223
  %v270 = vpack.c.b16 %v226, %v225
  %v271 = vpack.c.b16 %v228, %v227
  %v272 = vpack.c.b16 %v230, %v229
  %v273 = vpack.c.b16 %v232, %v231
  %v274 = vpack.c.b16 %v234, %v233
  %v275 = vpack.c.b16 %v236, %v235
  %v276 = vpack.c.b16 %v238, %v237
  %v277 = vpack.c.b16 %v240, %v239
  %v278 = vpack.c.b16 %v242, %v241
  %v279 = vpack.c.b16 %v244, %v243
  %v280 = vpack.c.b16 %v246, %v245
  %v281 = vpack.c.b16 %v248, %v247
  %v282 = vpack.c.b16 %v250, %v249
  %v315 = vunpack.c.l.b16 %v17
  %v316 = vunpack.c.l.b16 %v20
  %v317 = vunpack.c.l.b16 %v23
  %v318 = vunpack.c.l.b16 %v26
  %v319 = vunpack.c.l.b16 %v29
  %v320 = vunpack.c.l.b16 %v32
  %v321 = vunpack.c.l.b16 %v35
  %v322 = vunpack.c.l.b16 %v38
  %v323 = vunpack.c.l.b16 %v41
  %v324 = vunpack.c.l.b16 %v44
  %v325 = vunpack.c.l.b16 %v47
  %v326 = vunpack.c.l.b16 %v50
  %v327 = vunpack.c.l.b16 %v53
  %v328 = vunpack.c.l.b16 %v56
  %v329 = vunpack.c.l.b16 %v59
  %v330 = vunpack.c.l.b16 %v62
  %v331 = vunpack.c.l.b16 %v71
  %v332 = vunpack.c.l.b16 %v74
  %v333 = vunpack.c.l.b16 %v77
  %v334 = vunpack.c.l.b16 %v80
  %v335 = vunpack.c.l.b16 %v83
  %v336 = vunpack.c.l.b16 %v86
  %v337 = vunpack.c.l.b16 %v89
  %v338 = vunpack.c.l.b16 %v92
  %v339 = vunpack.c.l.b16 %v95
  %v340 = vunpack.c.l.b16 %v98
  %v341 = vunpack.c.l.b16 %v101
  %v342 = vunpack.c.l.b16 %v104
  %v343 = vunpack.c.l.b16 %v107
  %v344 = vunpack.c.l.b16 %v110
  %v345 = vunpack.c.l.b16 %v113
  %v346 = vunpack.c.l.b16 %v116
  %v347 = vpack.c.b16 %v315, %v315
  %v348 = vpack.c.b16 %v316, %v316
  %v349 = vpack.c.b16 %v317, %v317
  %v350 = vpack.c.b16 %v318, %v318
  %v351 = vpack.c.b16 %v319, %v319
  %v352 = vpack.c.b16 %v320, %v320
  %v353 = vpack.c.b16 %v321, %v321
  %v354 = vpack.c.b16 %v322, %v322
  %v355 = vpack.c.b16 %v323, %v323
  %v356 = vpack.c.b16 %v324, %v324
  %v357 = vpack.c.b16 %v325, %v325
  %v358 = vpack.c.b16 %v326, %v326
  %v359 = vpack.c.b16 %v327, %v327
  %v360 = vpack.c.b16 %v328, %v328
  %v361 = vpack.c.b16 %v329, %v329
  %v362 = vpack.c.b16 %v330, %v330
  %v363 = vpack.c.b16 %v331, %v331
  %v364 = vpack.c.b16 %v332, %v332
  %v365 = vpack.c.b16 %v333, %v333
  %v366 = vpack.c.b16 %v334, %v334
  %v367 = vpack.c.b16 %v335, %v335
  %v368 = vpack.c.b16 %v336, %v336
  %v369 = vpack.c.b16 %v337, %v337
  %v370 = vpack.c.b16 %v338, %v338
  %v371 = vpack.c.b16 %v339, %v339
  %v372 = vpack.c.b16 %v340, %v340
  %v373 = vpack.c.b16 %v341, %v341
  %v374 = vpack.c.b16 %v342, %v342
  %v375 = vpack.c.b16 %v343, %v343
  %v376 = vpack.c.b16 %v344, %v344
  %v377 = vpack.c.b16 %v345, %v345
  %v378 = vpack.c.b16 %v346, %v346
  %vm379 = vsmask.f32 7424
  %v381 = vshrl.u32 %v251, 16
  %v383 = vshll.u32 %v251, 16
  %v385 = vrot.slane %v383, 1
  %v386 = vor.u32 %v381, %v385
  %v388 = vshll.u32 %v347, 16
  %v390 = vrot.slane %v388, 1
  %v391 = vsel %vm379, %v386, %v390
  %v393 = vshrl.u32 %v252, 16
  %v395 = vshll.u32 %v252, 16
  %v397 = vrot.slane %v395, 1
  %v398 = vor.u32 %v393, %v397
  %v400 = vshll.u32 %v348, 16
  %v402 = vrot.slane %v400, 1
  %v403 = vsel %vm379, %v398, %v402
  %v405 = vshrl.u32 %v253, 16
  %v407 = vshll.u32 %v253, 16
  %v409 = vrot.slane %v407, 1
  %v410 = vor.u32 %v405, %v409
  %v412 = vshll.u32 %v349, 16
  %v414 = vrot.slane %v412, 1
  %v415 = vsel %vm379, %v410, %v414
  %v417 = vshrl.u32 %v254, 16
  %v419 = vshll.u32 %v254, 16
  %v421 = vrot.slane %v419, 1
  %v422 = vor.u32 %v417, %v421
  %v424 = vshll.u32 %v350, 16
  %v426 = vrot.slane %v424, 1
  %v427 = vsel %vm379, %v422, %v426
  %v429 = vshrl.u32 %v255, 16
  %v431 = vshll.u32 %v255, 16
  %v433 = vrot.slane %v431, 1
  %v434 = vor.u32 %v429, %v433
  %v436 = vshll.u32 %v351, 16
  %v438 = vrot.slane %v436, 1
  %v439 = vsel %vm379, %v434, %v438
  %v441 = vshrl.u32 %v256, 16
  %v443 = vshll.u32 %v256, 16
  %v445 = vrot.slane %v443, 1
  %v446 = vor.u32 %v441, %v445
  %v448 = vshll.u32 %v352, 16
  %v450 = vrot.slane %v448, 1
  %v451 = vsel %vm379, %v446, %v450
  %v453 = vshrl.u32 %v257, 16
  %v455 = vshll.u32 %v257, 16
  %v457 = vrot.slane %v455, 1
  %v458 = vor.u32 %v453, %v457
  %v460 = vshll.u32 %v353, 16
  %v462 = vrot.slane %v460, 1
  %v463 = vsel %vm379, %v458, %v462
  %v465 = vshrl.u32 %v258, 16
  %v467 = vshll.u32 %v258, 16
  %v469 = vrot.slane %v467, 1
  %v470 = vor.u32 %v465, %v469
  %v472 = vshll.u32 %v354, 16
  %v474 = vrot.slane %v472, 1
  %v475 = vsel %vm379, %v470, %v474
  %v477 = vshrl.u32 %v259, 16
  %v479 = vshll.u32 %v259, 16
  %v481 = vrot.slane %v479, 1
  %v482 = vor.u32 %v477, %v481
  %v484 = vshll.u32 %v355, 16
  %v486 = vrot.slane %v484, 1
  %v487 = vsel %vm379, %v482, %v486
  %v489 = vshrl.u32 %v260, 16
  %v491 = vshll.u32 %v260, 16
  %v493 = vrot.slane %v491, 1
  %v494 = vor.u32 %v489, %v493
  %v496 = vshll.u32 %v356, 16
  %v498 = vrot.slane %v496, 1
  %v499 = vsel %vm379, %v494, %v498
  %v501 = vshrl.u32 %v261, 16
  %v503 = vshll.u32 %v261, 16
  %v505 = vrot.slane %v503, 1
  %v506 = vor.u32 %v501, %v505
  %v508 = vshll.u32 %v357, 16
  %v510 = vrot.slane %v508, 1
  %v511 = vsel %vm379, %v506, %v510
  %v513 = vshrl.u32 %v262, 16
  %v515 = vshll.u32 %v262, 16
  %v517 = vrot.slane %v515, 1
  %v518 = vor.u32 %v513, %v517
  %v520 = vshll.u32 %v358, 16
  %v522 = vrot.slane %v520, 1
  %v523 = vsel %vm379, %v518, %v522
  %v525 = vshrl.u32 %v263, 16
  %v527 = vshll.u32 %v263, 16
  %v529 = vrot.slane %v527, 1
  %v530 = vor.u32 %v525, %v529
  %v532 = vshll.u32 %v359, 16
  %v534 = vrot.slane %v532, 1
  %v535 = vsel %vm379, %v530, %v534
  %v537 = vshrl.u32 %v264, 16
  %v539 = vshll.u32 %v264, 16
  %v541 = vrot.slane %v539, 1
  %v542 = vor.u32 %v537, %v541
  %v544 = vshll.u32 %v360, 16
  %v546 = vrot.slane %v544, 1
  %v547 = vsel %vm379, %v542, %v546
  %v549 = vshrl.u32 %v265, 16
  %v551 = vshll.u32 %v265, 16
  %v553 = vrot.slane %v551, 1
  %v554 = vor.u32 %v549, %v553
  %v556 = vshll.u32 %v361, 16
  %v558 = vrot.slane %v556, 1
  %v559 = vsel %vm379, %v554, %v558
  %v561 = vshrl.u32 %v266, 16
  %v563 = vshll.u32 %v266, 16
  %v565 = vrot.slane %v563, 1
  %v566 = vor.u32 %v561, %v565
  %v568 = vshll.u32 %v362, 16
  %v570 = vrot.slane %v568, 1
  %v571 = vsel %vm379, %v566, %v570
  %v573 = vshrl.u32 %v267, 16
  %v575 = vshll.u32 %v267, 16
  %v577 = vrot.slane %v575, 1
  %v578 = vor.u32 %v573, %v577
  %v580 = vshll.u32 %v363, 16
  %v582 = vrot.slane %v580, 1
  %v583 = vsel %vm379, %v578, %v582
  %v585 = vshrl.u32 %v268, 16
  %v587 = vshll.u32 %v268, 16
  %v589 = vrot.slane %v587, 1
  %v590 = vor.u32 %v585, %v589
  %v592 = vshll.u32 %v364, 16
  %v594 = vrot.slane %v592, 1
  %v595 = vsel %vm379, %v590, %v594
  %v597 = vshrl.u32 %v269, 16
  %v599 = vshll.u32 %v269, 16
  %v601 = vrot.slane %v599, 1
  %v602 = vor.u32 %v597, %v601
  %v604 = vshll.u32 %v365, 16
  %v606 = vrot.slane %v604, 1
  %v607 = vsel %vm379, %v602, %v606
  %v609 = vshrl.u32 %v270, 16
  %v611 = vshll.u32 %v270, 16
  %v613 = vrot.slane %v611, 1
  %v614 = vor.u32 %v609, %v613
  %v616 = vshll.u32 %v366, 16
  %v618 = vrot.slane %v616, 1
  %v619 = vsel %vm379, %v614, %v618
  %v621 = vshrl.u32 %v271, 16
  %v623 = vshll.u32 %v271, 16
  %v625 = vrot.slane %v623, 1
  %v626 = vor.u32 %v621, %v625
  %v628 = vshll.u32 %v367, 16
  %v630 = vrot.slane %v628, 1
  %v631 = vsel %vm379, %v626, %v630
  %v633 = vshrl.u32 %v272, 16
  %v635 = vshll.u32 %v272, 16
  %v637 = vrot.slane %v635, 1
  %v638 = vor.u32 %v633, %v637
  %v640 = vshll.u32 %v368, 16
  %v642 = vrot.slane %v640, 1
  %v643 = vsel %vm379, %v638, %v642
  %v645 = vshrl.u32 %v273, 16
  %v647 = vshll.u32 %v273, 16
  %v649 = vrot.slane %v647, 1
  %v650 = vor.u32 %v645, %v649
  %v652 = vshll.u32 %v369, 16
  %v654 = vrot.slane %v652, 1
  %v655 = vsel %vm379, %v650, %v654
  %v657 = vshrl.u32 %v274, 16
  %v659 = vshll.u32 %v274, 16
  %v661 = vrot.slane %v659, 1
  %v662 = vor.u32 %v657, %v661
  %v664 = vshll.u32 %v370, 16
  %v666 = vrot.slane %v664, 1
  %v667 = vsel %vm379, %v662, %v666
  %v669 = vshrl.u32 %v275, 16
  %v671 = vshll.u32 %v275, 16
  %v673 = vrot.slane %v671, 1
  %v674 = vor.u32 %v669, %v673
  %v676 = vshll.u32 %v371, 16
  %v678 = vrot.slane %v676, 1
  %v679 = vsel %vm379, %v674, %v678
  %v681 = vshrl.u32 %v276, 16
  %v683 = vshll.u32 %v276, 16
  %v685 = vrot.slane %v683, 1
  %v686 = vor.u32 %v681, %v685
  %v688 = vshll.u32 %v372, 16
  %v690 = vrot.slane %v688, 1
  %v691 = vsel %vm379, %v686, %v690
  %v693 = vshrl.u32 %v277, 16
  %v695 = vshll.u32 %v277, 16
  %v697 = vrot.slane %v695, 1
  %v698 = vor.u32 %v693, %v697
  %v700 = vshll.u32 %v373, 16
  %v702 = vrot.slane %v700, 1
  %v703 = vsel %vm379, %v698, %v702
  %v705 = vshrl.u32 %v278, 16
  %v707 = vshll.u32 %v278, 16
  %v709 = vrot.slane %v707, 1
  %v710 = vor.u32 %v705, %v709
  %v712 = vshll.u32 %v374, 16
  %v714 = vrot.slane %v712, 1
  %v715 = vsel %vm379, %v710, %v714
  %v717 = vshrl.u32 %v279, 16
  %v719 = vshll.u32 %v279, 16
  %v721 = vrot.slane %v719, 1
  %v722 = vor.u32 %v717, %v721
  %v724 = vshll.u32 %v375, 16
  %v726 = vrot.slane %v724, 1
  %v727 = vsel %vm379, %v722, %v726
  %v729 = vshrl.u32 %v280, 16
  %v731 = vshll.u32 %v280, 16
  %v733 = vrot.slane %v731, 1
  %v734 = vor.u32 %v729, %v733
  %v736 = vshll.u32 %v376, 16
  %v738 = vrot.slane %v736, 1
  %v739 = vsel %vm379, %v734, %v738
  %v741 = vshrl.u32 %v281, 16
  %v743 = vshll.u32 %v281, 16
  %v745 = vrot.slane %v743, 1
  %v746 = vor.u32 %v741, %v745
  %v748 = vshll.u32 %v377, 16
  %v750 = vrot.slane %v748, 1
  %v751 = vsel %vm379, %v746, %v750
  %v753 = vshrl.u32 %v282, 16
  %v755 = vshll.u32 %v282, 16
  %v757 = vrot.slane %v755, 1
  %v758 = vor.u32 %v753, %v757
  %v760 = vshll.u32 %v378, 16
  %v762 = vrot.slane %v760, 1
  %v763 = vsel %vm379, %v758, %v762
  %764 = vrot.lane.b32.xlu0 %v391, 4
  %v765 = vpop.permute.xlu0 %764
  %766 = vrot.lane.b32.xlu0 %v403, 4
  %v767 = vpop.permute.xlu0 %766
  %768 = vrot.lane.b32.xlu0 %v415, 4
  %v769 = vpop.permute.xlu0 %768
  %770 = vrot.lane.b32.xlu0 %v427, 4
  %v771 = vpop.permute.xlu0 %770
  %772 = vrot.lane.b32.xlu0 %v439, 4
  %v773 = vpop.permute.xlu0 %772
  %774 = vrot.lane.b32.xlu0 %v451, 4
  %v775 = vpop.permute.xlu0 %774
  %776 = vrot.lane.b32.xlu0 %v463, 4
  %v777 = vpop.permute.xlu0 %776
  %778 = vrot.lane.b32.xlu0 %v475, 4
  %v779 = vpop.permute.xlu0 %778
  %780 = vrot.lane.b32.xlu0 %v487, 4
  %v781 = vpop.permute.xlu0 %780
  %782 = vrot.lane.b32.xlu0 %v499, 4
  %v783 = vpop.permute.xlu0 %782
  %784 = vrot.lane.b32.xlu0 %v511, 4
  %v785 = vpop.permute.xlu0 %784
  %786 = vrot.lane.b32.xlu0 %v523, 4
  %v787 = vpop.permute.xlu0 %786
  %788 = vrot.lane.b32.xlu0 %v535, 4
  %v789 = vpop.permute.xlu0 %788
  %790 = vrot.lane.b32.xlu0 %v547, 4
  %v791 = vpop.permute.xlu0 %790
  %792 = vrot.lane.b32.xlu0 %v559, 4
  %v793 = vpop.permute.xlu0 %792
  %794 = vrot.lane.b32.xlu0 %v571, 4
  %v795 = vpop.permute.xlu0 %794
  %796 = vrot.lane.b32.xlu0 %v583, 4
  %v797 = vpop.permute.xlu0 %796
  %798 = vrot.lane.b32.xlu0 %v595, 4
  %v799 = vpop.permute.xlu0 %798
  %800 = vrot.lane.b32.xlu0 %v607, 4
  %v801 = vpop.permute.xlu0 %800
  %802 = vrot.lane.b32.xlu0 %v619, 4
  %v803 = vpop.permute.xlu0 %802
  %804 = vrot.lane.b32.xlu0 %v631, 4
  %v805 = vpop.permute.xlu0 %804
  %806 = vrot.lane.b32.xlu0 %v643, 4
  %v807 = vpop.permute.xlu0 %806
  %808 = vrot.lane.b32.xlu0 %v655, 4
  %v809 = vpop.permute.xlu0 %808
  %810 = vrot.lane.b32.xlu0 %v667, 4
  %v811 = vpop.permute.xlu0 %810
  %812 = vrot.lane.b32.xlu0 %v679, 4
  %v813 = vpop.permute.xlu0 %812
  %814 = vrot.lane.b32.xlu0 %v691, 4
  %v815 = vpop.permute.xlu0 %814
  %816 = vrot.lane.b32.xlu0 %v703, 4
  %v817 = vpop.permute.xlu0 %816
  %818 = vrot.lane.b32.xlu0 %v715, 4
  %v819 = vpop.permute.xlu0 %818
  %820 = vrot.lane.b32.xlu0 %v727, 4
  %v821 = vpop.permute.xlu0 %820
  %822 = vrot.lane.b32.xlu0 %v739, 4
  %v823 = vpop.permute.xlu0 %822
  %824 = vrot.lane.b32.xlu0 %v751, 4
  %v825 = vpop.permute.xlu0 %824
  %826 = vrot.lane.b32.xlu0 %v763, 4
  %v827 = vpop.permute.xlu0 %826
  %vm828 = vcmask 1046528
  %v829 = vrot.slane %v251, 1
  %v830 = vrot.slane %v347, 1
  %v831 = vsel %vm828, %v829, %v830
  %v832 = vrot.slane %v252, 1
  %v833 = vrot.slane %v348, 1
  %v834 = vsel %vm828, %v832, %v833
  %v835 = vrot.slane %v253, 1
  %v836 = vrot.slane %v349, 1
  %v837 = vsel %vm828, %v835, %v836
  %v838 = vrot.slane %v254, 1
  %v839 = vrot.slane %v350, 1
  %v840 = vsel %vm828, %v838, %v839
  %v841 = vrot.slane %v255, 1
  %v842 = vrot.slane %v351, 1
  %v843 = vsel %vm828, %v841, %v842
  %v844 = vrot.slane %v256, 1
  %v845 = vrot.slane %v352, 1
  %v846 = vsel %vm828, %v844, %v845
  %v847 = vrot.slane %v257, 1
  %v848 = vrot.slane %v353, 1
  %v849 = vsel %vm828, %v847, %v848
  %v850 = vrot.slane %v258, 1
  %v851 = vrot.slane %v354, 1
  %v852 = vsel %vm828, %v850, %v851
  %v853 = vrot.slane %v259, 1
  %v854 = vrot.slane %v355, 1
  %v855 = vsel %vm828, %v853, %v854
  %v856 = vrot.slane %v260, 1
  %v857 = vrot.slane %v356, 1
  %v858 = vsel %vm828, %v856, %v857
  %v859 = vrot.slane %v261, 1
  %v860 = vrot.slane %v357, 1
  %v861 = vsel %vm828, %v859, %v860
  %v862 = vrot.slane %v262, 1
  %v863 = vrot.slane %v358, 1
  %v864 = vsel %vm828, %v862, %v863
  %v865 = vrot.slane %v263, 1
  %v866 = vrot.slane %v359, 1
  %v867 = vsel %vm828, %v865, %v866
  %v868 = vrot.slane %v264, 1
  %v869 = vrot.slane %v360, 1
  %v870 = vsel %vm828, %v868, %v869
  %v871 = vrot.slane %v265, 1
  %v872 = vrot.slane %v361, 1
  %v873 = vsel %vm828, %v871, %v872
  %v874 = vrot.slane %v266, 1
  %v875 = vrot.slane %v362, 1
  %v876 = vsel %vm828, %v874, %v875
  %v877 = vrot.slane %v267, 1
  %v878 = vrot.slane %v363, 1
  %v879 = vsel %vm828, %v877, %v878
  %v880 = vrot.slane %v268, 1
  %v881 = vrot.slane %v364, 1
  %v882 = vsel %vm828, %v880, %v881
  %v883 = vrot.slane %v269, 1
  %v884 = vrot.slane %v365, 1
  %v885 = vsel %vm828, %v883, %v884
  %v886 = vrot.slane %v270, 1
  %v887 = vrot.slane %v366, 1
  %v888 = vsel %vm828, %v886, %v887
  %v889 = vrot.slane %v271, 1
  %v890 = vrot.slane %v367, 1
  %v891 = vsel %vm828, %v889, %v890
  %v892 = vrot.slane %v272, 1
  %v893 = vrot.slane %v368, 1
  %v894 = vsel %vm828, %v892, %v893
  %v895 = vrot.slane %v273, 1
  %v896 = vrot.slane %v369, 1
  %v897 = vsel %vm828, %v895, %v896
  %v898 = vrot.slane %v274, 1
  %v899 = vrot.slane %v370, 1
  %v900 = vsel %vm828, %v898, %v899
  %v901 = vrot.slane %v275, 1
  %v902 = vrot.slane %v371, 1
  %v903 = vsel %vm828, %v901, %v902
  %v904 = vrot.slane %v276, 1
  %v905 = vrot.slane %v372, 1
  %v906 = vsel %vm828, %v904, %v905
  %v907 = vrot.slane %v277, 1
  %v908 = vrot.slane %v373, 1
  %v909 = vsel %vm828, %v907, %v908
  %v910 = vrot.slane %v278, 1
  %v911 = vrot.slane %v374, 1
  %v912 = vsel %vm828, %v910, %v911
  %v913 = vrot.slane %v279, 1
  %v914 = vrot.slane %v375, 1
  %v915 = vsel %vm828, %v913, %v914
  %v916 = vrot.slane %v280, 1
  %v917 = vrot.slane %v376, 1
  %v918 = vsel %vm828, %v916, %v917
  %v919 = vrot.slane %v281, 1
  %v920 = vrot.slane %v377, 1
  %v921 = vsel %vm828, %v919, %v920
  %v922 = vrot.slane %v282, 1
  %v923 = vrot.slane %v378, 1
  %v924 = vsel %vm828, %v922, %v923
  %925 = vrot.lane.b32.xlu0 %v831, 8
  %v926 = vpop.permute.xlu0 %925
  %927 = vrot.lane.b32.xlu0 %v834, 8
  %v928 = vpop.permute.xlu0 %927
  %929 = vrot.lane.b32.xlu0 %v837, 8
  %v930 = vpop.permute.xlu0 %929
  %931 = vrot.lane.b32.xlu0 %v840, 8
  %v932 = vpop.permute.xlu0 %931
  %933 = vrot.lane.b32.xlu0 %v843, 8
  %v934 = vpop.permute.xlu0 %933
  %935 = vrot.lane.b32.xlu0 %v846, 8
  %v936 = vpop.permute.xlu0 %935
  %937 = vrot.lane.b32.xlu0 %v849, 8
  %v938 = vpop.permute.xlu0 %937
  %939 = vrot.lane.b32.xlu0 %v852, 8
  %v940 = vpop.permute.xlu0 %939
  %941 = vrot.lane.b32.xlu0 %v855, 8
  %v942 = vpop.permute.xlu0 %941
  %943 = vrot.lane.b32.xlu0 %v858, 8
  %v944 = vpop.permute.xlu0 %943
  %945 = vrot.lane.b32.xlu0 %v861, 8
  %v946 = vpop.permute.xlu0 %945
  %947 = vrot.lane.b32.xlu0 %v864, 8
  %v948 = vpop.permute.xlu0 %947
  %949 = vrot.lane.b32.xlu0 %v867, 8
  %v950 = vpop.permute.xlu0 %949
  %951 = vrot.lane.b32.xlu0 %v870, 8
  %v952 = vpop.permute.xlu0 %951
  %953 = vrot.lane.b32.xlu0 %v873, 8
  %v954 = vpop.permute.xlu0 %953
  %955 = vrot.lane.b32.xlu0 %v876, 8
  %v956 = vpop.permute.xlu0 %955
  %957 = vrot.lane.b32.xlu0 %v879, 8
  %v958 = vpop.permute.xlu0 %957
  %959 = vrot.lane.b32.xlu0 %v882, 8
  %v960 = vpop.permute.xlu0 %959
  %961 = vrot.lane.b32.xlu0 %v885, 8
  %v962 = vpop.permute.xlu0 %961
  %963 = vrot.lane.b32.xlu0 %v888, 8
  %v964 = vpop.permute.xlu0 %963
  %965 = vrot.lane.b32.xlu0 %v891, 8
  %v966 = vpop.permute.xlu0 %965
  %967 = vrot.lane.b32.xlu0 %v894, 8
  %v968 = vpop.permute.xlu0 %967
  %969 = vrot.lane.b32.xlu0 %v897, 8
  %v970 = vpop.permute.xlu0 %969
  %971 = vrot.lane.b32.xlu0 %v900, 8
  %v972 = vpop.permute.xlu0 %971
  %973 = vrot.lane.b32.xlu0 %v903, 8
  %v974 = vpop.permute.xlu0 %973
  %975 = vrot.lane.b32.xlu0 %v906, 8
  %v976 = vpop.permute.xlu0 %975
  %977 = vrot.lane.b32.xlu0 %v909, 8
  %v978 = vpop.permute.xlu0 %977
  %979 = vrot.lane.b32.xlu0 %v912, 8
  %v980 = vpop.permute.xlu0 %979
  %981 = vrot.lane.b32.xlu0 %v915, 8
  %v982 = vpop.permute.xlu0 %981
  %983 = vrot.lane.b32.xlu0 %v918, 8
  %v984 = vpop.permute.xlu0 %983
  %985 = vrot.lane.b32.xlu0 %v921, 8
  %v986 = vpop.permute.xlu0 %985
  %987 = vrot.lane.b32.xlu0 %v924, 8
  %v988 = vpop.permute.xlu0 %987
  %v993 = vunpack.c.l.b16 %v63
  %v994 = vunpack.c.l.b16 %v64
  %v995 = vunpack.c.l.b16 %v117
  %v996 = vunpack.c.l.b16 %v118
  %v997 = vpack.c.b16 %v994, %v993
  %v998 = vpack.c.b16 %v996, %v995
  %999 = vrot.lane.b32.xlu0 %v252, 12
  %v1000 = vpop.permute.xlu0 %999
  %1001 = vrot.lane.b32.xlu0 %v253, 12
  %v1002 = vpop.permute.xlu0 %1001
  %1003 = vrot.lane.b32.xlu0 %v254, 12
  %v1004 = vpop.permute.xlu0 %1003
  %1005 = vrot.lane.b32.xlu0 %v255, 12
  %v1006 = vpop.permute.xlu0 %1005
  %1007 = vrot.lane.b32.xlu0 %v256, 12
  %v1008 = vpop.permute.xlu0 %1007
  %1009 = vrot.lane.b32.xlu0 %v257, 12
  %v1010 = vpop.permute.xlu0 %1009
  %1011 = vrot.lane.b32.xlu0 %v258, 12
  %v1012 = vpop.permute.xlu0 %1011
  %1013 = vrot.lane.b32.xlu0 %v259, 12
  %v1014 = vpop.permute.xlu0 %1013
  %1015 = vrot.lane.b32.xlu0 %v260, 12
  %v1016 = vpop.permute.xlu0 %1015
  %1017 = vrot.lane.b32.xlu0 %v261, 12
  %v1018 = vpop.permute.xlu0 %1017
  %1019 = vrot.lane.b32.xlu0 %v262, 12
  %v1020 = vpop.permute.xlu0 %1019
  %1021 = vrot.lane.b32.xlu0 %v263, 12
  %v1022 = vpop.permute.xlu0 %1021
  %1023 = vrot.lane.b32.xlu0 %v264, 12
  %v1024 = vpop.permute.xlu0 %1023
  %1025 = vrot.lane.b32.xlu0 %v265, 12
  %v1026 = vpop.permute.xlu0 %1025
  %1027 = vrot.lane.b32.xlu0 %v266, 12
  %v1028 = vpop.permute.xlu0 %1027
  %1029 = vrot.lane.b32.xlu0 %v997, 12
  %v1030 = vpop.permute.xlu0 %1029
  %1031 = vrot.lane.b32.xlu0 %v268, 12
  %v1032 = vpop.permute.xlu0 %1031
  %1033 = vrot.lane.b32.xlu0 %v269, 12
  %v1034 = vpop.permute.xlu0 %1033
  %1035 = vrot.lane.b32.xlu0 %v270, 12
  %v1036 = vpop.permute.xlu0 %1035
  %1037 = vrot.lane.b32.xlu0 %v271, 12
  %v1038 = vpop.permute.xlu0 %1037
  %1039 = vrot.lane.b32.xlu0 %v272, 12
  %v1040 = vpop.permute.xlu0 %1039
  %1041 = vrot.lane.b32.xlu0 %v273, 12
  %v1042 = vpop.permute.xlu0 %1041
  %1043 = vrot.lane.b32.xlu0 %v274, 12
  %v1044 = vpop.permute.xlu0 %1043
  %1045 = vrot.lane.b32.xlu0 %v275, 12
  %v1046 = vpop.permute.xlu0 %1045
  %1047 = vrot.lane.b32.xlu0 %v276, 12
  %v1048 = vpop.permute.xlu0 %1047
  %1049 = vrot.lane.b32.xlu0 %v277, 12
  %v1050 = vpop.permute.xlu0 %1049
  %1051 = vrot.lane.b32.xlu0 %v278, 12
  %v1052 = vpop.permute.xlu0 %1051
  %1053 = vrot.lane.b32.xlu0 %v279, 12
  %v1054 = vpop.permute.xlu0 %1053
  %1055 = vrot.lane.b32.xlu0 %v280, 12
  %v1056 = vpop.permute.xlu0 %1055
  %1057 = vrot.lane.b32.xlu0 %v281, 12
  %v1058 = vpop.permute.xlu0 %1057
  %1059 = vrot.lane.b32.xlu0 %v282, 12
  %v1060 = vpop.permute.xlu0 %1059
  %1061 = vrot.lane.b32.xlu0 %v998, 12
  %v1062 = vpop.permute.xlu0 %1061
  %v1065 = vunpack.c.l.b16 %v65
  %v1066 = vunpack.c.l.b16 %v119
  %v1067 = vpack.c.b16 %v1065, %v1065
  %v1068 = vpack.c.b16 %v1066, %v1066
  %v1070 = vshrl.u32 %v997, 16
  %v1072 = vshll.u32 %v997, 16
  %v1074 = vrot.slane %v1072, 1
  %v1075 = vor.u32 %v1070, %v1074
  %v1077 = vshll.u32 %v1067, 16
  %v1079 = vrot.slane %v1077, 1
  %v1080 = vsel %vm379, %v1075, %v1079
  %v1082 = vshrl.u32 %v998, 16
  %v1084 = vshll.u32 %v998, 16
  %v1086 = vrot.slane %v1084, 1
  %v1087 = vor.u32 %v1082, %v1086
  %v1089 = vshll.u32 %v1068, 16
  %v1091 = vrot.slane %v1089, 1
  %v1092 = vsel %vm379, %v1087, %v1091
  %1093 = vrot.lane.b32.xlu0 %v403, 16
  %v1094 = vpop.permute.xlu0 %1093
  %1095 = vrot.lane.b32.xlu0 %v415, 16
  %v1096 = vpop.permute.xlu0 %1095
  %1097 = vrot.lane.b32.xlu0 %v427, 16
  %v1098 = vpop.permute.xlu0 %1097
  %1099 = vrot.lane.b32.xlu0 %v439, 16
  %v1100 = vpop.permute.xlu0 %1099
  %1101 = vrot.lane.b32.xlu0 %v451, 16
  %v1102 = vpop.permute.xlu0 %1101
  %1103 = vrot.lane.b32.xlu0 %v463, 16
  %v1104 = vpop.permute.xlu0 %1103
  %1105 = vrot.lane.b32.xlu0 %v475, 16
  %v1106 = vpop.permute.xlu0 %1105
  %1107 = vrot.lane.b32.xlu0 %v487, 16
  %v1108 = vpop.permute.xlu0 %1107
  %1109 = vrot.lane.b32.xlu0 %v499, 16
  %v1110 = vpop.permute.xlu0 %1109
  %1111 = vrot.lane.b32.xlu0 %v511, 16
  %v1112 = vpop.permute.xlu0 %1111
  %1113 = vrot.lane.b32.xlu0 %v523, 16
  %v1114 = vpop.permute.xlu0 %1113
  %1115 = vrot.lane.b32.xlu0 %v535, 16
  %v1116 = vpop.permute.xlu0 %1115
  %1117 = vrot.lane.b32.xlu0 %v547, 16
  %v1118 = vpop.permute.xlu0 %1117
  %1119 = vrot.lane.b32.xlu0 %v559, 16
  %v1120 = vpop.permute.xlu0 %1119
  %1121 = vrot.lane.b32.xlu0 %v571, 16
  %v1122 = vpop.permute.xlu0 %1121
  %1123 = vrot.lane.b32.xlu0 %v1080, 16
  %v1124 = vpop.permute.xlu0 %1123
  %1125 = vrot.lane.b32.xlu0 %v595, 16
  %v1126 = vpop.permute.xlu0 %1125
  %1127 = vrot.lane.b32.xlu0 %v607, 16
  %v1128 = vpop.permute.xlu0 %1127
  %1129 = vrot.lane.b32.xlu0 %v619, 16
  %v1130 = vpop.permute.xlu0 %1129
  %1131 = vrot.lane.b32.xlu0 %v631, 16
  %v1132 = vpop.permute.xlu0 %1131
  %1133 = vrot.lane.b32.xlu0 %v643, 16
  %v1134 = vpop.permute.xlu0 %1133
  %1135 = vrot.lane.b32.xlu0 %v655, 16
  %v1136 = vpop.permute.xlu0 %1135
  %1137 = vrot.lane.b32.xlu0 %v667, 16
  %v1138 = vpop.permute.xlu0 %1137
  %1139 = vrot.lane.b32.xlu0 %v679, 16
  %v1140 = vpop.permute.xlu0 %1139
  %1141 = vrot.lane.b32.xlu0 %v691, 16
  %v1142 = vpop.permute.xlu0 %1141
  %1143 = vrot.lane.b32.xlu0 %v703, 16
  %v1144 = vpop.permute.xlu0 %1143
  %1145 = vrot.lane.b32.xlu0 %v715, 16
  %v1146 = vpop.permute.xlu0 %1145
  %1147 = vrot.lane.b32.xlu0 %v727, 16
  %v1148 = vpop.permute.xlu0 %1147
  %1149 = vrot.lane.b32.xlu0 %v739, 16
  %v1150 = vpop.permute.xlu0 %1149
  %1151 = vrot.lane.b32.xlu0 %v751, 16
  %v1152 = vpop.permute.xlu0 %1151
  %1153 = vrot.lane.b32.xlu0 %v763, 16
  %v1154 = vpop.permute.xlu0 %1153
  %1155 = vrot.lane.b32.xlu0 %v1092, 16
  %v1156 = vpop.permute.xlu0 %1155
  %v1157 = vrot.slane %v997, 1
  %v1158 = vrot.slane %v1067, 1
  %v1159 = vsel %vm828, %v1157, %v1158
  %v1160 = vrot.slane %v998, 1
  %v1161 = vrot.slane %v1068, 1
  %v1162 = vsel %vm828, %v1160, %v1161
  %1163 = vrot.lane.b32.xlu0 %v834, 20
  %v1164 = vpop.permute.xlu0 %1163
  %1165 = vrot.lane.b32.xlu0 %v837, 20
  %v1166 = vpop.permute.xlu0 %1165
  %1167 = vrot.lane.b32.xlu0 %v840, 20
  %v1168 = vpop.permute.xlu0 %1167
  %1169 = vrot.lane.b32.xlu0 %v843, 20
  %v1170 = vpop.permute.xlu0 %1169
  %1171 = vrot.lane.b32.xlu0 %v846, 20
  %v1172 = vpop.permute.xlu0 %1171
  %1173 = vrot.lane.b32.xlu0 %v849, 20
  %v1174 = vpop.permute.xlu0 %1173
  %1175 = vrot.lane.b32.xlu0 %v852, 20
  %v1176 = vpop.permute.xlu0 %1175
  %1177 = vrot.lane.b32.xlu0 %v855, 20
  %v1178 = vpop.permute.xlu0 %1177
  %1179 = vrot.lane.b32.xlu0 %v858, 20
  %v1180 = vpop.permute.xlu0 %1179
  %1181 = vrot.lane.b32.xlu0 %v861, 20
  %v1182 = vpop.permute.xlu0 %1181
  %1183 = vrot.lane.b32.xlu0 %v864, 20
  %v1184 = vpop.permute.xlu0 %1183
  %1185 = vrot.lane.b32.xlu0 %v867, 20
  %v1186 = vpop.permute.xlu0 %1185
  %1187 = vrot.lane.b32.xlu0 %v870, 20
  %v1188 = vpop.permute.xlu0 %1187
  %1189 = vrot.lane.b32.xlu0 %v873, 20
  %v1190 = vpop.permute.xlu0 %1189
  %1191 = vrot.lane.b32.xlu0 %v876, 20
  %v1192 = vpop.permute.xlu0 %1191
  %1193 = vrot.lane.b32.xlu0 %v1159, 20
  %v1194 = vpop.permute.xlu0 %1193
  %1195 = vrot.lane.b32.xlu0 %v882, 20
  %v1196 = vpop.permute.xlu0 %1195
  %1197 = vrot.lane.b32.xlu0 %v885, 20
  %v1198 = vpop.permute.xlu0 %1197
  %1199 = vrot.lane.b32.xlu0 %v888, 20
  %v1200 = vpop.permute.xlu0 %1199
  %1201 = vrot.lane.b32.xlu0 %v891, 20
  %v1202 = vpop.permute.xlu0 %1201
  %1203 = vrot.lane.b32.xlu0 %v894, 20
  %v1204 = vpop.permute.xlu0 %1203
  %1205 = vrot.lane.b32.xlu0 %v897, 20
  %v1206 = vpop.permute.xlu0 %1205
  %1207 = vrot.lane.b32.xlu0 %v900, 20
  %v1208 = vpop.permute.xlu0 %1207
  %1209 = vrot.lane.b32.xlu0 %v903, 20
  %v1210 = vpop.permute.xlu0 %1209
  %1211 = vrot.lane.b32.xlu0 %v906, 20
  %v1212 = vpop.permute.xlu0 %1211
  %1213 = vrot.lane.b32.xlu0 %v909, 20
  %v1214 = vpop.permute.xlu0 %1213
  %1215 = vrot.lane.b32.xlu0 %v912, 20
  %v1216 = vpop.permute.xlu0 %1215
  %1217 = vrot.lane.b32.xlu0 %v915, 20
  %v1218 = vpop.permute.xlu0 %1217
  %1219 = vrot.lane.b32.xlu0 %v918, 20
  %v1220 = vpop.permute.xlu0 %1219
  %1221 = vrot.lane.b32.xlu0 %v921, 20
  %v1222 = vpop.permute.xlu0 %1221
  %1223 = vrot.lane.b32.xlu0 %v924, 20
  %v1224 = vpop.permute.xlu0 %1223
  %1225 = vrot.lane.b32.xlu0 %v1162, 20
  %v1226 = vpop.permute.xlu0 %1225
  %v1231 = vunpack.c.l.b16 %v66
  %v1232 = vunpack.c.l.b16 %v67
  %v1233 = vunpack.c.l.b16 %v120
  %v1234 = vunpack.c.l.b16 %v121
  %v1235 = vpack.c.b16 %v1232, %v1231
  %v1236 = vpack.c.b16 %v1234, %v1233
  %1237 = vrot.lane.b32.xlu0 %v253, 24
  %v1238 = vpop.permute.xlu0 %1237
  %1239 = vrot.lane.b32.xlu0 %v254, 24
  %v1240 = vpop.permute.xlu0 %1239
  %1241 = vrot.lane.b32.xlu0 %v255, 24
  %v1242 = vpop.permute.xlu0 %1241
  %1243 = vrot.lane.b32.xlu0 %v256, 24
  %v1244 = vpop.permute.xlu0 %1243
  %1245 = vrot.lane.b32.xlu0 %v257, 24
  %v1246 = vpop.permute.xlu0 %1245
  %1247 = vrot.lane.b32.xlu0 %v258, 24
  %v1248 = vpop.permute.xlu0 %1247
  %1249 = vrot.lane.b32.xlu0 %v259, 24
  %v1250 = vpop.permute.xlu0 %1249
  %1251 = vrot.lane.b32.xlu0 %v260, 24
  %v1252 = vpop.permute.xlu0 %1251
  %1253 = vrot.lane.b32.xlu0 %v261, 24
  %v1254 = vpop.permute.xlu0 %1253
  %1255 = vrot.lane.b32.xlu0 %v262, 24
  %v1256 = vpop.permute.xlu0 %1255
  %1257 = vrot.lane.b32.xlu0 %v263, 24
  %v1258 = vpop.permute.xlu0 %1257
  %1259 = vrot.lane.b32.xlu0 %v264, 24
  %v1260 = vpop.permute.xlu0 %1259
  %1261 = vrot.lane.b32.xlu0 %v265, 24
  %v1262 = vpop.permute.xlu0 %1261
  %1263 = vrot.lane.b32.xlu0 %v266, 24
  %v1264 = vpop.permute.xlu0 %1263
  %1265 = vrot.lane.b32.xlu0 %v997, 24
  %v1266 = vpop.permute.xlu0 %1265
  %1267 = vrot.lane.b32.xlu0 %v1235, 24
  %v1268 = vpop.permute.xlu0 %1267
  %1269 = vrot.lane.b32.xlu0 %v269, 24
  %v1270 = vpop.permute.xlu0 %1269
  %1271 = vrot.lane.b32.xlu0 %v270, 24
  %v1272 = vpop.permute.xlu0 %1271
  %1273 = vrot.lane.b32.xlu0 %v271, 24
  %v1274 = vpop.permute.xlu0 %1273
  %1275 = vrot.lane.b32.xlu0 %v272, 24
  %v1276 = vpop.permute.xlu0 %1275
  %1277 = vrot.lane.b32.xlu0 %v273, 24
  %v1278 = vpop.permute.xlu0 %1277
  %1279 = vrot.lane.b32.xlu0 %v274, 24
  %v1280 = vpop.permute.xlu0 %1279
  %1281 = vrot.lane.b32.xlu0 %v275, 24
  %v1282 = vpop.permute.xlu0 %1281
  %1283 = vrot.lane.b32.xlu0 %v276, 24
  %v1284 = vpop.permute.xlu0 %1283
  %1285 = vrot.lane.b32.xlu0 %v277, 24
  %v1286 = vpop.permute.xlu0 %1285
  %1287 = vrot.lane.b32.xlu0 %v278, 24
  %v1288 = vpop.permute.xlu0 %1287
  %1289 = vrot.lane.b32.xlu0 %v279, 24
  %v1290 = vpop.permute.xlu0 %1289
  %1291 = vrot.lane.b32.xlu0 %v280, 24
  %v1292 = vpop.permute.xlu0 %1291
  %1293 = vrot.lane.b32.xlu0 %v281, 24
  %v1294 = vpop.permute.xlu0 %1293
  %1295 = vrot.lane.b32.xlu0 %v282, 24
  %v1296 = vpop.permute.xlu0 %1295
  %1297 = vrot.lane.b32.xlu0 %v998, 24
  %v1298 = vpop.permute.xlu0 %1297
  %1299 = vrot.lane.b32.xlu0 %v1236, 24
  %v1300 = vpop.permute.xlu0 %1299
  %v1303 = vunpack.c.l.b16 %v68
  %v1304 = vunpack.c.l.b16 %v122
  %v1305 = vpack.c.b16 %v1303, %v1303
  %v1306 = vpack.c.b16 %v1304, %v1304
  %v1308 = vshrl.u32 %v1235, 16
  %v1310 = vshll.u32 %v1235, 16
  %v1312 = vrot.slane %v1310, 1
  %v1313 = vor.u32 %v1308, %v1312
  %v1315 = vshll.u32 %v1305, 16
  %v1317 = vrot.slane %v1315, 1
  %v1318 = vsel %vm379, %v1313, %v1317
  %v1320 = vshrl.u32 %v1236, 16
  %v1322 = vshll.u32 %v1236, 16
  %v1324 = vrot.slane %v1322, 1
  %v1325 = vor.u32 %v1320, %v1324
  %v1327 = vshll.u32 %v1306, 16
  %v1329 = vrot.slane %v1327, 1
  %v1330 = vsel %vm379, %v1325, %v1329
  %1331 = vrot.lane.b32.xlu0 %v415, 28
  %v1332 = vpop.permute.xlu0 %1331
  %1333 = vrot.lane.b32.xlu0 %v427, 28
  %v1334 = vpop.permute.xlu0 %1333
  %1335 = vrot.lane.b32.xlu0 %v439, 28
  %v1336 = vpop.permute.xlu0 %1335
  %1337 = vrot.lane.b32.xlu0 %v451, 28
  %v1338 = vpop.permute.xlu0 %1337
  %1339 = vrot.lane.b32.xlu0 %v463, 28
  %v1340 = vpop.permute.xlu0 %1339
  %1341 = vrot.lane.b32.xlu0 %v475, 28
  %v1342 = vpop.permute.xlu0 %1341
  %1343 = vrot.lane.b32.xlu0 %v487, 28
  %v1344 = vpop.permute.xlu0 %1343
  %1345 = vrot.lane.b32.xlu0 %v499, 28
  %v1346 = vpop.permute.xlu0 %1345
  %1347 = vrot.lane.b32.xlu0 %v511, 28
  %v1348 = vpop.permute.xlu0 %1347
  %1349 = vrot.lane.b32.xlu0 %v523, 28
  %v1350 = vpop.permute.xlu0 %1349
  %1351 = vrot.lane.b32.xlu0 %v535, 28
  %v1352 = vpop.permute.xlu0 %1351
  %1353 = vrot.lane.b32.xlu0 %v547, 28
  %v1354 = vpop.permute.xlu0 %1353
  %1355 = vrot.lane.b32.xlu0 %v559, 28
  %v1356 = vpop.permute.xlu0 %1355
  %1357 = vrot.lane.b32.xlu0 %v571, 28
  %v1358 = vpop.permute.xlu0 %1357
  %1359 = vrot.lane.b32.xlu0 %v1080, 28
  %v1360 = vpop.permute.xlu0 %1359
  %1361 = vrot.lane.b32.xlu0 %v1318, 28
  %v1362 = vpop.permute.xlu0 %1361
  %1363 = vrot.lane.b32.xlu0 %v607, 28
  %v1364 = vpop.permute.xlu0 %1363
  %1365 = vrot.lane.b32.xlu0 %v619, 28
  %v1366 = vpop.permute.xlu0 %1365
  %1367 = vrot.lane.b32.xlu0 %v631, 28
  %v1368 = vpop.permute.xlu0 %1367
  %1369 = vrot.lane.b32.xlu0 %v643, 28
  %v1370 = vpop.permute.xlu0 %1369
  %1371 = vrot.lane.b32.xlu0 %v655, 28
  %v1372 = vpop.permute.xlu0 %1371
  %1373 = vrot.lane.b32.xlu0 %v667, 28
  %v1374 = vpop.permute.xlu0 %1373
  %1375 = vrot.lane.b32.xlu0 %v679, 28
  %v1376 = vpop.permute.xlu0 %1375
  %1377 = vrot.lane.b32.xlu0 %v691, 28
  %v1378 = vpop.permute.xlu0 %1377
  %1379 = vrot.lane.b32.xlu0 %v703, 28
  %v1380 = vpop.permute.xlu0 %1379
  %1381 = vrot.lane.b32.xlu0 %v715, 28
  %v1382 = vpop.permute.xlu0 %1381
  %1383 = vrot.lane.b32.xlu0 %v727, 28
  %v1384 = vpop.permute.xlu0 %1383
  %1385 = vrot.lane.b32.xlu0 %v739, 28
  %v1386 = vpop.permute.xlu0 %1385
  %1387 = vrot.lane.b32.xlu0 %v751, 28
  %v1388 = vpop.permute.xlu0 %1387
  %1389 = vrot.lane.b32.xlu0 %v763, 28
  %v1390 = vpop.permute.xlu0 %1389
  %1391 = vrot.lane.b32.xlu0 %v1092, 28
  %v1392 = vpop.permute.xlu0 %1391
  %1393 = vrot.lane.b32.xlu0 %v1330, 28
  %v1394 = vpop.permute.xlu0 %1393
  %v1395 = vrot.slane %v1235, 1
  %v1396 = vrot.slane %v1305, 1
  %v1397 = vsel %vm828, %v1395, %v1396
  %v1398 = vrot.slane %v1236, 1
  %v1399 = vrot.slane %v1306, 1
  %v1400 = vsel %vm828, %v1398, %v1399
  %1401 = vrot.lane.b32.xlu0 %v837, 32
  %v1402 = vpop.permute.xlu0 %1401
  %1403 = vrot.lane.b32.xlu0 %v840, 32
  %v1404 = vpop.permute.xlu0 %1403
  %1405 = vrot.lane.b32.xlu0 %v843, 32
  %v1406 = vpop.permute.xlu0 %1405
  %1407 = vrot.lane.b32.xlu0 %v846, 32
  %v1408 = vpop.permute.xlu0 %1407
  %1409 = vrot.lane.b32.xlu0 %v849, 32
  %v1410 = vpop.permute.xlu0 %1409
  %1411 = vrot.lane.b32.xlu0 %v852, 32
  %v1412 = vpop.permute.xlu0 %1411
  %1413 = vrot.lane.b32.xlu0 %v855, 32
  %v1414 = vpop.permute.xlu0 %1413
  %1415 = vrot.lane.b32.xlu0 %v858, 32
  %v1416 = vpop.permute.xlu0 %1415
  %1417 = vrot.lane.b32.xlu0 %v861, 32
  %v1418 = vpop.permute.xlu0 %1417
  %1419 = vrot.lane.b32.xlu0 %v864, 32
  %v1420 = vpop.permute.xlu0 %1419
  %1421 = vrot.lane.b32.xlu0 %v867, 32
  %v1422 = vpop.permute.xlu0 %1421
  %1423 = vrot.lane.b32.xlu0 %v870, 32
  %v1424 = vpop.permute.xlu0 %1423
  %1425 = vrot.lane.b32.xlu0 %v873, 32
  %v1426 = vpop.permute.xlu0 %1425
  %1427 = vrot.lane.b32.xlu0 %v876, 32
  %v1428 = vpop.permute.xlu0 %1427
  %1429 = vrot.lane.b32.xlu0 %v1159, 32
  %v1430 = vpop.permute.xlu0 %1429
  %1431 = vrot.lane.b32.xlu0 %v1397, 32
  %v1432 = vpop.permute.xlu0 %1431
  %1433 = vrot.lane.b32.xlu0 %v885, 32
  %v1434 = vpop.permute.xlu0 %1433
  %1435 = vrot.lane.b32.xlu0 %v888, 32
  %v1436 = vpop.permute.xlu0 %1435
  %1437 = vrot.lane.b32.xlu0 %v891, 32
  %v1438 = vpop.permute.xlu0 %1437
  %1439 = vrot.lane.b32.xlu0 %v894, 32
  %v1440 = vpop.permute.xlu0 %1439
  %1441 = vrot.lane.b32.xlu0 %v897, 32
  %v1442 = vpop.permute.xlu0 %1441
  %1443 = vrot.lane.b32.xlu0 %v900, 32
  %v1444 = vpop.permute.xlu0 %1443
  %1445 = vrot.lane.b32.xlu0 %v903, 32
  %v1446 = vpop.permute.xlu0 %1445
  %1447 = vrot.lane.b32.xlu0 %v906, 32
  %v1448 = vpop.permute.xlu0 %1447
  %1449 = vrot.lane.b32.xlu0 %v909, 32
  %v1450 = vpop.permute.xlu0 %1449
  %1451 = vrot.lane.b32.xlu0 %v912, 32
  %v1452 = vpop.permute.xlu0 %1451
  %1453 = vrot.lane.b32.xlu0 %v915, 32
  %v1454 = vpop.permute.xlu0 %1453
  %1455 = vrot.lane.b32.xlu0 %v918, 32
  %v1456 = vpop.permute.xlu0 %1455
  %1457 = vrot.lane.b32.xlu0 %v921, 32
  %v1458 = vpop.permute.xlu0 %1457
  %1459 = vrot.lane.b32.xlu0 %v924, 32
  %v1460 = vpop.permute.xlu0 %1459
  %1461 = vrot.lane.b32.xlu0 %v1162, 32
  %v1462 = vpop.permute.xlu0 %1461
  %1463 = vrot.lane.b32.xlu0 %v1400, 32
  %v1464 = vpop.permute.xlu0 %1463
  %vm1465 = vcmask 31744
  %v1467 = vsel %vm1465, %v251, %v765
  %v1469 = vsel %vm1465, %v252, %v767
  %v1471 = vsel %vm1465, %v253, %v769
  %v1473 = vsel %vm1465, %v254, %v771
  %v1475 = vsel %vm1465, %v255, %v773
  %v1477 = vsel %vm1465, %v256, %v775
  %v1479 = vsel %vm1465, %v257, %v777
  %v1481 = vsel %vm1465, %v258, %v779
  %v1483 = vsel %vm1465, %v259, %v781
  %v1485 = vsel %vm1465, %v260, %v783
  %v1487 = vsel %vm1465, %v261, %v785
  %v1489 = vsel %vm1465, %v262, %v787
  %v1491 = vsel %vm1465, %v263, %v789
  %v1493 = vsel %vm1465, %v264, %v791
  %v1495 = vsel %vm1465, %v265, %v793
  %v1497 = vsel %vm1465, %v266, %v795
  %v1499 = vsel %vm1465, %v267, %v797
  %v1501 = vsel %vm1465, %v268, %v799
  %v1503 = vsel %vm1465, %v269, %v801
  %v1505 = vsel %vm1465, %v270, %v803
  %v1507 = vsel %vm1465, %v271, %v805
  %v1509 = vsel %vm1465, %v272, %v807
  %v1511 = vsel %vm1465, %v273, %v809
  %v1513 = vsel %vm1465, %v274, %v811
  %v1515 = vsel %vm1465, %v275, %v813
  %v1517 = vsel %vm1465, %v276, %v815
  %v1519 = vsel %vm1465, %v277, %v817
  %v1521 = vsel %vm1465, %v278, %v819
  %v1523 = vsel %vm1465, %v279, %v821
  %v1525 = vsel %vm1465, %v280, %v823
  %v1527 = vsel %vm1465, %v281, %v825
  %v1529 = vsel %vm1465, %v282, %v827
  %vm1530 = vcmask 64512
  %v1532 = vsel %vm1530, %v1467, %v926
  %v1534 = vsel %vm1530, %v1469, %v928
  %v1536 = vsel %vm1530, %v1471, %v930
  %v1538 = vsel %vm1530, %v1473, %v932
  %v1540 = vsel %vm1530, %v1475, %v934
  %v1542 = vsel %vm1530, %v1477, %v936
  %v1544 = vsel %vm1530, %v1479, %v938
  %v1546 = vsel %vm1530, %v1481, %v940
  %v1548 = vsel %vm1530, %v1483, %v942
  %v1550 = vsel %vm1530, %v1485, %v944
  %v1552 = vsel %vm1530, %v1487, %v946
  %v1554 = vsel %vm1530, %v1489, %v948
  %v1556 = vsel %vm1530, %v1491, %v950
  %v1558 = vsel %vm1530, %v1493, %v952
  %v1560 = vsel %vm1530, %v1495, %v954
  %v1562 = vsel %vm1530, %v1497, %v956
  %v1564 = vsel %vm1530, %v1499, %v958
  %v1566 = vsel %vm1530, %v1501, %v960
  %v1568 = vsel %vm1530, %v1503, %v962
  %v1570 = vsel %vm1530, %v1505, %v964
  %v1572 = vsel %vm1530, %v1507, %v966
  %v1574 = vsel %vm1530, %v1509, %v968
  %v1576 = vsel %vm1530, %v1511, %v970
  %v1578 = vsel %vm1530, %v1513, %v972
  %v1580 = vsel %vm1530, %v1515, %v974
  %v1582 = vsel %vm1530, %v1517, %v976
  %v1584 = vsel %vm1530, %v1519, %v978
  %v1586 = vsel %vm1530, %v1521, %v980
  %v1588 = vsel %vm1530, %v1523, %v982
  %v1590 = vsel %vm1530, %v1525, %v984
  %v1592 = vsel %vm1530, %v1527, %v986
  %v1594 = vsel %vm1530, %v1529, %v988
  %vm1595 = vcmask 97280
  %v1597 = vsel %vm1595, %v1532, %v1000
  %v1599 = vsel %vm1595, %v1534, %v1002
  %v1601 = vsel %vm1595, %v1536, %v1004
  %v1603 = vsel %vm1595, %v1538, %v1006
  %v1605 = vsel %vm1595, %v1540, %v1008
  %v1607 = vsel %vm1595, %v1542, %v1010
  %v1609 = vsel %vm1595, %v1544, %v1012
  %v1611 = vsel %vm1595, %v1546, %v1014
  %v1613 = vsel %vm1595, %v1548, %v1016
  %v1615 = vsel %vm1595, %v1550, %v1018
  %v1617 = vsel %vm1595, %v1552, %v1020
  %v1619 = vsel %vm1595, %v1554, %v1022
  %v1621 = vsel %vm1595, %v1556, %v1024
  %v1623 = vsel %vm1595, %v1558, %v1026
  %v1625 = vsel %vm1595, %v1560, %v1028
  %v1627 = vsel %vm1595, %v1562, %v1030
  %v1629 = vsel %vm1595, %v1564, %v1032
  %v1631 = vsel %vm1595, %v1566, %v1034
  %v1633 = vsel %vm1595, %v1568, %v1036
  %v1635 = vsel %vm1595, %v1570, %v1038
  %v1637 = vsel %vm1595, %v1572, %v1040
  %v1639 = vsel %vm1595, %v1574, %v1042
  %v1641 = vsel %vm1595, %v1576, %v1044
  %v1643 = vsel %vm1595, %v1578, %v1046
  %v1645 = vsel %vm1595, %v1580, %v1048
  %v1647 = vsel %vm1595, %v1582, %v1050
  %v1649 = vsel %vm1595, %v1584, %v1052
  %v1651 = vsel %vm1595, %v1586, %v1054
  %v1653 = vsel %vm1595, %v1588, %v1056
  %v1655 = vsel %vm1595, %v1590, %v1058
  %v1657 = vsel %vm1595, %v1592, %v1060
  %v1659 = vsel %vm1595, %v1594, %v1062
  %vm1660 = vcmask 130048
  %v1662 = vsel %vm1660, %v1597, %v1094
  %v1664 = vsel %vm1660, %v1599, %v1096
  %v1666 = vsel %vm1660, %v1601, %v1098
  %v1668 = vsel %vm1660, %v1603, %v1100
  %v1670 = vsel %vm1660, %v1605, %v1102
  %v1672 = vsel %vm1660, %v1607, %v1104
  %v1674 = vsel %vm1660, %v1609, %v1106
  %v1676 = vsel %vm1660, %v1611, %v1108
  %v1678 = vsel %vm1660, %v1613, %v1110
  %v1680 = vsel %vm1660, %v1615, %v1112
  %v1682 = vsel %vm1660, %v1617, %v1114
  %v1684 = vsel %vm1660, %v1619, %v1116
  %v1686 = vsel %vm1660, %v1621, %v1118
  %v1688 = vsel %vm1660, %v1623, %v1120
  %v1690 = vsel %vm1660, %v1625, %v1122
  %v1692 = vsel %vm1660, %v1627, %v1124
  %v1694 = vsel %vm1660, %v1629, %v1126
  %v1696 = vsel %vm1660, %v1631, %v1128
  %v1698 = vsel %vm1660, %v1633, %v1130
  %v1700 = vsel %vm1660, %v1635, %v1132
  %v1702 = vsel %vm1660, %v1637, %v1134
  %v1704 = vsel %vm1660, %v1639, %v1136
  %v1706 = vsel %vm1660, %v1641, %v1138
  %v1708 = vsel %vm1660, %v1643, %v1140
  %v1710 = vsel %vm1660, %v1645, %v1142
  %v1712 = vsel %vm1660, %v1647, %v1144
  %v1714 = vsel %vm1660, %v1649, %v1146
  %v1716 = vsel %vm1660, %v1651, %v1148
  %v1718 = vsel %vm1660, %v1653, %v1150
  %v1720 = vsel %vm1660, %v1655, %v1152
  %v1722 = vsel %vm1660, %v1657, %v1154
  %v1724 = vsel %vm1660, %v1659, %v1156
  %vm1725 = vcmask 162816
  %v1727 = vsel %vm1725, %v1662, %v1164
  %v1729 = vsel %vm1725, %v1664, %v1166
  %v1731 = vsel %vm1725, %v1666, %v1168
  %v1733 = vsel %vm1725, %v1668, %v1170
  %v1735 = vsel %vm1725, %v1670, %v1172
  %v1737 = vsel %vm1725, %v1672, %v1174
  %v1739 = vsel %vm1725, %v1674, %v1176
  %v1741 = vsel %vm1725, %v1676, %v1178
  %v1743 = vsel %vm1725, %v1678, %v1180
  %v1745 = vsel %vm1725, %v1680, %v1182
  %v1747 = vsel %vm1725, %v1682, %v1184
  %v1749 = vsel %vm1725, %v1684, %v1186
  %v1751 = vsel %vm1725, %v1686, %v1188
  %v1753 = vsel %vm1725, %v1688, %v1190
  %v1755 = vsel %vm1725, %v1690, %v1192
  %v1757 = vsel %vm1725, %v1692, %v1194
  %v1759 = vsel %vm1725, %v1694, %v1196
  %v1761 = vsel %vm1725, %v1696, %v1198
  %v1763 = vsel %vm1725, %v1698, %v1200
  %v1765 = vsel %vm1725, %v1700, %v1202
  %v1767 = vsel %vm1725, %v1702, %v1204
  %v1769 = vsel %vm1725, %v1704, %v1206
  %v1771 = vsel %vm1725, %v1706, %v1208
  %v1773 = vsel %vm1725, %v1708, %v1210
  %v1775 = vsel %vm1725, %v1710, %v1212
  %v1777 = vsel %vm1725, %v1712, %v1214
  %v1779 = vsel %vm1725, %v1714, %v1216
  %v1781 = vsel %vm1725, %v1716, %v1218
  %v1783 = vsel %vm1725, %v1718, %v1220
  %v1785 = vsel %vm1725, %v1720, %v1222
  %v1787 = vsel %vm1725, %v1722, %v1224
  %v1789 = vsel %vm1725, %v1724, %v1226
  %vm1790 = vcmask 195584
  %v1792 = vsel %vm1790, %v1727, %v1238
  %v1794 = vsel %vm1790, %v1729, %v1240
  %v1796 = vsel %vm1790, %v1731, %v1242
  %v1798 = vsel %vm1790, %v1733, %v1244
  %v1800 = vsel %vm1790, %v1735, %v1246
  %v1802 = vsel %vm1790, %v1737, %v1248
  %v1804 = vsel %vm1790, %v1739, %v1250
  %v1806 = vsel %vm1790, %v1741, %v1252
  %v1808 = vsel %vm1790, %v1743, %v1254
  %v1810 = vsel %vm1790, %v1745, %v1256
  %v1812 = vsel %vm1790, %v1747, %v1258
  %v1814 = vsel %vm1790, %v1749, %v1260
  %v1816 = vsel %vm1790, %v1751, %v1262
  %v1818 = vsel %vm1790, %v1753, %v1264
  %v1820 = vsel %vm1790, %v1755, %v1266
  %v1822 = vsel %vm1790, %v1757, %v1268
  %v1824 = vsel %vm1790, %v1759, %v1270
  %v1826 = vsel %vm1790, %v1761, %v1272
  %v1828 = vsel %vm1790, %v1763, %v1274
  %v1830 = vsel %vm1790, %v1765, %v1276
  %v1832 = vsel %vm1790, %v1767, %v1278
  %v1834 = vsel %vm1790, %v1769, %v1280
  %v1836 = vsel %vm1790, %v1771, %v1282
  %v1838 = vsel %vm1790, %v1773, %v1284
  %v1840 = vsel %vm1790, %v1775, %v1286
  %v1842 = vsel %vm1790, %v1777, %v1288
  %v1844 = vsel %vm1790, %v1779, %v1290
  %v1846 = vsel %vm1790, %v1781, %v1292
  %v1848 = vsel %vm1790, %v1783, %v1294
  %v1850 = vsel %vm1790, %v1785, %v1296
  %v1852 = vsel %vm1790, %v1787, %v1298
  %v1854 = vsel %vm1790, %v1789, %v1300
  %vm1855 = vcmask 228352
  %v1857 = vsel %vm1855, %v1792, %v1332
  %v1859 = vsel %vm1855, %v1794, %v1334
  %v1861 = vsel %vm1855, %v1796, %v1336
  %v1863 = vsel %vm1855, %v1798, %v1338
  %v1865 = vsel %vm1855, %v1800, %v1340
  %v1867 = vsel %vm1855, %v1802, %v1342
  %v1869 = vsel %vm1855, %v1804, %v1344
  %v1871 = vsel %vm1855, %v1806, %v1346
  %v1873 = vsel %vm1855, %v1808, %v1348
  %v1875 = vsel %vm1855, %v1810, %v1350
  %v1877 = vsel %vm1855, %v1812, %v1352
  %v1879 = vsel %vm1855, %v1814, %v1354
  %v1881 = vsel %vm1855, %v1816, %v1356
  %v1883 = vsel %vm1855, %v1818, %v1358
  %v1885 = vsel %vm1855, %v1820, %v1360
  %v1887 = vsel %vm1855, %v1822, %v1362
  %v1889 = vsel %vm1855, %v1824, %v1364
  %v1891 = vsel %vm1855, %v1826, %v1366
  %v1893 = vsel %vm1855, %v1828, %v1368
  %v1895 = vsel %vm1855, %v1830, %v1370
  %v1897 = vsel %vm1855, %v1832, %v1372
  %v1899 = vsel %vm1855, %v1834, %v1374
  %v1901 = vsel %vm1855, %v1836, %v1376
  %v1903 = vsel %vm1855, %v1838, %v1378
  %v1905 = vsel %vm1855, %v1840, %v1380
  %v1907 = vsel %vm1855, %v1842, %v1382
  %v1909 = vsel %vm1855, %v1844, %v1384
  %v1911 = vsel %vm1855, %v1846, %v1386
  %v1913 = vsel %vm1855, %v1848, %v1388
  %v1915 = vsel %vm1855, %v1850, %v1390
  %v1917 = vsel %vm1855, %v1852, %v1392
  %v1919 = vsel %vm1855, %v1854, %v1394
  %vm1920 = vcmask 261120
  %v1922 = vsel %vm1920, %v1857, %v1402
  %v1924 = vsel %vm1920, %v1859, %v1404
  %v1926 = vsel %vm1920, %v1861, %v1406
  %v1928 = vsel %vm1920, %v1863, %v1408
  %v1930 = vsel %vm1920, %v1865, %v1410
  %v1932 = vsel %vm1920, %v1867, %v1412
  %v1934 = vsel %vm1920, %v1869, %v1414
  %v1936 = vsel %vm1920, %v1871, %v1416
  %v1938 = vsel %vm1920, %v1873, %v1418
  %v1940 = vsel %vm1920, %v1875, %v1420
  %v1942 = vsel %vm1920, %v1877, %v1422
  %v1944 = vsel %vm1920, %v1879, %v1424
  %v1946 = vsel %vm1920, %v1881, %v1426
  %v1948 = vsel %vm1920, %v1883, %v1428
  %v1950 = vsel %vm1920, %v1885, %v1430
  %v1952 = vsel %vm1920, %v1887, %v1432
  %v1954 = vsel %vm1920, %v1889, %v1434
  %v1956 = vsel %vm1920, %v1891, %v1436
  %v1958 = vsel %vm1920, %v1893, %v1438
  %v1960 = vsel %vm1920, %v1895, %v1440
  %v1962 = vsel %vm1920, %v1897, %v1442
  %v1964 = vsel %vm1920, %v1899, %v1444
  %v1966 = vsel %vm1920, %v1901, %v1446
  %v1968 = vsel %vm1920, %v1903, %v1448
  %v1970 = vsel %vm1920, %v1905, %v1450
  %v1972 = vsel %vm1920, %v1907, %v1452
  %v1974 = vsel %vm1920, %v1909, %v1454
  %v1976 = vsel %vm1920, %v1911, %v1456
  %v1978 = vsel %vm1920, %v1913, %v1458
  %v1980 = vsel %vm1920, %v1915, %v1460
  %v1982 = vsel %vm1920, %v1917, %v1462
  %v1984 = vsel %vm1920, %v1919, %v1464
  %v1985 = vld [vmem:[%s1] sm:$0xf]
  %v1986 = vld [vmem:[%s1 + $0x4] sm:$0xf]
  %v1987 = vld [vmem:[%s1 + $0x8] sm:$0xf]
  %v1988 = vld [vmem:[%s1 + $0xc] sm:$0xf]
  %v1989 = vld [vmem:[%s1 + $0x10] sm:$0x3]
  %v1995 = vunpack.c.l.b16 %v1985
  %v1996 = vunpack.c.l.b16 %v1986
  %v1997 = vunpack.c.l.b16 %v1987
  %v1998 = vunpack.c.l.b16 %v1988
  %v1999 = vunpack.c.l.b16 %v1989
  %v2000 = vpack.c.b16 %v1996, %v1995
  %v2001 = vpack.c.b16 %v1998, %v1997
  %v2002 = vpack.c.b16 %v1999, %v1999
  %vm2005 = vcmask 293888
  %v2006 = vsel %vm2005, %v1922, 0
  %v2008 = vsel %vm2005, %v1924, 0
  %v2010 = vsel %vm2005, %v1926, 0
  %v2012 = vsel %vm2005, %v1928, 0
  %v2014 = vsel %vm2005, %v1930, 0
  %v2016 = vsel %vm2005, %v1932, 0
  %v2018 = vsel %vm2005, %v1934, 0
  %v2020 = vsel %vm2005, %v1936, 0
  %v2022 = vsel %vm2005, %v1938, 0
  %v2024 = vsel %vm2005, %v1940, 0
  %v2026 = vsel %vm2005, %v1942, 0
  %v2028 = vsel %vm2005, %v1944, 0
  %v2030 = vsel %vm2005, %v1946, 0
  %v2032 = vsel %vm2005, %v1948, 0
  %v2034 = vsel %vm2005, %v1950, 0
  %v2036 = vsel %vm2005, %v1952, 0
  %v2038 = vsel %vm2005, %v1954, 0
  %v2040 = vsel %vm2005, %v1956, 0
  %v2042 = vsel %vm2005, %v1958, 0
  %v2044 = vsel %vm2005, %v1960, 0
  %v2046 = vsel %vm2005, %v1962, 0
  %v2048 = vsel %vm2005, %v1964, 0
  %v2050 = vsel %vm2005, %v1966, 0
  %v2052 = vsel %vm2005, %v1968, 0
  %v2054 = vsel %vm2005, %v1970, 0
  %v2056 = vsel %vm2005, %v1972, 0
  %v2058 = vsel %vm2005, %v1974, 0
  %v2060 = vsel %vm2005, %v1976, 0
  %v2062 = vsel %vm2005, %v1978, 0
  %v2064 = vsel %vm2005, %v1980, 0
  %v2066 = vsel %vm2005, %v1982, 0
  %v2068 = vsel %vm2005, %v1984, 0
  %vm2070 = vcmask 1041408
  %v2072 = vsel %vm2070, %v2002, 0
  %2074 = vmatpush.bf16.msra.mxu0 0
  %2075 = vmatpush.bf16.msra.mxu0 0
  %2076 = vmatpush.bf16.msra.mxu0 0
  %2077 = vmatpush.bf16.msra.mxu0 0
  %2078 = vmatpush.bf16.msra.mxu0 0
  %2079 = vmatpush.bf16.msra.mxu0 %v2072
  %2080 = vmatpush.bf16.msra.mxu0 %v2001
  %2081 = vmatpush.bf16.msra.mxu0 %v2000
  %2082 = vmatmul.bf16.gmra.mxu0 %v2006
  %v2083 = vpop.f32.mrf.mxu0
  %v2084 = vadd.f32 0.0, %v2083
  %v2085 = vpop.f32.mrf.mxu0
  %v2086 = vadd.f32 0.0, %v2085
  %2087 = vmatmul.bf16.gmra.mxu0 %v2008
  %v2088 = vpop.f32.mrf.mxu0
  %v2089 = vadd.f32 0.0, %v2088
  %v2090 = vpop.f32.mrf.mxu0
  %v2091 = vadd.f32 0.0, %v2090
  %2092 = vmatmul.bf16.gmra.mxu0 %v2010
  %v2093 = vpop.f32.mrf.mxu0
  %v2094 = vadd.f32 0.0, %v2093
  %v2095 = vpop.f32.mrf.mxu0
  %v2096 = vadd.f32 0.0, %v2095
  %2097 = vmatmul.bf16.gmra.mxu0 %v2012
  %v2098 = vpop.f32.mrf.mxu0
  %v2099 = vadd.f32 0.0, %v2098
  %v2100 = vpop.f32.mrf.mxu0
  %v2101 = vadd.f32 0.0, %v2100
  %2102 = vmatmul.bf16.gmra.mxu0 %v2014
  %v2103 = vpop.f32.mrf.mxu0
  %v2104 = vadd.f32 0.0, %v2103
  %v2105 = vpop.f32.mrf.mxu0
  %v2106 = vadd.f32 0.0, %v2105
  %2107 = vmatmul.bf16.gmra.mxu0 %v2016
  %v2108 = vpop.f32.mrf.mxu0
  %v2109 = vadd.f32 0.0, %v2108
  %v2110 = vpop.f32.mrf.mxu0
  %v2111 = vadd.f32 0.0, %v2110
  %2112 = vmatmul.bf16.gmra.mxu0 %v2018
  %v2113 = vpop.f32.mrf.mxu0
  %v2114 = vadd.f32 0.0, %v2113
  %v2115 = vpop.f32.mrf.mxu0
  %v2116 = vadd.f32 0.0, %v2115
  %2117 = vmatmul.bf16.gmra.mxu0 %v2020
  %v2118 = vpop.f32.mrf.mxu0
  %v2119 = vadd.f32 0.0, %v2118
  %v2120 = vpop.f32.mrf.mxu0
  %v2121 = vadd.f32 0.0, %v2120
  %2122 = vmatmul.bf16.gmra.mxu0 %v2022
  %v2123 = vpop.f32.mrf.mxu0
  %v2124 = vadd.f32 0.0, %v2123
  %v2125 = vpop.f32.mrf.mxu0
  %v2126 = vadd.f32 0.0, %v2125
  %2127 = vmatmul.bf16.gmra.mxu0 %v2024
  %v2128 = vpop.f32.mrf.mxu0
  %v2129 = vadd.f32 0.0, %v2128
  %v2130 = vpop.f32.mrf.mxu0
  %v2131 = vadd.f32 0.0, %v2130
  %2132 = vmatmul.bf16.gmra.mxu0 %v2026
  %v2133 = vpop.f32.mrf.mxu0
  %v2134 = vadd.f32 0.0, %v2133
  %v2135 = vpop.f32.mrf.mxu0
  %v2136 = vadd.f32 0.0, %v2135
  %2137 = vmatmul.bf16.gmra.mxu0 %v2028
  %v2138 = vpop.f32.mrf.mxu0
  %v2139 = vadd.f32 0.0, %v2138
  %v2140 = vpop.f32.mrf.mxu0
  %v2141 = vadd.f32 0.0, %v2140
  %2142 = vmatmul.bf16.gmra.mxu0 %v2030
  %v2143 = vpop.f32.mrf.mxu0
  %v2144 = vadd.f32 0.0, %v2143
  %v2145 = vpop.f32.mrf.mxu0
  %v2146 = vadd.f32 0.0, %v2145
  %2147 = vmatmul.bf16.gmra.mxu0 %v2032
  %v2148 = vpop.f32.mrf.mxu0
  %v2149 = vadd.f32 0.0, %v2148
  %v2150 = vpop.f32.mrf.mxu0
  %v2151 = vadd.f32 0.0, %v2150
  %2152 = vmatmul.bf16.gmra.mxu0 %v2034
  %v2153 = vpop.f32.mrf.mxu0
  %v2154 = vadd.f32 0.0, %v2153
  %v2155 = vpop.f32.mrf.mxu0
  %v2156 = vadd.f32 0.0, %v2155
  %2157 = vmatmul.bf16.gmra.mxu0 %v2036
  %v2158 = vpop.f32.mrf.mxu0
  %v2159 = vadd.f32 0.0, %v2158
  %v2160 = vpop.f32.mrf.mxu0
  %v2161 = vadd.f32 0.0, %v2160
  %2162 = vmatmul.bf16.gmra.mxu0 %v2038
  %v2163 = vpop.f32.mrf.mxu0
  %v2164 = vadd.f32 0.0, %v2163
  %v2165 = vpop.f32.mrf.mxu0
  %v2166 = vadd.f32 0.0, %v2165
  %2167 = vmatmul.bf16.gmra.mxu0 %v2040
  %v2168 = vpop.f32.mrf.mxu0
  %v2169 = vadd.f32 0.0, %v2168
  %v2170 = vpop.f32.mrf.mxu0
  %v2171 = vadd.f32 0.0, %v2170
  %2172 = vmatmul.bf16.gmra.mxu0 %v2042
  %v2173 = vpop.f32.mrf.mxu0
  %v2174 = vadd.f32 0.0, %v2173
  %v2175 = vpop.f32.mrf.mxu0
  %v2176 = vadd.f32 0.0, %v2175
  %2177 = vmatmul.bf16.gmra.mxu0 %v2044
  %v2178 = vpop.f32.mrf.mxu0
  %v2179 = vadd.f32 0.0, %v2178
  %v2180 = vpop.f32.mrf.mxu0
  %v2181 = vadd.f32 0.0, %v2180
  %2182 = vmatmul.bf16.gmra.mxu0 %v2046
  %v2183 = vpop.f32.mrf.mxu0
  %v2184 = vadd.f32 0.0, %v2183
  %v2185 = vpop.f32.mrf.mxu0
  %v2186 = vadd.f32 0.0, %v2185
  %2187 = vmatmul.bf16.gmra.mxu0 %v2048
  %v2188 = vpop.f32.mrf.mxu0
  %v2189 = vadd.f32 0.0, %v2188
  %v2190 = vpop.f32.mrf.mxu0
  %v2191 = vadd.f32 0.0, %v2190
  %2192 = vmatmul.bf16.gmra.mxu0 %v2050
  %v2193 = vpop.f32.mrf.mxu0
  %v2194 = vadd.f32 0.0, %v2193
  %v2195 = vpop.f32.mrf.mxu0
  %v2196 = vadd.f32 0.0, %v2195
  %2197 = vmatmul.bf16.gmra.mxu0 %v2052
  %v2198 = vpop.f32.mrf.mxu0
  %v2199 = vadd.f32 0.0, %v2198
  %v2200 = vpop.f32.mrf.mxu0
  %v2201 = vadd.f32 0.0, %v2200
  %2202 = vmatmul.bf16.gmra.mxu0 %v2054
  %v2203 = vpop.f32.mrf.mxu0
  %v2204 = vadd.f32 0.0, %v2203
  %v2205 = vpop.f32.mrf.mxu0
  %v2206 = vadd.f32 0.0, %v2205
  %2207 = vmatmul.bf16.gmra.mxu0 %v2056
  %v2208 = vpop.f32.mrf.mxu0
  %v2209 = vadd.f32 0.0, %v2208
  %v2210 = vpop.f32.mrf.mxu0
  %v2211 = vadd.f32 0.0, %v2210
  %2212 = vmatmul.bf16.gmra.mxu0 %v2058
  %v2213 = vpop.f32.mrf.mxu0
  %v2214 = vadd.f32 0.0, %v2213
  %v2215 = vpop.f32.mrf.mxu0
  %v2216 = vadd.f32 0.0, %v2215
  %2217 = vmatmul.bf16.gmra.mxu0 %v2060
  %v2218 = vpop.f32.mrf.mxu0
  %v2219 = vadd.f32 0.0, %v2218
  %v2220 = vpop.f32.mrf.mxu0
  %v2221 = vadd.f32 0.0, %v2220
  %2222 = vmatmul.bf16.gmra.mxu0 %v2062
  %v2223 = vpop.f32.mrf.mxu0
  %v2224 = vadd.f32 0.0, %v2223
  %v2225 = vpop.f32.mrf.mxu0
  %v2226 = vadd.f32 0.0, %v2225
  %2227 = vmatmul.bf16.gmra.mxu0 %v2064
  %v2228 = vpop.f32.mrf.mxu0
  %v2229 = vadd.f32 0.0, %v2228
  %v2230 = vpop.f32.mrf.mxu0
  %v2231 = vadd.f32 0.0, %v2230
  %2232 = vmatmul.bf16.gmra.mxu0 %v2066
  %v2233 = vpop.f32.mrf.mxu0
  %v2234 = vadd.f32 0.0, %v2233
  %v2235 = vpop.f32.mrf.mxu0
  %v2236 = vadd.f32 0.0, %v2235
  %2237 = vmatmul.bf16.gmra.mxu0 %v2068
  %v2238 = vpop.f32.mrf.mxu0
  %v2239 = vadd.f32 0.0, %v2238
  %v2240 = vpop.f32.mrf.mxu0
  %v2241 = vadd.f32 0.0, %v2240
  %2242 = vdwg.mxu0
  %v2243 = vld [vmem:[%s2] sm:$0x1]
  %v2244 = vperm.slane %v2243, 0
  %v2245 = vmul.f32 %v2084, %v2244
  %v2246 = vmul.f32 %v2086, %v2244
  %v2247 = vmul.f32 %v2089, %v2244
  %v2248 = vmul.f32 %v2091, %v2244
  %v2249 = vmul.f32 %v2094, %v2244
  %v2250 = vmul.f32 %v2096, %v2244
  %v2251 = vmul.f32 %v2099, %v2244
  %v2252 = vmul.f32 %v2101, %v2244
  %v2253 = vmul.f32 %v2104, %v2244
  %v2254 = vmul.f32 %v2106, %v2244
  %v2255 = vmul.f32 %v2109, %v2244
  %v2256 = vmul.f32 %v2111, %v2244
  %v2257 = vmul.f32 %v2114, %v2244
  %v2258 = vmul.f32 %v2116, %v2244
  %v2259 = vmul.f32 %v2119, %v2244
  %v2260 = vmul.f32 %v2121, %v2244
  %v2261 = vmul.f32 %v2124, %v2244
  %v2262 = vmul.f32 %v2126, %v2244
  %v2263 = vmul.f32 %v2129, %v2244
  %v2264 = vmul.f32 %v2131, %v2244
  %v2265 = vmul.f32 %v2134, %v2244
  %v2266 = vmul.f32 %v2136, %v2244
  %v2267 = vmul.f32 %v2139, %v2244
  %v2268 = vmul.f32 %v2141, %v2244
  %v2269 = vmul.f32 %v2144, %v2244
  %v2270 = vmul.f32 %v2146, %v2244
  %v2271 = vmul.f32 %v2149, %v2244
  %v2272 = vmul.f32 %v2151, %v2244
  %v2273 = vmul.f32 %v2154, %v2244
  %v2274 = vmul.f32 %v2156, %v2244
  %v2275 = vmul.f32 %v2159, %v2244
  %v2276 = vmul.f32 %v2161, %v2244
  %v2277 = vmul.f32 %v2164, %v2244
  %v2278 = vmul.f32 %v2166, %v2244
  %v2279 = vmul.f32 %v2169, %v2244
  %v2280 = vmul.f32 %v2171, %v2244
  %v2281 = vmul.f32 %v2174, %v2244
  %v2282 = vmul.f32 %v2176, %v2244
  %v2283 = vmul.f32 %v2179, %v2244
  %v2284 = vmul.f32 %v2181, %v2244
  %v2285 = vmul.f32 %v2184, %v2244
  %v2286 = vmul.f32 %v2186, %v2244
  %v2287 = vmul.f32 %v2189, %v2244
  %v2288 = vmul.f32 %v2191, %v2244
  %v2289 = vmul.f32 %v2194, %v2244
  %v2290 = vmul.f32 %v2196, %v2244
  %v2291 = vmul.f32 %v2199, %v2244
  %v2292 = vmul.f32 %v2201, %v2244
  %v2293 = vmul.f32 %v2204, %v2244
  %v2294 = vmul.f32 %v2206, %v2244
  %v2295 = vmul.f32 %v2209, %v2244
  %v2296 = vmul.f32 %v2211, %v2244
  %v2297 = vmul.f32 %v2214, %v2244
  %v2298 = vmul.f32 %v2216, %v2244
  %v2299 = vmul.f32 %v2219, %v2244
  %v2300 = vmul.f32 %v2221, %v2244
  %v2301 = vmul.f32 %v2224, %v2244
  %v2302 = vmul.f32 %v2226, %v2244
  %v2303 = vmul.f32 %v2229, %v2244
  %v2304 = vmul.f32 %v2231, %v2244
  %v2305 = vmul.f32 %v2234, %v2244
  %v2306 = vmul.f32 %v2236, %v2244
  %v2307 = vmul.f32 %v2239, %v2244
  %v2308 = vmul.f32 %v2241, %v2244
  %v2309 = vld [vmem:[%s2 + $0x1] sm:$0x1]
  %v2310 = vperm.slane %v2309, 0
  %v2311 = vadd.f32 %v2245, %v2310
  %v2312 = vadd.f32 %v2246, %v2310
  %v2313 = vadd.f32 %v2247, %v2310
  %v2314 = vadd.f32 %v2248, %v2310
  %v2315 = vadd.f32 %v2249, %v2310
  %v2316 = vadd.f32 %v2250, %v2310
  %v2317 = vadd.f32 %v2251, %v2310
  %v2318 = vadd.f32 %v2252, %v2310
  %v2319 = vadd.f32 %v2253, %v2310
  %v2320 = vadd.f32 %v2254, %v2310
  %v2321 = vadd.f32 %v2255, %v2310
  %v2322 = vadd.f32 %v2256, %v2310
  %v2323 = vadd.f32 %v2257, %v2310
  %v2324 = vadd.f32 %v2258, %v2310
  %v2325 = vadd.f32 %v2259, %v2310
  %v2326 = vadd.f32 %v2260, %v2310
  %v2327 = vadd.f32 %v2261, %v2310
  %v2328 = vadd.f32 %v2262, %v2310
  %v2329 = vadd.f32 %v2263, %v2310
  %v2330 = vadd.f32 %v2264, %v2310
  %v2331 = vadd.f32 %v2265, %v2310
  %v2332 = vadd.f32 %v2266, %v2310
  %v2333 = vadd.f32 %v2267, %v2310
  %v2334 = vadd.f32 %v2268, %v2310
  %v2335 = vadd.f32 %v2269, %v2310
  %v2336 = vadd.f32 %v2270, %v2310
  %v2337 = vadd.f32 %v2271, %v2310
  %v2338 = vadd.f32 %v2272, %v2310
  %v2339 = vadd.f32 %v2273, %v2310
  %v2340 = vadd.f32 %v2274, %v2310
  %v2341 = vadd.f32 %v2275, %v2310
  %v2342 = vadd.f32 %v2276, %v2310
  %v2343 = vadd.f32 %v2277, %v2310
  %v2344 = vadd.f32 %v2278, %v2310
  %v2345 = vadd.f32 %v2279, %v2310
  %v2346 = vadd.f32 %v2280, %v2310
  %v2347 = vadd.f32 %v2281, %v2310
  %v2348 = vadd.f32 %v2282, %v2310
  %v2349 = vadd.f32 %v2283, %v2310
  %v2350 = vadd.f32 %v2284, %v2310
  %v2351 = vadd.f32 %v2285, %v2310
  %v2352 = vadd.f32 %v2286, %v2310
  %v2353 = vadd.f32 %v2287, %v2310
  %v2354 = vadd.f32 %v2288, %v2310
  %v2355 = vadd.f32 %v2289, %v2310
  %v2356 = vadd.f32 %v2290, %v2310
  %v2357 = vadd.f32 %v2291, %v2310
  %v2358 = vadd.f32 %v2292, %v2310
  %v2359 = vadd.f32 %v2293, %v2310
  %v2360 = vadd.f32 %v2294, %v2310
  %v2361 = vadd.f32 %v2295, %v2310
  %v2362 = vadd.f32 %v2296, %v2310
  %v2363 = vadd.f32 %v2297, %v2310
  %v2364 = vadd.f32 %v2298, %v2310
  %v2365 = vadd.f32 %v2299, %v2310
  %v2366 = vadd.f32 %v2300, %v2310
  %v2367 = vadd.f32 %v2301, %v2310
  %v2368 = vadd.f32 %v2302, %v2310
  %v2369 = vadd.f32 %v2303, %v2310
  %v2370 = vadd.f32 %v2304, %v2310
  %v2371 = vadd.f32 %v2305, %v2310
  %v2372 = vadd.f32 %v2306, %v2310
  %v2373 = vadd.f32 %v2307, %v2310
  %v2374 = vadd.f32 %v2308, %v2310
  %v2375 = vmax.f32 %v2311, 0.0
  %v2376 = vmax.f32 %v2312, 0.0
  %v2377 = vmax.f32 %v2313, 0.0
  %v2378 = vmax.f32 %v2314, 0.0
  %v2379 = vmax.f32 %v2315, 0.0
  %v2380 = vmax.f32 %v2316, 0.0
  %v2381 = vmax.f32 %v2317, 0.0
  %v2382 = vmax.f32 %v2318, 0.0
  %v2383 = vmax.f32 %v2319, 0.0
  %v2384 = vmax.f32 %v2320, 0.0
  %v2385 = vmax.f32 %v2321, 0.0
  %v2386 = vmax.f32 %v2322, 0.0
  %v2387 = vmax.f32 %v2323, 0.0
  %v2388 = vmax.f32 %v2324, 0.0
  %v2389 = vmax.f32 %v2325, 0.0
  %v2390 = vmax.f32 %v2326, 0.0
  %v2391 = vmax.f32 %v2327, 0.0
  %v2392 = vmax.f32 %v2328, 0.0
  %v2393 = vmax.f32 %v2329, 0.0
  %v2394 = vmax.f32 %v2330, 0.0
  %v2395 = vmax.f32 %v2331, 0.0
  %v2396 = vmax.f32 %v2332, 0.0
  %v2397 = vmax.f32 %v2333, 0.0
  %v2398 = vmax.f32 %v2334, 0.0
  %v2399 = vmax.f32 %v2335, 0.0
  %v2400 = vmax.f32 %v2336, 0.0
  %v2401 = vmax.f32 %v2337, 0.0
  %v2402 = vmax.f32 %v2338, 0.0
  %v2403 = vmax.f32 %v2339, 0.0
  %v2404 = vmax.f32 %v2340, 0.0
  %v2405 = vmax.f32 %v2341, 0.0
  %v2406 = vmax.f32 %v2342, 0.0
  %v2407 = vmax.f32 %v2343, 0.0
  %v2408 = vmax.f32 %v2344, 0.0
  %v2409 = vmax.f32 %v2345, 0.0
  %v2410 = vmax.f32 %v2346, 0.0
  %v2411 = vmax.f32 %v2347, 0.0
  %v2412 = vmax.f32 %v2348, 0.0
  %v2413 = vmax.f32 %v2349, 0.0
  %v2414 = vmax.f32 %v2350, 0.0
  %v2415 = vmax.f32 %v2351, 0.0
  %v2416 = vmax.f32 %v2352, 0.0
  %v2417 = vmax.f32 %v2353, 0.0
  %v2418 = vmax.f32 %v2354, 0.0
  %v2419 = vmax.f32 %v2355, 0.0
  %v2420 = vmax.f32 %v2356, 0.0
  %v2421 = vmax.f32 %v2357, 0.0
  %v2422 = vmax.f32 %v2358, 0.0
  %v2423 = vmax.f32 %v2359, 0.0
  %v2424 = vmax.f32 %v2360, 0.0
  %v2425 = vmax.f32 %v2361, 0.0
  %v2426 = vmax.f32 %v2362, 0.0
  %v2427 = vmax.f32 %v2363, 0.0
  %v2428 = vmax.f32 %v2364, 0.0
  %v2429 = vmax.f32 %v2365, 0.0
  %v2430 = vmax.f32 %v2366, 0.0
  %v2431 = vmax.f32 %v2367, 0.0
  %v2432 = vmax.f32 %v2368, 0.0
  %v2433 = vmax.f32 %v2369, 0.0
  %v2434 = vmax.f32 %v2370, 0.0
  %v2435 = vmax.f32 %v2371, 0.0
  %v2436 = vmax.f32 %v2372, 0.0
  %v2437 = vmax.f32 %v2373, 0.0
  %v2438 = vmax.f32 %v2374, 0.0
  %2439 = vxpose.xlu0.b32.start [1/16] %v2375, 128
  %2440 = vxpose.xlu0.b32.cont [2/16] %v2376, 128
  %2441 = vxpose.xlu0.b32.cont [3/16] %v2377, 128
  %2442 = vxpose.xlu0.b32.cont [4/16] %v2378, 128
  %2443 = vxpose.xlu0.b32.cont [5/16] %v2379, 128
  %2444 = vxpose.xlu0.b32.cont [6/16] %v2380, 128
  %2445 = vxpose.xlu0.b32.cont [7/16] %v2381, 128
  %2446 = vxpose.xlu0.b32.cont [8/16] %v2382, 128
  %2447 = vxpose.xlu0.b32.cont [9/16] %v2383, 128
  %2448 = vxpose.xlu0.b32.cont [10/16] %v2384, 128
  %2449 = vxpose.xlu0.b32.cont [11/16] %v2385, 128
  %2450 = vxpose.xlu0.b32.cont [12/16] %v2386, 128
  %2451 = vxpose.xlu0.b32.cont [13/16] %v2387, 128
  %2452 = vxpose.xlu0.b32.cont [14/16] %v2388, 128
  %2453 = vxpose.xlu0.b32.cont [15/16] %v2389, 128
  %2454 = vxpose.xlu0.b32.end [16/16] %v2390, 128
  %v2455 = vpop.trf.xlu0
  %v2456 = vpop.trf.xlu0
  %v2457 = vpop.trf.xlu0
  %v2458 = vpop.trf.xlu0
  %v2459 = vpop.trf.xlu0
  %v2460 = vpop.trf.xlu0
  %v2461 = vpop.trf.xlu0
  %v2462 = vpop.trf.xlu0
  %v2463 = vpop.trf.xlu0
  %v2464 = vpop.trf.xlu0
  %v2465 = vpop.trf.xlu0
  %v2466 = vpop.trf.xlu0
  %v2467 = vpop.trf.xlu0
  %v2468 = vpop.trf.xlu0
  %v2469 = vpop.trf.xlu0
  %v2470 = vpop.trf.xlu0
  %2471 = vxpose.xlu0.b32.start [1/16] %v2391, 128
  %2472 = vxpose.xlu0.b32.cont [2/16] %v2392, 128
  %2473 = vxpose.xlu0.b32.cont [3/16] %v2393, 128
  %2474 = vxpose.xlu0.b32.cont [4/16] %v2394, 128
  %2475 = vxpose.xlu0.b32.cont [5/16] %v2395, 128
  %2476 = vxpose.xlu0.b32.cont [6/16] %v2396, 128
  %2477 = vxpose.xlu0.b32.cont [7/16] %v2397, 128
  %2478 = vxpose.xlu0.b32.cont [8/16] %v2398, 128
  %2479 = vxpose.xlu0.b32.cont [9/16] %v2399, 128
  %2480 = vxpose.xlu0.b32.cont [10/16] %v2400, 128
  %2481 = vxpose.xlu0.b32.cont [11/16] %v2401, 128
  %2482 = vxpose.xlu0.b32.cont [12/16] %v2402, 128
  %2483 = vxpose.xlu0.b32.cont [13/16] %v2403, 128
  %2484 = vxpose.xlu0.b32.cont [14/16] %v2404, 128
  %2485 = vxpose.xlu0.b32.cont [15/16] %v2405, 128
  %2486 = vxpose.xlu0.b32.end [16/16] %v2406, 128
  %v2487 = vpop.trf.xlu0
  %v2488 = vpop.trf.xlu0
  %v2489 = vpop.trf.xlu0
  %v2490 = vpop.trf.xlu0
  %v2491 = vpop.trf.xlu0
  %v2492 = vpop.trf.xlu0
  %v2493 = vpop.trf.xlu0
  %v2494 = vpop.trf.xlu0
  %v2495 = vpop.trf.xlu0
  %v2496 = vpop.trf.xlu0
  %v2497 = vpop.trf.xlu0
  %v2498 = vpop.trf.xlu0
  %v2499 = vpop.trf.xlu0
  %v2500 = vpop.trf.xlu0
  %v2501 = vpop.trf.xlu0
  %v2502 = vpop.trf.xlu0
  %2503 = vxpose.xlu0.b32.start [1/16] %v2407, 128
  %2504 = vxpose.xlu0.b32.cont [2/16] %v2408, 128
  %2505 = vxpose.xlu0.b32.cont [3/16] %v2409, 128
  %2506 = vxpose.xlu0.b32.cont [4/16] %v2410, 128
  %2507 = vxpose.xlu0.b32.cont [5/16] %v2411, 128
  %2508 = vxpose.xlu0.b32.cont [6/16] %v2412, 128
  %2509 = vxpose.xlu0.b32.cont [7/16] %v2413, 128
  %2510 = vxpose.xlu0.b32.cont [8/16] %v2414, 128
  %2511 = vxpose.xlu0.b32.cont [9/16] %v2415, 128
  %2512 = vxpose.xlu0.b32.cont [10/16] %v2416, 128
  %2513 = vxpose.xlu0.b32.cont [11/16] %v2417, 128
  %2514 = vxpose.xlu0.b32.cont [12/16] %v2418, 128
  %2515 = vxpose.xlu0.b32.cont [13/16] %v2419, 128
  %2516 = vxpose.xlu0.b32.cont [14/16] %v2420, 128
  %2517 = vxpose.xlu0.b32.cont [15/16] %v2421, 128
  %2518 = vxpose.xlu0.b32.end [16/16] %v2422, 128
  %v2519 = vpop.trf.xlu0
  %v2520 = vpop.trf.xlu0
  %v2521 = vpop.trf.xlu0
  %v2522 = vpop.trf.xlu0
  %v2523 = vpop.trf.xlu0
  %v2524 = vpop.trf.xlu0
  %v2525 = vpop.trf.xlu0
  %v2526 = vpop.trf.xlu0
  %v2527 = vpop.trf.xlu0
  %v2528 = vpop.trf.xlu0
  %v2529 = vpop.trf.xlu0
  %v2530 = vpop.trf.xlu0
  %v2531 = vpop.trf.xlu0
  %v2532 = vpop.trf.xlu0
  %v2533 = vpop.trf.xlu0
  %v2534 = vpop.trf.xlu0
  %2535 = vxpose.xlu0.b32.start [1/16] %v2423, 128
  %2536 = vxpose.xlu0.b32.cont [2/16] %v2424, 128
  %2537 = vxpose.xlu0.b32.cont [3/16] %v2425, 128
  %2538 = vxpose.xlu0.b32.cont [4/16] %v2426, 128
  %2539 = vxpose.xlu0.b32.cont [5/16] %v2427, 128
  %2540 = vxpose.xlu0.b32.cont [6/16] %v2428, 128
  %2541 = vxpose.xlu0.b32.cont [7/16] %v2429, 128
  %2542 = vxpose.xlu0.b32.cont [8/16] %v2430, 128
  %2543 = vxpose.xlu0.b32.cont [9/16] %v2431, 128
  %2544 = vxpose.xlu0.b32.cont [10/16] %v2432, 128
  %2545 = vxpose.xlu0.b32.cont [11/16] %v2433, 128
  %2546 = vxpose.xlu0.b32.cont [12/16] %v2434, 128
  %2547 = vxpose.xlu0.b32.cont [13/16] %v2435, 128
  %2548 = vxpose.xlu0.b32.cont [14/16] %v2436, 128
  %2549 = vxpose.xlu0.b32.cont [15/16] %v2437, 128
  %2550 = vxpose.xlu0.b32.end [16/16] %v2438, 128
  %v2551 = vpop.trf.xlu0
  %v2552 = vpop.trf.xlu0
  %v2553 = vpop.trf.xlu0
  %v2554 = vpop.trf.xlu0
  %v2555 = vpop.trf.xlu0
  %v2556 = vpop.trf.xlu0
  %v2557 = vpop.trf.xlu0
  %v2558 = vpop.trf.xlu0
  %v2559 = vpop.trf.xlu0
  %v2560 = vpop.trf.xlu0
  %v2561 = vpop.trf.xlu0
  %v2562 = vpop.trf.xlu0
  %v2563 = vpop.trf.xlu0
  %v2564 = vpop.trf.xlu0
  %v2565 = vpop.trf.xlu0
  %v2566 = vpop.trf.xlu0
  %2567 = vst [vmem:[%s3] sm:$0xff] %v2455
  %2568 = vst [vmem:[%s3 + $0x8] sm:$0xff] %v2487
  %2569 = vst [vmem:[%s3 + $0x10] sm:$0xff] %v2519
  %2570 = vst [vmem:[%s3 + $0x18] sm:$0xff] %v2551
  // Predicated region
  $region14: #{conv_bn_relu_other.3} parent=0 // pred_check
    _
  $region15: #{conv_bn_relu_other.3} parent=0 // pred_check_branch
    %2572 = sbr.rel (0) target = $region17
  $region16: #{conv_bn_relu_other.3} parent=0 // pred_region
    _
  $region17: #{conv_bn_relu_other.3} parent=0 // pred_fallthru
    _
  // Predicated region
  $region18: #{conv_bn_relu_other.3} parent=0 // pred_check
    _
  $region19: #{conv_bn_relu_other.3} parent=0 // pred_check_branch
    %2574 = sbr.rel (0) target = $region21
  $region20: #{conv_bn_relu_other.3} parent=0 // pred_region
    _
  $region21: #{conv_bn_relu_other.3} parent=0 // pred_fallthru
    _

// kernel: conv_bn_relu_other.2
$region0: #{conv_bn_relu_other.2}
  #allocation0 [shape = 'u32[]', space=smem, size = 0x4, offset = 0x4, fixed_abs, tag = 'smem constant byte address 0x4 - core index']
  #allocation1 [shape = 'u32[72,128]{1,0:T(1,128)}', space=vmem, size = 0x9000, scoped, tag = 'internal scratch']
  %s0 = inlined_call_operand.vmem [shape: bf16[2,18,18,4], index: 0, kind: input, shape index: {}]
  %s1 = inlined_call_operand.vmem [shape: bf16[36,8], index: 1, kind: input, shape index: {}]
  %s2 = inlined_call_operand.vmem [shape: f32[2,2,8], index: 2, kind: output, shape index: {}]
  %s3 = sld [smem:[#allocation0]]
  $region49: #{conv_bn_relu_other.2} parent=0
    _
  %s5 = ssub.s32 1, %s3
  %s6 = scalar_select 0, %s5, %s3
  loop: start=0, step=1, limit=4
  $region2: #{conv_bn_relu_other.2} parent=0 // loop_pre_header
    _
  $region3: #{conv_bn_relu_other.2} parent=0 // loop_header
    %s8 = sphi 0, %s12
    %p9 = scmp.ge.s32.totalorder %s8, 4
    %s15 = sphi 0, %s27
    %s16 = sphi 0, %s23
    %s17 = sphi 0, %s15
    %s18 = sphi 0, %s16
    %s19 = sphi 0, %s17
    %s20 = sphi 0, %s18
    %s36 = sphi 0, %s38
    %s39 = sphi 0, %s36
    %s40 = sphi 0, %s39
    %s56 = sphi 0, %s40
    %s60 = sphi 0, %s60
    %s62 = sphi 0, %s60
    %s63 = sphi 0, %s62
    %s77 = sphi 0, %s63
    %s83 = sphi 0, %s85
    %s86 = sphi 0, %s83
    %s87 = sphi 0, %s86
    %s103 = sphi 0, %s87
  $region4: #{conv_bn_relu_other.2} parent=0 // loop_header_branch
    %11 = sbr.rel (%p9) target = $region8
  $region5: #{conv_bn_relu_other.2} parent=0 // loop_body
    %s13 = ssub.s32 %s8, 1
    %s14 = ssub.s32 %s8, 2
    %s21 = sadd.s32 1, %s16
    %p22 = scmp.ge.s32.totalorder %s21, 1
    %s23 = scalar_select %p22, 0, %s21
    %s24 = sadd.s32 1, %s15
    %s25 = scalar_select %p22, %s24, %s15
    %p26 = scmp.ge.s32.totalorder %s25, 2
    %s27 = scalar_select %p26, 0, %s25
    %s28 = sadd.s32 %s15, %s16
    %p29 = scmp.lt.s32.totalorder %s28, 0
    %s30 = scalar_select %p29, %s28, 0
    %s31 = sadd.s32 %s27, %s23
    %p32 = scmp.lt.s32.totalorder %s31, 0
    %s33 = scalar_select %p32, %s31, 0
    %s34 = ssub.s32 %s30, %s33
    %p35 = scmp.eq.s32.totalorder %s34, 0
    %s37 = sadd.s32 %s36, 1
    %s38 = scalar_select %p35, %s36, %s37
    %p41 = pneg %p35
    %p42 = scmp.eq.s32.totalorder %s8, 1
    %p43 = por %p41, %p42
    %p44 = scmp.ne.s32.totalorder %s36, %s39
    %p45 = scmp.eq.s32.totalorder %s8, 0
    %p46 = por %p44, %p45
    %p47 = scmp.ne.s32.totalorder %s36, %s39
    %p48 = scmp.eq.s32.totalorder %s13, 1
    %p49 = por %p47, %p48
    %p50 = scmp.ne.s32.totalorder %s39, %s40
    %p51 = scmp.eq.s32.totalorder %s13, 0
    %p52 = por %p50, %p51
    %p53 = scmp.ne.s32.totalorder %s39, %s40
    %p54 = scmp.eq.s32.totalorder %s14, 1
    %p55 = por %p53, %p54
    %p57 = scmp.ne.s32.totalorder %s40, %s56
    %p58 = scmp.eq.s32.totalorder %s14, 0
    %p59 = por %p57, %p58
    %s61 = sadd.s32 %s60, 1
    %p64 = scmp.eq.s32.totalorder %s8, 1
    %p65 = scmp.ne.s32.totalorder %s60, %s62
    %p66 = scmp.eq.s32.totalorder %s8, 0
    %p67 = por %p65, %p66
    %p68 = scmp.ne.s32.totalorder %s60, %s62
    %p69 = scmp.eq.s32.totalorder %s13, 1
    %p70 = por %p68, %p69
    %p71 = scmp.ne.s32.totalorder %s62, %s63
    %p72 = scmp.eq.s32.totalorder %s13, 0
    %p73 = por %p71, %p72
    %p74 = scmp.ne.s32.totalorder %s62, %s63
    %p75 = scmp.eq.s32.totalorder %s14, 1
    %p76 = por %p74, %p75
    %p78 = scmp.ne.s32.totalorder %s63, %s77
    %p79 = scmp.eq.s32.totalorder %s14, 0
    %p80 = por %p78, %p79
    %s81 = ssub.s32 %s15, %s27
    %p82 = scmp.eq.s32.totalorder %s81, 0
    %s84 = sadd.s32 %s83, 1
    %s85 = scalar_select %p82, %s83, %s84
    %p88 = pneg %p82
    %p89 = scmp.eq.s32.totalorder %s8, 1
    %p90 = por %p88, %p89
    %p91 = scmp.ne.s32.totalorder %s83, %s86
    %p92 = scmp.eq.s32.totalorder %s8, 0
    %p93 = por %p91, %p92
    %p94 = scmp.ne.s32.totalorder %s83, %s86
    %p95 = scmp.eq.s32.totalorder %s13, 1
    %p96 = por %p94, %p95
    %p97 = scmp.ne.s32.totalorder %s86, %s87
    %p98 = scmp.eq.s32.totalorder %s13, 0
    %p99 = por %p97, %p98
    %p100 = scmp.ne.s32.totalorder %s86, %s87
    %p101 = scmp.eq.s32.totalorder %s14, 1
    %p102 = por %p100, %p101
    %p104 = scmp.ne.s32.totalorder %s87, %s103
    %p105 = scmp.eq.s32.totalorder %s14, 0
    %p106 = por %p104, %p105
    %p107 = scmp.le.s32.totalorder 1, %s8
    %p108 = scmp.lt.s32.totalorder %s8, 3
    %p109 = pnand %p107, %p108
    %p110 = pneg %p109
    // Predicated region
    $region9: #{conv_bn_relu_other.2} parent=5 // pred_check
      _
    $region10: #{conv_bn_relu_other.2} parent=5 // pred_check_branch
      %112 = sbr.rel (%p109) target = $region12
    $region11: #{conv_bn_relu_other.2} parent=5 // pred_region
      %s113 = ssub.s32 %s8, 1
      // Predicated region
      $region13: #{conv_bn_relu_other.2} parent=11 // pred_check
        %p114 = pneg %p73
      $region14: #{conv_bn_relu_other.2} parent=11 // pred_check_branch
        %116 = sbr.rel (%p114) target = $region16
      $region15: #{conv_bn_relu_other.2} parent=11 // pred_region
        _
      $region16: #{conv_bn_relu_other.2} parent=11 // pred_fallthru
        _
    $region12: #{conv_bn_relu_other.2} parent=5 // pred_fallthru
      _
    %p117 = scmp.lt.s32.totalorder %s8, 2
    // Predicated region
    $region17: #{conv_bn_relu_other.2} parent=5 // pred_check
      %p118 = pneg %p117
    $region18: #{conv_bn_relu_other.2} parent=5 // pred_check_branch
      %120 = sbr.rel (%p118) target = $region20
    $region19: #{conv_bn_relu_other.2} parent=5 // pred_region
      // Predicated region
      $region21: #{conv_bn_relu_other.2} parent=19 // pred_check
        %p121 = pneg %p46
      $region22: #{conv_bn_relu_other.2} parent=19 // pred_check_branch
        %123 = sbr.rel (%p121) target = $region24
      $region23: #{conv_bn_relu_other.2} parent=19 // pred_region
        %s124 = sadd.s32 %s15, %s16
        %p125 = scmp.lt.s32.totalorder %s124, 0
        %s126 = scalar_select %p125, %s124, 0
        %s127 = smul.u32 2, %s126
        %p128 = scmp.lt.s32.totalorder %s127, 1
        %s129 = scalar_select %p128, %s127, 1
        %s130 = smul.addr %s129, 54
        %s131 = smul.addr %s130, 4
        %s132 = scalar_lea.vmem %s0, %s131
        %s133 = sadd.s32 %s15, %s16
        %p134 = scmp.lt.s32.totalorder %s133, 0
        %s135 = scalar_select %p134, %s133, 0
        %s136 = smul.u32 2, %s135
      $region24: #{conv_bn_relu_other.2} parent=19 // pred_fallthru
        _
    $region20: #{conv_bn_relu_other.2} parent=5 // pred_fallthru
      _
    %p137 = scmp.le.s32.totalorder 1, %s8
    %p138 = scmp.lt.s32.totalorder %s8, 3
    %p139 = pnand %p137, %p138
    %p140 = pneg %p139
    // Predicated region
    $region25: #{conv_bn_relu_other.2} parent=5 // pred_check
      _
    $region26: #{conv_bn_relu_other.2} parent=5 // pred_check_branch
      %142 = sbr.rel (%p139) target = $region28
    $region27: #{conv_bn_relu_other.2} parent=5 // pred_region
      %s143 = ssub.s32 %s8, 1
      %s144 = sadd.s32 %s17, %s18
      %p145 = scmp.lt.s32.totalorder %s144, 0
      %s146 = scalar_select %p145, %s144, 0
      %s147 = smul.u32 2, %s146
      %p148 = scmp.lt.s32.totalorder %s147, 1
      %s149 = scalar_select %p148, %s147, 1
      %s150 = smul.addr %s149, 54
      %s151 = smul.addr %s150, 4
      %s152 = scalar_lea.vmem %s0, %s151
      %p153 = pneg %p52
      %p154 = pneg %p49
      %p155 = pneg %p73
      %p156 = pneg %p70
      %p157 = pneg %p99
      %p158 = pneg %p96
      %p159 = scmp.lt.s32.totalorder %s17, 1
      %s160 = scalar_select %p159, %s17, 1
      %s161 = smul.addr %s160, 2
      %s162 = scalar_lea.vmem %s2, %s161
      %s163 = sadd.s32 %s17, %s18
      %p164 = scmp.lt.s32.totalorder %s163, 0
      %s165 = scalar_select %p164, %s163, 0
      %s166 = smul.u32 2, %s165
      %p167 = scmp.lt.s32.totalorder %s166, 1
      %s168 = scalar_select %p167, %s166, 1
      %s169 = smul.addr %s168, 54
      %s170 = smul.addr %s169, 4
      %s171 = scalar_lea.vmem %s0, %s170
      %s172 = sadd.s32 %s17, %s18
      %p173 = scmp.lt.s32.totalorder %s172, 0
      %s174 = scalar_select %p173, %s172, 0
      %s175 = smul.u32 2, %s174
      %p176 = scmp.lt.s32.totalorder %s17, 1
      %s177 = scalar_select %p176, %s17, 1
      %s178 = smul.addr %s177, 2
      %s179 = scalar_lea.vmem %s2, %s178
      %p181 = scmp.eq.s32.totalorder %s18, 0
      // Predicated region
      $region29: #{conv_bn_relu_other.2} parent=27 // pred_check
        %p182 = pneg %p181
      $region30: #{conv_bn_relu_other.2} parent=27 // pred_check_branch
        %184 = sbr.rel (%p182) target = $region32
      $region31: #{conv_bn_relu_other.2} parent=27 // pred_region
        %vm185 = vcmask 58368
        %186 = vst.msk [vmem:[%s179] sm:$0x3] %vm185, 0.0
      $region32: #{conv_bn_relu_other.2} parent=27 // pred_fallthru
        _
      %s187 = sadd.s32 %s17, %s18
      %p188 = scmp.lt.s32.totalorder %s187, 1
      // Predicated region
      $region33: #{conv_bn_relu_other.2} parent=27 // pred_check
        %p189 = pneg %p188
      $region34: #{conv_bn_relu_other.2} parent=27 // pred_check_branch
        %191 = sbr.rel (%p189) target = $region36
      $region35: #{conv_bn_relu_other.2} parent=27 // pred_region
        %v192 = vld [vmem:[%s171] sm:$0xf]
        %v193 = vld [vmem:[%s171 + $0x4] sm:$0xf]
        %v194 = vld [vmem:[%s171 + $0x8] sm:$0x1]
        %v195 = vld [vmem:[%s171 + $0xc] sm:$0xf]
        %v196 = vld [vmem:[%s171 + $0x10] sm:$0xf]
        %v197 = vld [vmem:[%s171 + $0x14] sm:$0x1]
        %v198 = vld [vmem:[%s171 + $0x18] sm:$0xf]
        %v199 = vld [vmem:[%s171 + $0x1c] sm:$0xf]
        %v200 = vld [vmem:[%s171 + $0x20] sm:$0x1]
        %v201 = vld [vmem:[%s171 + $0x24] sm:$0xf]
        %v202 = vld [vmem:[%s171 + $0x28] sm:$0xf]
        %v203 = vld [vmem:[%s171 + $0x2c] sm:$0x1]
        %v204 = vld [vmem:[%s171 + $0x30] sm:$0xf]
        %v205 = vld [vmem:[%s171 + $0x34] sm:$0xf]
        %v206 = vld [vmem:[%s171 + $0x38] sm:$0x1]
        %v207 = vld [vmem:[%s171 + $0x3c] sm:$0xf]
        %v208 = vld [vmem:[%s171 + $0x40] sm:$0xf]
        %v209 = vld [vmem:[%s171 + $0x44] sm:$0x1]
        %v210 = vld [vmem:[%s171 + $0x48] sm:$0xf]
        %v211 = vld [vmem:[%s171 + $0x4c] sm:$0xf]
        %v212 = vld [vmem:[%s171 + $0x50] sm:$0x1]
        %v213 = vld [vmem:[%s171 + $0x54] sm:$0xf]
        %v214 = vld [vmem:[%s171 + $0x58] sm:$0xf]
        %v215 = vld [vmem:[%s171 + $0x5c] sm:$0x1]
        %v216 = vld [vmem:[%s171 + $0x60] sm:$0xf]
        %v217 = vld [vmem:[%s171 + $0x64] sm:$0xf]
        %v218 = vld [vmem:[%s171 + $0x68] sm:$0x1]
        %v219 = vld [vmem:[%s171 + $0x6c] sm:$0xf]
        %v220 = vld [vmem:[%s171 + $0x70] sm:$0xf]
        %v221 = vld [vmem:[%s171 + $0x74] sm:$0x1]
        %v222 = vld [vmem:[%s171 + $0x78] sm:$0xf]
        %v223 = vld [vmem:[%s171 + $0x7c] sm:$0xf]
        %v224 = vld [vmem:[%s171 + $0x80] sm:$0x1]
        %v225 = vld [vmem:[%s171 + $0x84] sm:$0xf]
        %v226 = vld [vmem:[%s171 + $0x88] sm:$0xf]
        %v227 = vld [vmem:[%s171 + $0x8c] sm:$0x1]
        %v228 = vld [vmem:[%s171 + $0x90] sm:$0xf]
        %v229 = vld [vmem:[%s171 + $0x94] sm:$0xf]
        %v230 = vld [vmem:[%s171 + $0x98] sm:$0x1]
        %v231 = vld [vmem:[%s171 + $0x9c] sm:$0xf]
        %v232 = vld [vmem:[%s171 + $0xa0] sm:$0xf]
        %v233 = vld [vmem:[%s171 + $0xa4] sm:$0x1]
        %v234 = vld [vmem:[%s171 + $0xa8] sm:$0xf]
        %v235 = vld [vmem:[%s171 + $0xac] sm:$0xf]
        %v236 = vld [vmem:[%s171 + $0xb0] sm:$0x1]
        %v237 = vld [vmem:[%s171 + $0xb4] sm:$0xf]
        %v238 = vld [vmem:[%s171 + $0xb8] sm:$0xf]
        %v239 = vld [vmem:[%s171 + $0xbc] sm:$0x1]
        %v240 = vld [vmem:[%s171 + $0xc0] sm:$0xf]
        %v241 = vld [vmem:[%s171 + $0xc4] sm:$0xf]
        %v242 = vld [vmem:[%s171 + $0xc8] sm:$0x1]
        %v243 = vld [vmem:[%s171 + $0xcc] sm:$0xf]
        %v244 = vld [vmem:[%s171 + $0xd0] sm:$0xf]
        %v245 = vld [vmem:[%s171 + $0xd4] sm:$0x1]
        %v246 = vld [vmem:[%s171 + $0xd8] sm:$0xf]
        %v247 = vld [vmem:[%s171 + $0xdc] sm:$0xf]
        %v248 = vld [vmem:[%s171 + $0xe0] sm:$0x1]
        %v249 = vld [vmem:[%s171 + $0xe4] sm:$0xf]
        %v250 = vld [vmem:[%s171 + $0xe8] sm:$0xf]
        %v251 = vld [vmem:[%s171 + $0xec] sm:$0x1]
        %v252 = vld [vmem:[%s171 + $0xf0] sm:$0xf]
        %v253 = vld [vmem:[%s171 + $0xf4] sm:$0xf]
        %v254 = vld [vmem:[%s171 + $0xf8] sm:$0x1]
        %v255 = vld [vmem:[%s171 + $0xfc] sm:$0xf]
        %v256 = vld [vmem:[%s171 + $0x100] sm:$0xf]
        %v257 = vld [vmem:[%s171 + $0x104] sm:$0x1]
        %v258 = vld [vmem:[%s171 + $0x108] sm:$0xf]
        %v259 = vld [vmem:[%s171 + $0x10c] sm:$0xf]
        %v260 = vld [vmem:[%s171 + $0x110] sm:$0x1]
        %v261 = vld [vmem:[%s171 + $0x114] sm:$0xf]
        %v262 = vld [vmem:[%s171 + $0x118] sm:$0xf]
        %v263 = vld [vmem:[%s171 + $0x11c] sm:$0x1]
        %v264 = vld [vmem:[%s171 + $0x120] sm:$0xf]
        %v265 = vld [vmem:[%s171 + $0x124] sm:$0xf]
        %v266 = vld [vmem:[%s171 + $0x128] sm:$0x1]
        %v267 = vld [vmem:[%s171 + $0x12c] sm:$0xf]
        %v268 = vld [vmem:[%s171 + $0x130] sm:$0xf]
        %v269 = vld [vmem:[%s171 + $0x134] sm:$0x1]
        %v270 = vld [vmem:[%s171 + $0x138] sm:$0xf]
        %v271 = vld [vmem:[%s171 + $0x13c] sm:$0xf]
        %v272 = vld [vmem:[%s171 + $0x140] sm:$0x1]
        %v273 = vld [vmem:[%s171 + $0x144] sm:$0xf]
        %v274 = vld [vmem:[%s171 + $0x148] sm:$0xf]
        %v275 = vld [vmem:[%s171 + $0x14c] sm:$0x1]
        %v276 = vld [vmem:[%s171 + $0x150] sm:$0xf]
        %v277 = vld [vmem:[%s171 + $0x154] sm:$0xf]
        %v278 = vld [vmem:[%s171 + $0x158] sm:$0x1]
        %v279 = vld [vmem:[%s171 + $0x15c] sm:$0xf]
        %v280 = vld [vmem:[%s171 + $0x160] sm:$0xf]
        %v281 = vld [vmem:[%s171 + $0x164] sm:$0x1]
        %v282 = vld [vmem:[%s171 + $0x168] sm:$0xf]
        %v283 = vld [vmem:[%s171 + $0x16c] sm:$0xf]
        %v284 = vld [vmem:[%s171 + $0x170] sm:$0x1]
        %v285 = vld [vmem:[%s171 + $0x174] sm:$0xf]
        %v286 = vld [vmem:[%s171 + $0x178] sm:$0xf]
        %v287 = vld [vmem:[%s171 + $0x17c] sm:$0x1]
        %v288 = vld [vmem:[%s171 + $0x180] sm:$0xf]
        %v289 = vld [vmem:[%s171 + $0x184] sm:$0xf]
        %v290 = vld [vmem:[%s171 + $0x188] sm:$0x1]
        %v291 = vld [vmem:[%s171 + $0x18c] sm:$0xf]
        %v292 = vld [vmem:[%s171 + $0x190] sm:$0xf]
        %v293 = vld [vmem:[%s171 + $0x194] sm:$0x1]
        %v294 = vld [vmem:[%s171 + $0x198] sm:$0xf]
        %v295 = vld [vmem:[%s171 + $0x19c] sm:$0xf]
        %v296 = vld [vmem:[%s171 + $0x1a0] sm:$0x1]
        %v297 = vld [vmem:[%s171 + $0x1a4] sm:$0xf]
        %v298 = vld [vmem:[%s171 + $0x1a8] sm:$0xf]
        %v299 = vld [vmem:[%s171 + $0x1ac] sm:$0x1]
        %v364 = vunpack.c.l.b16 %v192
        %v365 = vunpack.c.l.b16 %v193
        %v366 = vunpack.c.l.b16 %v195
        %v367 = vunpack.c.l.b16 %v196
        %v368 = vunpack.c.l.b16 %v198
        %v369 = vunpack.c.l.b16 %v199
        %v370 = vunpack.c.l.b16 %v201
        %v371 = vunpack.c.l.b16 %v202
        %v372 = vunpack.c.l.b16 %v204
        %v373 = vunpack.c.l.b16 %v205
        %v374 = vunpack.c.l.b16 %v207
        %v375 = vunpack.c.l.b16 %v208
        %v376 = vunpack.c.l.b16 %v210
        %v377 = vunpack.c.l.b16 %v211
        %v378 = vunpack.c.l.b16 %v213
        %v379 = vunpack.c.l.b16 %v214
        %v380 = vunpack.c.l.b16 %v216
        %v381 = vunpack.c.l.b16 %v217
        %v382 = vunpack.c.l.b16 %v219
        %v383 = vunpack.c.l.b16 %v220
        %v384 = vunpack.c.l.b16 %v222
        %v385 = vunpack.c.l.b16 %v223
        %v386 = vunpack.c.l.b16 %v225
        %v387 = vunpack.c.l.b16 %v226
        %v388 = vunpack.c.l.b16 %v228
        %v389 = vunpack.c.l.b16 %v229
        %v390 = vunpack.c.l.b16 %v231
        %v391 = vunpack.c.l.b16 %v232
        %v392 = vunpack.c.l.b16 %v234
        %v393 = vunpack.c.l.b16 %v235
        %v394 = vunpack.c.l.b16 %v237
        %v395 = vunpack.c.l.b16 %v238
        %v396 = vunpack.c.l.b16 %v246
        %v397 = vunpack.c.l.b16 %v247
        %v398 = vunpack.c.l.b16 %v249
        %v399 = vunpack.c.l.b16 %v250
        %v400 = vunpack.c.l.b16 %v252
        %v401 = vunpack.c.l.b16 %v253
        %v402 = vunpack.c.l.b16 %v255
        %v403 = vunpack.c.l.b16 %v256
        %v404 = vunpack.c.l.b16 %v258
        %v405 = vunpack.c.l.b16 %v259
        %v406 = vunpack.c.l.b16 %v261
        %v407 = vunpack.c.l.b16 %v262
        %v408 = vunpack.c.l.b16 %v264
        %v409 = vunpack.c.l.b16 %v265
        %v410 = vunpack.c.l.b16 %v267
        %v411 = vunpack.c.l.b16 %v268
        %v412 = vunpack.c.l.b16 %v270
        %v413 = vunpack.c.l.b16 %v271
        %v414 = vunpack.c.l.b16 %v273
        %v415 = vunpack.c.l.b16 %v274
        %v416 = vunpack.c.l.b16 %v276
        %v417 = vunpack.c.l.b16 %v277
        %v418 = vunpack.c.l.b16 %v279
        %v419 = vunpack.c.l.b16 %v280
        %v420 = vunpack.c.l.b16 %v282
        %v421 = vunpack.c.l.b16 %v283
        %v422 = vunpack.c.l.b16 %v285
        %v423 = vunpack.c.l.b16 %v286
        %v424 = vunpack.c.l.b16 %v288
        %v425 = vunpack.c.l.b16 %v289
        %v426 = vunpack.c.l.b16 %v291
        %v427 = vunpack.c.l.b16 %v292
        %v428 = vpack.c.b16 %v365, %v364
        %v429 = vpack.c.b16 %v367, %v366
        %v430 = vpack.c.b16 %v369, %v368
        %v431 = vpack.c.b16 %v371, %v370
        %v432 = vpack.c.b16 %v373, %v372
        %v433 = vpack.c.b16 %v375, %v374
        %v434 = vpack.c.b16 %v377, %v376
        %v435 = vpack.c.b16 %v379, %v378
        %v436 = vpack.c.b16 %v381, %v380
        %v437 = vpack.c.b16 %v383, %v382
        %v438 = vpack.c.b16 %v385, %v384
        %v439 = vpack.c.b16 %v387, %v386
        %v440 = vpack.c.b16 %v389, %v388
        %v441 = vpack.c.b16 %v391, %v390
        %v442 = vpack.c.b16 %v393, %v392
        %v443 = vpack.c.b16 %v395, %v394
        %v444 = vpack.c.b16 %v397, %v396
        %v445 = vpack.c.b16 %v399, %v398
        %v446 = vpack.c.b16 %v401, %v400
        %v447 = vpack.c.b16 %v403, %v402
        %v448 = vpack.c.b16 %v405, %v404
        %v449 = vpack.c.b16 %v407, %v406
        %v450 = vpack.c.b16 %v409, %v408
        %v451 = vpack.c.b16 %v411, %v410
        %v452 = vpack.c.b16 %v413, %v412
        %v453 = vpack.c.b16 %v415, %v414
        %v454 = vpack.c.b16 %v417, %v416
        %v455 = vpack.c.b16 %v419, %v418
        %v456 = vpack.c.b16 %v421, %v420
        %v457 = vpack.c.b16 %v423, %v422
        %v458 = vpack.c.b16 %v425, %v424
        %v459 = vpack.c.b16 %v427, %v426
        %v492 = vunpack.c.l.b16 %v194
        %v493 = vunpack.c.l.b16 %v197
        %v494 = vunpack.c.l.b16 %v200
        %v495 = vunpack.c.l.b16 %v203
        %v496 = vunpack.c.l.b16 %v206
        %v497 = vunpack.c.l.b16 %v209
        %v498 = vunpack.c.l.b16 %v212
        %v499 = vunpack.c.l.b16 %v215
        %v500 = vunpack.c.l.b16 %v218
        %v501 = vunpack.c.l.b16 %v221
        %v502 = vunpack.c.l.b16 %v224
        %v503 = vunpack.c.l.b16 %v227
        %v504 = vunpack.c.l.b16 %v230
        %v505 = vunpack.c.l.b16 %v233
        %v506 = vunpack.c.l.b16 %v236
        %v507 = vunpack.c.l.b16 %v239
        %v508 = vunpack.c.l.b16 %v248
        %v509 = vunpack.c.l.b16 %v251
        %v510 = vunpack.c.l.b16 %v254
        %v511 = vunpack.c.l.b16 %v257
        %v512 = vunpack.c.l.b16 %v260
        %v513 = vunpack.c.l.b16 %v263
        %v514 = vunpack.c.l.b16 %v266
        %v515 = vunpack.c.l.b16 %v269
        %v516 = vunpack.c.l.b16 %v272
        %v517 = vunpack.c.l.b16 %v275
        %v518 = vunpack.c.l.b16 %v278
        %v519 = vunpack.c.l.b16 %v281
        %v520 = vunpack.c.l.b16 %v284
        %v521 = vunpack.c.l.b16 %v287
        %v522 = vunpack.c.l.b16 %v290
        %v523 = vunpack.c.l.b16 %v293
        %v524 = vpack.c.b16 %v492, %v492
        %v525 = vpack.c.b16 %v493, %v493
        %v526 = vpack.c.b16 %v494, %v494
        %v527 = vpack.c.b16 %v495, %v495
        %v528 = vpack.c.b16 %v496, %v496
        %v529 = vpack.c.b16 %v497, %v497
        %v530 = vpack.c.b16 %v498, %v498
        %v531 = vpack.c.b16 %v499, %v499
        %v532 = vpack.c.b16 %v500, %v500
        %v533 = vpack.c.b16 %v501, %v501
        %v534 = vpack.c.b16 %v502, %v502
        %v535 = vpack.c.b16 %v503, %v503
        %v536 = vpack.c.b16 %v504, %v504
        %v537 = vpack.c.b16 %v505, %v505
        %v538 = vpack.c.b16 %v506, %v506
        %v539 = vpack.c.b16 %v507, %v507
        %v540 = vpack.c.b16 %v508, %v508
        %v541 = vpack.c.b16 %v509, %v509
        %v542 = vpack.c.b16 %v510, %v510
        %v543 = vpack.c.b16 %v511, %v511
        %v544 = vpack.c.b16 %v512, %v512
        %v545 = vpack.c.b16 %v513, %v513
        %v546 = vpack.c.b16 %v514, %v514
        %v547 = vpack.c.b16 %v515, %v515
        %v548 = vpack.c.b16 %v516, %v516
        %v549 = vpack.c.b16 %v517, %v517
        %v550 = vpack.c.b16 %v518, %v518
        %v551 = vpack.c.b16 %v519, %v519
        %v552 = vpack.c.b16 %v520, %v520
        %v553 = vpack.c.b16 %v521, %v521
        %v554 = vpack.c.b16 %v522, %v522
        %v555 = vpack.c.b16 %v523, %v523
        %vm556 = vsmask.f32 7424
        %v558 = vshrl.u32 %v428, 16
        %v560 = vshll.u32 %v428, 16
        %v562 = vrot.slane %v560, 1
        %v563 = vor.u32 %v558, %v562
        %v565 = vshll.u32 %v524, 16
        %v567 = vrot.slane %v565, 1
        %v568 = vsel %vm556, %v563, %v567
        %v570 = vshrl.u32 %v429, 16
        %v572 = vshll.u32 %v429, 16
        %v574 = vrot.slane %v572, 1
        %v575 = vor.u32 %v570, %v574
        %v577 = vshll.u32 %v525, 16
        %v579 = vrot.slane %v577, 1
        %v580 = vsel %vm556, %v575, %v579
        %v582 = vshrl.u32 %v430, 16
        %v584 = vshll.u32 %v430, 16
        %v586 = vrot.slane %v584, 1
        %v587 = vor.u32 %v582, %v586
        %v589 = vshll.u32 %v526, 16
        %v591 = vrot.slane %v589, 1
        %v592 = vsel %vm556, %v587, %v591
        %v594 = vshrl.u32 %v431, 16
        %v596 = vshll.u32 %v431, 16
        %v598 = vrot.slane %v596, 1
        %v599 = vor.u32 %v594, %v598
        %v601 = vshll.u32 %v527, 16
        %v603 = vrot.slane %v601, 1
        %v604 = vsel %vm556, %v599, %v603
        %v606 = vshrl.u32 %v432, 16
        %v608 = vshll.u32 %v432, 16
        %v610 = vrot.slane %v608, 1
        %v611 = vor.u32 %v606, %v610
        %v613 = vshll.u32 %v528, 16
        %v615 = vrot.slane %v613, 1
        %v616 = vsel %vm556, %v611, %v615
        %v618 = vshrl.u32 %v433, 16
        %v620 = vshll.u32 %v433, 16
        %v622 = vrot.slane %v620, 1
        %v623 = vor.u32 %v618, %v622
        %v625 = vshll.u32 %v529, 16
        %v627 = vrot.slane %v625, 1
        %v628 = vsel %vm556, %v623, %v627
        %v630 = vshrl.u32 %v434, 16
        %v632 = vshll.u32 %v434, 16
        %v634 = vrot.slane %v632, 1
        %v635 = vor.u32 %v630, %v634
        %v637 = vshll.u32 %v530, 16
        %v639 = vrot.slane %v637, 1
        %v640 = vsel %vm556, %v635, %v639
        %v642 = vshrl.u32 %v435, 16
        %v644 = vshll.u32 %v435, 16
        %v646 = vrot.slane %v644, 1
        %v647 = vor.u32 %v642, %v646
        %v649 = vshll.u32 %v531, 16
        %v651 = vrot.slane %v649, 1
        %v652 = vsel %vm556, %v647, %v651
        %v654 = vshrl.u32 %v436, 16
        %v656 = vshll.u32 %v436, 16
        %v658 = vrot.slane %v656, 1
        %v659 = vor.u32 %v654, %v658
        %v661 = vshll.u32 %v532, 16
        %v663 = vrot.slane %v661, 1
        %v664 = vsel %vm556, %v659, %v663
        %v666 = vshrl.u32 %v437, 16
        %v668 = vshll.u32 %v437, 16
        %v670 = vrot.slane %v668, 1
        %v671 = vor.u32 %v666, %v670
        %v673 = vshll.u32 %v533, 16
        %v675 = vrot.slane %v673, 1
        %v676 = vsel %vm556, %v671, %v675
        %v678 = vshrl.u32 %v438, 16
        %v680 = vshll.u32 %v438, 16
        %v682 = vrot.slane %v680, 1
        %v683 = vor.u32 %v678, %v682
        %v685 = vshll.u32 %v534, 16
        %v687 = vrot.slane %v685, 1
        %v688 = vsel %vm556, %v683, %v687
        %v690 = vshrl.u32 %v439, 16
        %v692 = vshll.u32 %v439, 16
        %v694 = vrot.slane %v692, 1
        %v695 = vor.u32 %v690, %v694
        %v697 = vshll.u32 %v535, 16
        %v699 = vrot.slane %v697, 1
        %v700 = vsel %vm556, %v695, %v699
        %v702 = vshrl.u32 %v440, 16
        %v704 = vshll.u32 %v440, 16
        %v706 = vrot.slane %v704, 1
        %v707 = vor.u32 %v702, %v706
        %v709 = vshll.u32 %v536, 16
        %v711 = vrot.slane %v709, 1
        %v712 = vsel %vm556, %v707, %v711
        %v714 = vshrl.u32 %v441, 16
        %v716 = vshll.u32 %v441, 16
        %v718 = vrot.slane %v716, 1
        %v719 = vor.u32 %v714, %v718
        %v721 = vshll.u32 %v537, 16
        %v723 = vrot.slane %v721, 1
        %v724 = vsel %vm556, %v719, %v723
        %v726 = vshrl.u32 %v442, 16
        %v728 = vshll.u32 %v442, 16
        %v730 = vrot.slane %v728, 1
        %v731 = vor.u32 %v726, %v730
        %v733 = vshll.u32 %v538, 16
        %v735 = vrot.slane %v733, 1
        %v736 = vsel %vm556, %v731, %v735
        %v738 = vshrl.u32 %v443, 16
        %v740 = vshll.u32 %v443, 16
        %v742 = vrot.slane %v740, 1
        %v743 = vor.u32 %v738, %v742
        %v745 = vshll.u32 %v539, 16
        %v747 = vrot.slane %v745, 1
        %v748 = vsel %vm556, %v743, %v747
        %v750 = vshrl.u32 %v444, 16
        %v752 = vshll.u32 %v444, 16
        %v754 = vrot.slane %v752, 1
        %v755 = vor.u32 %v750, %v754
        %v757 = vshll.u32 %v540, 16
        %v759 = vrot.slane %v757, 1
        %v760 = vsel %vm556, %v755, %v759
        %v762 = vshrl.u32 %v445, 16
        %v764 = vshll.u32 %v445, 16
        %v766 = vrot.slane %v764, 1
        %v767 = vor.u32 %v762, %v766
        %v769 = vshll.u32 %v541, 16
        %v771 = vrot.slane %v769, 1
        %v772 = vsel %vm556, %v767, %v771
        %v774 = vshrl.u32 %v446, 16
        %v776 = vshll.u32 %v446, 16
        %v778 = vrot.slane %v776, 1
        %v779 = vor.u32 %v774, %v778
        %v781 = vshll.u32 %v542, 16
        %v783 = vrot.slane %v781, 1
        %v784 = vsel %vm556, %v779, %v783
        %v786 = vshrl.u32 %v447, 16
        %v788 = vshll.u32 %v447, 16
        %v790 = vrot.slane %v788, 1
        %v791 = vor.u32 %v786, %v790
        %v793 = vshll.u32 %v543, 16
        %v795 = vrot.slane %v793, 1
        %v796 = vsel %vm556, %v791, %v795
        %v798 = vshrl.u32 %v448, 16
        %v800 = vshll.u32 %v448, 16
        %v802 = vrot.slane %v800, 1
        %v803 = vor.u32 %v798, %v802
        %v805 = vshll.u32 %v544, 16
        %v807 = vrot.slane %v805, 1
        %v808 = vsel %vm556, %v803, %v807
        %v810 = vshrl.u32 %v449, 16
        %v812 = vshll.u32 %v449, 16
        %v814 = vrot.slane %v812, 1
        %v815 = vor.u32 %v810, %v814
        %v817 = vshll.u32 %v545, 16
        %v819 = vrot.slane %v817, 1
        %v820 = vsel %vm556, %v815, %v819
        %v822 = vshrl.u32 %v450, 16
        %v824 = vshll.u32 %v450, 16
        %v826 = vrot.slane %v824, 1
        %v827 = vor.u32 %v822, %v826
        %v829 = vshll.u32 %v546, 16
        %v831 = vrot.slane %v829, 1
        %v832 = vsel %vm556, %v827, %v831
        %v834 = vshrl.u32 %v451, 16
        %v836 = vshll.u32 %v451, 16
        %v838 = vrot.slane %v836, 1
        %v839 = vor.u32 %v834, %v838
        %v841 = vshll.u32 %v547, 16
        %v843 = vrot.slane %v841, 1
        %v844 = vsel %vm556, %v839, %v843
        %v846 = vshrl.u32 %v452, 16
        %v848 = vshll.u32 %v452, 16
        %v850 = vrot.slane %v848, 1
        %v851 = vor.u32 %v846, %v850
        %v853 = vshll.u32 %v548, 16
        %v855 = vrot.slane %v853, 1
        %v856 = vsel %vm556, %v851, %v855
        %v858 = vshrl.u32 %v453, 16
        %v860 = vshll.u32 %v453, 16
        %v862 = vrot.slane %v860, 1
        %v863 = vor.u32 %v858, %v862
        %v865 = vshll.u32 %v549, 16
        %v867 = vrot.slane %v865, 1
        %v868 = vsel %vm556, %v863, %v867
        %v870 = vshrl.u32 %v454, 16
        %v872 = vshll.u32 %v454, 16
        %v874 = vrot.slane %v872, 1
        %v875 = vor.u32 %v870, %v874
        %v877 = vshll.u32 %v550, 16
        %v879 = vrot.slane %v877, 1
        %v880 = vsel %vm556, %v875, %v879
        %v882 = vshrl.u32 %v455, 16
        %v884 = vshll.u32 %v455, 16
        %v886 = vrot.slane %v884, 1
        %v887 = vor.u32 %v882, %v886
        %v889 = vshll.u32 %v551, 16
        %v891 = vrot.slane %v889, 1
        %v892 = vsel %vm556, %v887, %v891
        %v894 = vshrl.u32 %v456, 16
        %v896 = vshll.u32 %v456, 16
        %v898 = vrot.slane %v896, 1
        %v899 = vor.u32 %v894, %v898
        %v901 = vshll.u32 %v552, 16
        %v903 = vrot.slane %v901, 1
        %v904 = vsel %vm556, %v899, %v903
        %v906 = vshrl.u32 %v457, 16
        %v908 = vshll.u32 %v457, 16
        %v910 = vrot.slane %v908, 1
        %v911 = vor.u32 %v906, %v910
        %v913 = vshll.u32 %v553, 16
        %v915 = vrot.slane %v913, 1
        %v916 = vsel %vm556, %v911, %v915
        %v918 = vshrl.u32 %v458, 16
        %v920 = vshll.u32 %v458, 16
        %v922 = vrot.slane %v920, 1
        %v923 = vor.u32 %v918, %v922
        %v925 = vshll.u32 %v554, 16
        %v927 = vrot.slane %v925, 1
        %v928 = vsel %vm556, %v923, %v927
        %v930 = vshrl.u32 %v459, 16
        %v932 = vshll.u32 %v459, 16
        %v934 = vrot.slane %v932, 1
        %v935 = vor.u32 %v930, %v934
        %v937 = vshll.u32 %v555, 16
        %v939 = vrot.slane %v937, 1
        %v940 = vsel %vm556, %v935, %v939
        %941 = vrot.lane.b32.xlu0 %v568, 4
        %v942 = vpop.permute.xlu0 %941
        %943 = vrot.lane.b32.xlu0 %v580, 4
        %v944 = vpop.permute.xlu0 %943
        %945 = vrot.lane.b32.xlu0 %v592, 4
        %v946 = vpop.permute.xlu0 %945
        %947 = vrot.lane.b32.xlu0 %v604, 4
        %v948 = vpop.permute.xlu0 %947
        %949 = vrot.lane.b32.xlu0 %v616, 4
        %v950 = vpop.permute.xlu0 %949
        %951 = vrot.lane.b32.xlu0 %v628, 4
        %v952 = vpop.permute.xlu0 %951
        %953 = vrot.lane.b32.xlu0 %v640, 4
        %v954 = vpop.permute.xlu0 %953
        %955 = vrot.lane.b32.xlu0 %v652, 4
        %v956 = vpop.permute.xlu0 %955
        %957 = vrot.lane.b32.xlu0 %v664, 4
        %v958 = vpop.permute.xlu0 %957
        %959 = vrot.lane.b32.xlu0 %v676, 4
        %v960 = vpop.permute.xlu0 %959
        %961 = vrot.lane.b32.xlu0 %v688, 4
        %v962 = vpop.permute.xlu0 %961
        %963 = vrot.lane.b32.xlu0 %v700, 4
        %v964 = vpop.permute.xlu0 %963
        %965 = vrot.lane.b32.xlu0 %v712, 4
        %v966 = vpop.permute.xlu0 %965
        %967 = vrot.lane.b32.xlu0 %v724, 4
        %v968 = vpop.permute.xlu0 %967
        %969 = vrot.lane.b32.xlu0 %v736, 4
        %v970 = vpop.permute.xlu0 %969
        %971 = vrot.lane.b32.xlu0 %v748, 4
        %v972 = vpop.permute.xlu0 %971
        %973 = vrot.lane.b32.xlu0 %v760, 4
        %v974 = vpop.permute.xlu0 %973
        %975 = vrot.lane.b32.xlu0 %v772, 4
        %v976 = vpop.permute.xlu0 %975
        %977 = vrot.lane.b32.xlu0 %v784, 4
        %v978 = vpop.permute.xlu0 %977
        %979 = vrot.lane.b32.xlu0 %v796, 4
        %v980 = vpop.permute.xlu0 %979
        %981 = vrot.lane.b32.xlu0 %v808, 4
        %v982 = vpop.permute.xlu0 %981
        %983 = vrot.lane.b32.xlu0 %v820, 4
        %v984 = vpop.permute.xlu0 %983
        %985 = vrot.lane.b32.xlu0 %v832, 4
        %v986 = vpop.permute.xlu0 %985
        %987 = vrot.lane.b32.xlu0 %v844, 4
        %v988 = vpop.permute.xlu0 %987
        %989 = vrot.lane.b32.xlu0 %v856, 4
        %v990 = vpop.permute.xlu0 %989
        %991 = vrot.lane.b32.xlu0 %v868, 4
        %v992 = vpop.permute.xlu0 %991
        %993 = vrot.lane.b32.xlu0 %v880, 4
        %v994 = vpop.permute.xlu0 %993
        %995 = vrot.lane.b32.xlu0 %v892, 4
        %v996 = vpop.permute.xlu0 %995
        %997 = vrot.lane.b32.xlu0 %v904, 4
        %v998 = vpop.permute.xlu0 %997
        %999 = vrot.lane.b32.xlu0 %v916, 4
        %v1000 = vpop.permute.xlu0 %999
        %1001 = vrot.lane.b32.xlu0 %v928, 4
        %v1002 = vpop.permute.xlu0 %1001
        %1003 = vrot.lane.b32.xlu0 %v940, 4
        %v1004 = vpop.permute.xlu0 %1003
        %vm1005 = vcmask 1046528
        %v1006 = vrot.slane %v428, 1
        %v1007 = vrot.slane %v524, 1
        %v1008 = vsel %vm1005, %v1006, %v1007
        %v1009 = vrot.slane %v429, 1
        %v1010 = vrot.slane %v525, 1
        %v1011 = vsel %vm1005, %v1009, %v1010
        %v1012 = vrot.slane %v430, 1
        %v1013 = vrot.slane %v526, 1
        %v1014 = vsel %vm1005, %v1012, %v1013
        %v1015 = vrot.slane %v431, 1
        %v1016 = vrot.slane %v527, 1
        %v1017 = vsel %vm1005, %v1015, %v1016
        %v1018 = vrot.slane %v432, 1
        %v1019 = vrot.slane %v528, 1
        %v1020 = vsel %vm1005, %v1018, %v1019
        %v1021 = vrot.slane %v433, 1
        %v1022 = vrot.slane %v529, 1
        %v1023 = vsel %vm1005, %v1021, %v1022
        %v1024 = vrot.slane %v434, 1
        %v1025 = vrot.slane %v530, 1
        %v1026 = vsel %vm1005, %v1024, %v1025
        %v1027 = vrot.slane %v435, 1
        %v1028 = vrot.slane %v531, 1
        %v1029 = vsel %vm1005, %v1027, %v1028
        %v1030 = vrot.slane %v436, 1
        %v1031 = vrot.slane %v532, 1
        %v1032 = vsel %vm1005, %v1030, %v1031
        %v1033 = vrot.slane %v437, 1
        %v1034 = vrot.slane %v533, 1
        %v1035 = vsel %vm1005, %v1033, %v1034
        %v1036 = vrot.slane %v438, 1
        %v1037 = vrot.slane %v534, 1
        %v1038 = vsel %vm1005, %v1036, %v1037
        %v1039 = vrot.slane %v439, 1
        %v1040 = vrot.slane %v535, 1
        %v1041 = vsel %vm1005, %v1039, %v1040
        %v1042 = vrot.slane %v440, 1
        %v1043 = vrot.slane %v536, 1
        %v1044 = vsel %vm1005, %v1042, %v1043
        %v1045 = vrot.slane %v441, 1
        %v1046 = vrot.slane %v537, 1
        %v1047 = vsel %vm1005, %v1045, %v1046
        %v1048 = vrot.slane %v442, 1
        %v1049 = vrot.slane %v538, 1
        %v1050 = vsel %vm1005, %v1048, %v1049
        %v1051 = vrot.slane %v443, 1
        %v1052 = vrot.slane %v539, 1
        %v1053 = vsel %vm1005, %v1051, %v1052
        %v1054 = vrot.slane %v444, 1
        %v1055 = vrot.slane %v540, 1
        %v1056 = vsel %vm1005, %v1054, %v1055
        %v1057 = vrot.slane %v445, 1
        %v1058 = vrot.slane %v541, 1
        %v1059 = vsel %vm1005, %v1057, %v1058
        %v1060 = vrot.slane %v446, 1
        %v1061 = vrot.slane %v542, 1
        %v1062 = vsel %vm1005, %v1060, %v1061
        %v1063 = vrot.slane %v447, 1
        %v1064 = vrot.slane %v543, 1
        %v1065 = vsel %vm1005, %v1063, %v1064
        %v1066 = vrot.slane %v448, 1
        %v1067 = vrot.slane %v544, 1
        %v1068 = vsel %vm1005, %v1066, %v1067
        %v1069 = vrot.slane %v449, 1
        %v1070 = vrot.slane %v545, 1
        %v1071 = vsel %vm1005, %v1069, %v1070
        %v1072 = vrot.slane %v450, 1
        %v1073 = vrot.slane %v546, 1
        %v1074 = vsel %vm1005, %v1072, %v1073
        %v1075 = vrot.slane %v451, 1
        %v1076 = vrot.slane %v547, 1
        %v1077 = vsel %vm1005, %v1075, %v1076
        %v1078 = vrot.slane %v452, 1
        %v1079 = vrot.slane %v548, 1
        %v1080 = vsel %vm1005, %v1078, %v1079
        %v1081 = vrot.slane %v453, 1
        %v1082 = vrot.slane %v549, 1
        %v1083 = vsel %vm1005, %v1081, %v1082
        %v1084 = vrot.slane %v454, 1
        %v1085 = vrot.slane %v550, 1
        %v1086 = vsel %vm1005, %v1084, %v1085
        %v1087 = vrot.slane %v455, 1
        %v1088 = vrot.slane %v551, 1
        %v1089 = vsel %vm1005, %v1087, %v1088
        %v1090 = vrot.slane %v456, 1
        %v1091 = vrot.slane %v552, 1
        %v1092 = vsel %vm1005, %v1090, %v1091
        %v1093 = vrot.slane %v457, 1
        %v1094 = vrot.slane %v553, 1
        %v1095 = vsel %vm1005, %v1093, %v1094
        %v1096 = vrot.slane %v458, 1
        %v1097 = vrot.slane %v554, 1
        %v1098 = vsel %vm1005, %v1096, %v1097
        %v1099 = vrot.slane %v459, 1
        %v1100 = vrot.slane %v555, 1
        %v1101 = vsel %vm1005, %v1099, %v1100
        %1102 = vrot.lane.b32.xlu0 %v1008, 8
        %v1103 = vpop.permute.xlu0 %1102
        %1104 = vrot.lane.b32.xlu0 %v1011, 8
        %v1105 = vpop.permute.xlu0 %1104
        %1106 = vrot.lane.b32.xlu0 %v1014, 8
        %v1107 = vpop.permute.xlu0 %1106
        %1108 = vrot.lane.b32.xlu0 %v1017, 8
        %v1109 = vpop.permute.xlu0 %1108
        %1110 = vrot.lane.b32.xlu0 %v1020, 8
        %v1111 = vpop.permute.xlu0 %1110
        %1112 = vrot.lane.b32.xlu0 %v1023, 8
        %v1113 = vpop.permute.xlu0 %1112
        %1114 = vrot.lane.b32.xlu0 %v1026, 8
        %v1115 = vpop.permute.xlu0 %1114
        %1116 = vrot.lane.b32.xlu0 %v1029, 8
        %v1117 = vpop.permute.xlu0 %1116
        %1118 = vrot.lane.b32.xlu0 %v1032, 8
        %v1119 = vpop.permute.xlu0 %1118
        %1120 = vrot.lane.b32.xlu0 %v1035, 8
        %v1121 = vpop.permute.xlu0 %1120
        %1122 = vrot.lane.b32.xlu0 %v1038, 8
        %v1123 = vpop.permute.xlu0 %1122
        %1124 = vrot.lane.b32.xlu0 %v1041, 8
        %v1125 = vpop.permute.xlu0 %1124
        %1126 = vrot.lane.b32.xlu0 %v1044, 8
        %v1127 = vpop.permute.xlu0 %1126
        %1128 = vrot.lane.b32.xlu0 %v1047, 8
        %v1129 = vpop.permute.xlu0 %1128
        %1130 = vrot.lane.b32.xlu0 %v1050, 8
        %v1131 = vpop.permute.xlu0 %1130
        %1132 = vrot.lane.b32.xlu0 %v1053, 8
        %v1133 = vpop.permute.xlu0 %1132
        %1134 = vrot.lane.b32.xlu0 %v1056, 8
        %v1135 = vpop.permute.xlu0 %1134
        %1136 = vrot.lane.b32.xlu0 %v1059, 8
        %v1137 = vpop.permute.xlu0 %1136
        %1138 = vrot.lane.b32.xlu0 %v1062, 8
        %v1139 = vpop.permute.xlu0 %1138
        %1140 = vrot.lane.b32.xlu0 %v1065, 8
        %v1141 = vpop.permute.xlu0 %1140
        %1142 = vrot.lane.b32.xlu0 %v1068, 8
        %v1143 = vpop.permute.xlu0 %1142
        %1144 = vrot.lane.b32.xlu0 %v1071, 8
        %v1145 = vpop.permute.xlu0 %1144
        %1146 = vrot.lane.b32.xlu0 %v1074, 8
        %v1147 = vpop.permute.xlu0 %1146
        %1148 = vrot.lane.b32.xlu0 %v1077, 8
        %v1149 = vpop.permute.xlu0 %1148
        %1150 = vrot.lane.b32.xlu0 %v1080, 8
        %v1151 = vpop.permute.xlu0 %1150
        %1152 = vrot.lane.b32.xlu0 %v1083, 8
        %v1153 = vpop.permute.xlu0 %1152
        %1154 = vrot.lane.b32.xlu0 %v1086, 8
        %v1155 = vpop.permute.xlu0 %1154
        %1156 = vrot.lane.b32.xlu0 %v1089, 8
        %v1157 = vpop.permute.xlu0 %1156
        %1158 = vrot.lane.b32.xlu0 %v1092, 8
        %v1159 = vpop.permute.xlu0 %1158
        %1160 = vrot.lane.b32.xlu0 %v1095, 8
        %v1161 = vpop.permute.xlu0 %1160
        %1162 = vrot.lane.b32.xlu0 %v1098, 8
        %v1163 = vpop.permute.xlu0 %1162
        %1164 = vrot.lane.b32.xlu0 %v1101, 8
        %v1165 = vpop.permute.xlu0 %1164
        %v1170 = vunpack.c.l.b16 %v240
        %v1171 = vunpack.c.l.b16 %v241
        %v1172 = vunpack.c.l.b16 %v294
        %v1173 = vunpack.c.l.b16 %v295
        %v1174 = vpack.c.b16 %v1171, %v1170
        %v1175 = vpack.c.b16 %v1173, %v1172
        %1176 = vrot.lane.b32.xlu0 %v429, 12
        %v1177 = vpop.permute.xlu0 %1176
        %1178 = vrot.lane.b32.xlu0 %v430, 12
        %v1179 = vpop.permute.xlu0 %1178
        %1180 = vrot.lane.b32.xlu0 %v431, 12
        %v1181 = vpop.permute.xlu0 %1180
        %1182 = vrot.lane.b32.xlu0 %v432, 12
        %v1183 = vpop.permute.xlu0 %1182
        %1184 = vrot.lane.b32.xlu0 %v433, 12
        %v1185 = vpop.permute.xlu0 %1184
        %1186 = vrot.lane.b32.xlu0 %v434, 12
        %v1187 = vpop.permute.xlu0 %1186
        %1188 = vrot.lane.b32.xlu0 %v435, 12
        %v1189 = vpop.permute.xlu0 %1188
        %1190 = vrot.lane.b32.xlu0 %v436, 12
        %v1191 = vpop.permute.xlu0 %1190
        %1192 = vrot.lane.b32.xlu0 %v437, 12
        %v1193 = vpop.permute.xlu0 %1192
        %1194 = vrot.lane.b32.xlu0 %v438, 12
        %v1195 = vpop.permute.xlu0 %1194
        %1196 = vrot.lane.b32.xlu0 %v439, 12
        %v1197 = vpop.permute.xlu0 %1196
        %1198 = vrot.lane.b32.xlu0 %v440, 12
        %v1199 = vpop.permute.xlu0 %1198
        %1200 = vrot.lane.b32.xlu0 %v441, 12
        %v1201 = vpop.permute.xlu0 %1200
        %1202 = vrot.lane.b32.xlu0 %v442, 12
        %v1203 = vpop.permute.xlu0 %1202
        %1204 = vrot.lane.b32.xlu0 %v443, 12
        %v1205 = vpop.permute.xlu0 %1204
        %1206 = vrot.lane.b32.xlu0 %v1174, 12
        %v1207 = vpop.permute.xlu0 %1206
        %1208 = vrot.lane.b32.xlu0 %v445, 12
        %v1209 = vpop.permute.xlu0 %1208
        %1210 = vrot.lane.b32.xlu0 %v446, 12
        %v1211 = vpop.permute.xlu0 %1210
        %1212 = vrot.lane.b32.xlu0 %v447, 12
        %v1213 = vpop.permute.xlu0 %1212
        %1214 = vrot.lane.b32.xlu0 %v448, 12
        %v1215 = vpop.permute.xlu0 %1214
        %1216 = vrot.lane.b32.xlu0 %v449, 12
        %v1217 = vpop.permute.xlu0 %1216
        %1218 = vrot.lane.b32.xlu0 %v450, 12
        %v1219 = vpop.permute.xlu0 %1218
        %1220 = vrot.lane.b32.xlu0 %v451, 12
        %v1221 = vpop.permute.xlu0 %1220
        %1222 = vrot.lane.b32.xlu0 %v452, 12
        %v1223 = vpop.permute.xlu0 %1222
        %1224 = vrot.lane.b32.xlu0 %v453, 12
        %v1225 = vpop.permute.xlu0 %1224
        %1226 = vrot.lane.b32.xlu0 %v454, 12
        %v1227 = vpop.permute.xlu0 %1226
        %1228 = vrot.lane.b32.xlu0 %v455, 12
        %v1229 = vpop.permute.xlu0 %1228
        %1230 = vrot.lane.b32.xlu0 %v456, 12
        %v1231 = vpop.permute.xlu0 %1230
        %1232 = vrot.lane.b32.xlu0 %v457, 12
        %v1233 = vpop.permute.xlu0 %1232
        %1234 = vrot.lane.b32.xlu0 %v458, 12
        %v1235 = vpop.permute.xlu0 %1234
        %1236 = vrot.lane.b32.xlu0 %v459, 12
        %v1237 = vpop.permute.xlu0 %1236
        %1238 = vrot.lane.b32.xlu0 %v1175, 12
        %v1239 = vpop.permute.xlu0 %1238
        %v1242 = vunpack.c.l.b16 %v242
        %v1243 = vunpack.c.l.b16 %v296
        %v1244 = vpack.c.b16 %v1242, %v1242
        %v1245 = vpack.c.b16 %v1243, %v1243
        %v1247 = vshrl.u32 %v1174, 16
        %v1249 = vshll.u32 %v1174, 16
        %v1251 = vrot.slane %v1249, 1
        %v1252 = vor.u32 %v1247, %v1251
        %v1254 = vshll.u32 %v1244, 16
        %v1256 = vrot.slane %v1254, 1
        %v1257 = vsel %vm556, %v1252, %v1256
        %v1259 = vshrl.u32 %v1175, 16
        %v1261 = vshll.u32 %v1175, 16
        %v1263 = vrot.slane %v1261, 1
        %v1264 = vor.u32 %v1259, %v1263
        %v1266 = vshll.u32 %v1245, 16
        %v1268 = vrot.slane %v1266, 1
        %v1269 = vsel %vm556, %v1264, %v1268
        %1270 = vrot.lane.b32.xlu0 %v580, 16
        %v1271 = vpop.permute.xlu0 %1270
        %1272 = vrot.lane.b32.xlu0 %v592, 16
        %v1273 = vpop.permute.xlu0 %1272
        %1274 = vrot.lane.b32.xlu0 %v604, 16
        %v1275 = vpop.permute.xlu0 %1274
        %1276 = vrot.lane.b32.xlu0 %v616, 16
        %v1277 = vpop.permute.xlu0 %1276
        %1278 = vrot.lane.b32.xlu0 %v628, 16
        %v1279 = vpop.permute.xlu0 %1278
        %1280 = vrot.lane.b32.xlu0 %v640, 16
        %v1281 = vpop.permute.xlu0 %1280
        %1282 = vrot.lane.b32.xlu0 %v652, 16
        %v1283 = vpop.permute.xlu0 %1282
        %1284 = vrot.lane.b32.xlu0 %v664, 16
        %v1285 = vpop.permute.xlu0 %1284
        %1286 = vrot.lane.b32.xlu0 %v676, 16
        %v1287 = vpop.permute.xlu0 %1286
        %1288 = vrot.lane.b32.xlu0 %v688, 16
        %v1289 = vpop.permute.xlu0 %1288
        %1290 = vrot.lane.b32.xlu0 %v700, 16
        %v1291 = vpop.permute.xlu0 %1290
        %1292 = vrot.lane.b32.xlu0 %v712, 16
        %v1293 = vpop.permute.xlu0 %1292
        %1294 = vrot.lane.b32.xlu0 %v724, 16
        %v1295 = vpop.permute.xlu0 %1294
        %1296 = vrot.lane.b32.xlu0 %v736, 16
        %v1297 = vpop.permute.xlu0 %1296
        %1298 = vrot.lane.b32.xlu0 %v748, 16
        %v1299 = vpop.permute.xlu0 %1298
        %1300 = vrot.lane.b32.xlu0 %v1257, 16
        %v1301 = vpop.permute.xlu0 %1300
        %1302 = vrot.lane.b32.xlu0 %v772, 16
        %v1303 = vpop.permute.xlu0 %1302
        %1304 = vrot.lane.b32.xlu0 %v784, 16
        %v1305 = vpop.permute.xlu0 %1304
        %1306 = vrot.lane.b32.xlu0 %v796, 16
        %v1307 = vpop.permute.xlu0 %1306
        %1308 = vrot.lane.b32.xlu0 %v808, 16
        %v1309 = vpop.permute.xlu0 %1308
        %1310 = vrot.lane.b32.xlu0 %v820, 16
        %v1311 = vpop.permute.xlu0 %1310
        %1312 = vrot.lane.b32.xlu0 %v832, 16
        %v1313 = vpop.permute.xlu0 %1312
        %1314 = vrot.lane.b32.xlu0 %v844, 16
        %v1315 = vpop.permute.xlu0 %1314
        %1316 = vrot.lane.b32.xlu0 %v856, 16
        %v1317 = vpop.permute.xlu0 %1316
        %1318 = vrot.lane.b32.xlu0 %v868, 16
        %v1319 = vpop.permute.xlu0 %1318
        %1320 = vrot.lane.b32.xlu0 %v880, 16
        %v1321 = vpop.permute.xlu0 %1320
        %1322 = vrot.lane.b32.xlu0 %v892, 16
        %v1323 = vpop.permute.xlu0 %1322
        %1324 = vrot.lane.b32.xlu0 %v904, 16
        %v1325 = vpop.permute.xlu0 %1324
        %1326 = vrot.lane.b32.xlu0 %v916, 16
        %v1327 = vpop.permute.xlu0 %1326
        %1328 = vrot.lane.b32.xlu0 %v928, 16
        %v1329 = vpop.permute.xlu0 %1328
        %1330 = vrot.lane.b32.xlu0 %v940, 16
        %v1331 = vpop.permute.xlu0 %1330
        %1332 = vrot.lane.b32.xlu0 %v1269, 16
        %v1333 = vpop.permute.xlu0 %1332
        %v1334 = vrot.slane %v1174, 1
        %v1335 = vrot.slane %v1244, 1
        %v1336 = vsel %vm1005, %v1334, %v1335
        %v1337 = vrot.slane %v1175, 1
        %v1338 = vrot.slane %v1245, 1
        %v1339 = vsel %vm1005, %v1337, %v1338
        %1340 = vrot.lane.b32.xlu0 %v1011, 20
        %v1341 = vpop.permute.xlu0 %1340
        %1342 = vrot.lane.b32.xlu0 %v1014, 20
        %v1343 = vpop.permute.xlu0 %1342
        %1344 = vrot.lane.b32.xlu0 %v1017, 20
        %v1345 = vpop.permute.xlu0 %1344
        %1346 = vrot.lane.b32.xlu0 %v1020, 20
        %v1347 = vpop.permute.xlu0 %1346
        %1348 = vrot.lane.b32.xlu0 %v1023, 20
        %v1349 = vpop.permute.xlu0 %1348
        %1350 = vrot.lane.b32.xlu0 %v1026, 20
        %v1351 = vpop.permute.xlu0 %1350
        %1352 = vrot.lane.b32.xlu0 %v1029, 20
        %v1353 = vpop.permute.xlu0 %1352
        %1354 = vrot.lane.b32.xlu0 %v1032, 20
        %v1355 = vpop.permute.xlu0 %1354
        %1356 = vrot.lane.b32.xlu0 %v1035, 20
        %v1357 = vpop.permute.xlu0 %1356
        %1358 = vrot.lane.b32.xlu0 %v1038, 20
        %v1359 = vpop.permute.xlu0 %1358
        %1360 = vrot.lane.b32.xlu0 %v1041, 20
        %v1361 = vpop.permute.xlu0 %1360
        %1362 = vrot.lane.b32.xlu0 %v1044, 20
        %v1363 = vpop.permute.xlu0 %1362
        %1364 = vrot.lane.b32.xlu0 %v1047, 20
        %v1365 = vpop.permute.xlu0 %1364
        %1366 = vrot.lane.b32.xlu0 %v1050, 20
        %v1367 = vpop.permute.xlu0 %1366
        %1368 = vrot.lane.b32.xlu0 %v1053, 20
        %v1369 = vpop.permute.xlu0 %1368
        %1370 = vrot.lane.b32.xlu0 %v1336, 20
        %v1371 = vpop.permute.xlu0 %1370
        %1372 = vrot.lane.b32.xlu0 %v1059, 20
        %v1373 = vpop.permute.xlu0 %1372
        %1374 = vrot.lane.b32.xlu0 %v1062, 20
        %v1375 = vpop.permute.xlu0 %1374
        %1376 = vrot.lane.b32.xlu0 %v1065, 20
        %v1377 = vpop.permute.xlu0 %1376
        %1378 = vrot.lane.b32.xlu0 %v1068, 20
        %v1379 = vpop.permute.xlu0 %1378
        %1380 = vrot.lane.b32.xlu0 %v1071, 20
        %v1381 = vpop.permute.xlu0 %1380
        %1382 = vrot.lane.b32.xlu0 %v1074, 20
        %v1383 = vpop.permute.xlu0 %1382
        %1384 = vrot.lane.b32.xlu0 %v1077, 20
        %v1385 = vpop.permute.xlu0 %1384
        %1386 = vrot.lane.b32.xlu0 %v1080, 20
        %v1387 = vpop.permute.xlu0 %1386
        %1388 = vrot.lane.b32.xlu0 %v1083, 20
        %v1389 = vpop.permute.xlu0 %1388
        %1390 = vrot.lane.b32.xlu0 %v1086, 20
        %v1391 = vpop.permute.xlu0 %1390
        %1392 = vrot.lane.b32.xlu0 %v1089, 20
        %v1393 = vpop.permute.xlu0 %1392
        %1394 = vrot.lane.b32.xlu0 %v1092, 20
        %v1395 = vpop.permute.xlu0 %1394
        %1396 = vrot.lane.b32.xlu0 %v1095, 20
        %v1397 = vpop.permute.xlu0 %1396
        %1398 = vrot.lane.b32.xlu0 %v1098, 20
        %v1399 = vpop.permute.xlu0 %1398
        %1400 = vrot.lane.b32.xlu0 %v1101, 20
        %v1401 = vpop.permute.xlu0 %1400
        %1402 = vrot.lane.b32.xlu0 %v1339, 20
        %v1403 = vpop.permute.xlu0 %1402
        %v1408 = vunpack.c.l.b16 %v243
        %v1409 = vunpack.c.l.b16 %v244
        %v1410 = vunpack.c.l.b16 %v297
        %v1411 = vunpack.c.l.b16 %v298
        %v1412 = vpack.c.b16 %v1409, %v1408
        %v1413 = vpack.c.b16 %v1411, %v1410
        %1414 = vrot.lane.b32.xlu0 %v430, 24
        %v1415 = vpop.permute.xlu0 %1414
        %1416 = vrot.lane.b32.xlu0 %v431, 24
        %v1417 = vpop.permute.xlu0 %1416
        %1418 = vrot.lane.b32.xlu0 %v432, 24
        %v1419 = vpop.permute.xlu0 %1418
        %1420 = vrot.lane.b32.xlu0 %v433, 24
        %v1421 = vpop.permute.xlu0 %1420
        %1422 = vrot.lane.b32.xlu0 %v434, 24
        %v1423 = vpop.permute.xlu0 %1422
        %1424 = vrot.lane.b32.xlu0 %v435, 24
        %v1425 = vpop.permute.xlu0 %1424
        %1426 = vrot.lane.b32.xlu0 %v436, 24
        %v1427 = vpop.permute.xlu0 %1426
        %1428 = vrot.lane.b32.xlu0 %v437, 24
        %v1429 = vpop.permute.xlu0 %1428
        %1430 = vrot.lane.b32.xlu0 %v438, 24
        %v1431 = vpop.permute.xlu0 %1430
        %1432 = vrot.lane.b32.xlu0 %v439, 24
        %v1433 = vpop.permute.xlu0 %1432
        %1434 = vrot.lane.b32.xlu0 %v440, 24
        %v1435 = vpop.permute.xlu0 %1434
        %1436 = vrot.lane.b32.xlu0 %v441, 24
        %v1437 = vpop.permute.xlu0 %1436
        %1438 = vrot.lane.b32.xlu0 %v442, 24
        %v1439 = vpop.permute.xlu0 %1438
        %1440 = vrot.lane.b32.xlu0 %v443, 24
        %v1441 = vpop.permute.xlu0 %1440
        %1442 = vrot.lane.b32.xlu0 %v1174, 24
        %v1443 = vpop.permute.xlu0 %1442
        %1444 = vrot.lane.b32.xlu0 %v1412, 24
        %v1445 = vpop.permute.xlu0 %1444
        %1446 = vrot.lane.b32.xlu0 %v446, 24
        %v1447 = vpop.permute.xlu0 %1446
        %1448 = vrot.lane.b32.xlu0 %v447, 24
        %v1449 = vpop.permute.xlu0 %1448
        %1450 = vrot.lane.b32.xlu0 %v448, 24
        %v1451 = vpop.permute.xlu0 %1450
        %1452 = vrot.lane.b32.xlu0 %v449, 24
        %v1453 = vpop.permute.xlu0 %1452
        %1454 = vrot.lane.b32.xlu0 %v450, 24
        %v1455 = vpop.permute.xlu0 %1454
        %1456 = vrot.lane.b32.xlu0 %v451, 24
        %v1457 = vpop.permute.xlu0 %1456
        %1458 = vrot.lane.b32.xlu0 %v452, 24
        %v1459 = vpop.permute.xlu0 %1458
        %1460 = vrot.lane.b32.xlu0 %v453, 24
        %v1461 = vpop.permute.xlu0 %1460
        %1462 = vrot.lane.b32.xlu0 %v454, 24
        %v1463 = vpop.permute.xlu0 %1462
        %1464 = vrot.lane.b32.xlu0 %v455, 24
        %v1465 = vpop.permute.xlu0 %1464
        %1466 = vrot.lane.b32.xlu0 %v456, 24
        %v1467 = vpop.permute.xlu0 %1466
        %1468 = vrot.lane.b32.xlu0 %v457, 24
        %v1469 = vpop.permute.xlu0 %1468
        %1470 = vrot.lane.b32.xlu0 %v458, 24
        %v1471 = vpop.permute.xlu0 %1470
        %1472 = vrot.lane.b32.xlu0 %v459, 24
        %v1473 = vpop.permute.xlu0 %1472
        %1474 = vrot.lane.b32.xlu0 %v1175, 24
        %v1475 = vpop.permute.xlu0 %1474
        %1476 = vrot.lane.b32.xlu0 %v1413, 24
        %v1477 = vpop.permute.xlu0 %1476
        %v1480 = vunpack.c.l.b16 %v245
        %v1481 = vunpack.c.l.b16 %v299
        %v1482 = vpack.c.b16 %v1480, %v1480
        %v1483 = vpack.c.b16 %v1481, %v1481
        %v1485 = vshrl.u32 %v1412, 16
        %v1487 = vshll.u32 %v1412, 16
        %v1489 = vrot.slane %v1487, 1
        %v1490 = vor.u32 %v1485, %v1489
        %v1492 = vshll.u32 %v1482, 16
        %v1494 = vrot.slane %v1492, 1
        %v1495 = vsel %vm556, %v1490, %v1494
        %v1497 = vshrl.u32 %v1413, 16
        %v1499 = vshll.u32 %v1413, 16
        %v1501 = vrot.slane %v1499, 1
        %v1502 = vor.u32 %v1497, %v1501
        %v1504 = vshll.u32 %v1483, 16
        %v1506 = vrot.slane %v1504, 1
        %v1507 = vsel %vm556, %v1502, %v1506
        %1508 = vrot.lane.b32.xlu0 %v592, 28
        %v1509 = vpop.permute.xlu0 %1508
        %1510 = vrot.lane.b32.xlu0 %v604, 28
        %v1511 = vpop.permute.xlu0 %1510
        %1512 = vrot.lane.b32.xlu0 %v616, 28
        %v1513 = vpop.permute.xlu0 %1512
        %1514 = vrot.lane.b32.xlu0 %v628, 28
        %v1515 = vpop.permute.xlu0 %1514
        %1516 = vrot.lane.b32.xlu0 %v640, 28
        %v1517 = vpop.permute.xlu0 %1516
        %1518 = vrot.lane.b32.xlu0 %v652, 28
        %v1519 = vpop.permute.xlu0 %1518
        %1520 = vrot.lane.b32.xlu0 %v664, 28
        %v1521 = vpop.permute.xlu0 %1520
        %1522 = vrot.lane.b32.xlu0 %v676, 28
        %v1523 = vpop.permute.xlu0 %1522
        %1524 = vrot.lane.b32.xlu0 %v688, 28
        %v1525 = vpop.permute.xlu0 %1524
        %1526 = vrot.lane.b32.xlu0 %v700, 28
        %v1527 = vpop.permute.xlu0 %1526
        %1528 = vrot.lane.b32.xlu0 %v712, 28
        %v1529 = vpop.permute.xlu0 %1528
        %1530 = vrot.lane.b32.xlu0 %v724, 28
        %v1531 = vpop.permute.xlu0 %1530
        %1532 = vrot.lane.b32.xlu0 %v736, 28
        %v1533 = vpop.permute.xlu0 %1532
        %1534 = vrot.lane.b32.xlu0 %v748, 28
        %v1535 = vpop.permute.xlu0 %1534
        %1536 = vrot.lane.b32.xlu0 %v1257, 28
        %v1537 = vpop.permute.xlu0 %1536
        %1538 = vrot.lane.b32.xlu0 %v1495, 28
        %v1539 = vpop.permute.xlu0 %1538
        %1540 = vrot.lane.b32.xlu0 %v784, 28
        %v1541 = vpop.permute.xlu0 %1540
        %1542 = vrot.lane.b32.xlu0 %v796, 28
        %v1543 = vpop.permute.xlu0 %1542
        %1544 = vrot.lane.b32.xlu0 %v808, 28
        %v1545 = vpop.permute.xlu0 %1544
        %1546 = vrot.lane.b32.xlu0 %v820, 28
        %v1547 = vpop.permute.xlu0 %1546
        %1548 = vrot.lane.b32.xlu0 %v832, 28
        %v1549 = vpop.permute.xlu0 %1548
        %1550 = vrot.lane.b32.xlu0 %v844, 28
        %v1551 = vpop.permute.xlu0 %1550
        %1552 = vrot.lane.b32.xlu0 %v856, 28
        %v1553 = vpop.permute.xlu0 %1552
        %1554 = vrot.lane.b32.xlu0 %v868, 28
        %v1555 = vpop.permute.xlu0 %1554
        %1556 = vrot.lane.b32.xlu0 %v880, 28
        %v1557 = vpop.permute.xlu0 %1556
        %1558 = vrot.lane.b32.xlu0 %v892, 28
        %v1559 = vpop.permute.xlu0 %1558
        %1560 = vrot.lane.b32.xlu0 %v904, 28
        %v1561 = vpop.permute.xlu0 %1560
        %1562 = vrot.lane.b32.xlu0 %v916, 28
        %v1563 = vpop.permute.xlu0 %1562
        %1564 = vrot.lane.b32.xlu0 %v928, 28
        %v1565 = vpop.permute.xlu0 %1564
        %1566 = vrot.lane.b32.xlu0 %v940, 28
        %v1567 = vpop.permute.xlu0 %1566
        %1568 = vrot.lane.b32.xlu0 %v1269, 28
        %v1569 = vpop.permute.xlu0 %1568
        %1570 = vrot.lane.b32.xlu0 %v1507, 28
        %v1571 = vpop.permute.xlu0 %1570
        %v1572 = vrot.slane %v1412, 1
        %v1573 = vrot.slane %v1482, 1
        %v1574 = vsel %vm1005, %v1572, %v1573
        %v1575 = vrot.slane %v1413, 1
        %v1576 = vrot.slane %v1483, 1
        %v1577 = vsel %vm1005, %v1575, %v1576
        %1578 = vrot.lane.b32.xlu0 %v1014, 32
        %v1579 = vpop.permute.xlu0 %1578
        %1580 = vrot.lane.b32.xlu0 %v1017, 32
        %v1581 = vpop.permute.xlu0 %1580
        %1582 = vrot.lane.b32.xlu0 %v1020, 32
        %v1583 = vpop.permute.xlu0 %1582
        %1584 = vrot.lane.b32.xlu0 %v1023, 32
        %v1585 = vpop.permute.xlu0 %1584
        %1586 = vrot.lane.b32.xlu0 %v1026, 32
        %v1587 = vpop.permute.xlu0 %1586
        %1588 = vrot.lane.b32.xlu0 %v1029, 32
        %v1589 = vpop.permute.xlu0 %1588
        %1590 = vrot.lane.b32.xlu0 %v1032, 32
        %v1591 = vpop.permute.xlu0 %1590
        %1592 = vrot.lane.b32.xlu0 %v1035, 32
        %v1593 = vpop.permute.xlu0 %1592
        %1594 = vrot.lane.b32.xlu0 %v1038, 32
        %v1595 = vpop.permute.xlu0 %1594
        %1596 = vrot.lane.b32.xlu0 %v1041, 32
        %v1597 = vpop.permute.xlu0 %1596
        %1598 = vrot.lane.b32.xlu0 %v1044, 32
        %v1599 = vpop.permute.xlu0 %1598
        %1600 = vrot.lane.b32.xlu0 %v1047, 32
        %v1601 = vpop.permute.xlu0 %1600
        %1602 = vrot.lane.b32.xlu0 %v1050, 32
        %v1603 = vpop.permute.xlu0 %1602
        %1604 = vrot.lane.b32.xlu0 %v1053, 32
        %v1605 = vpop.permute.xlu0 %1604
        %1606 = vrot.lane.b32.xlu0 %v1336, 32
        %v1607 = vpop.permute.xlu0 %1606
        %1608 = vrot.lane.b32.xlu0 %v1574, 32
        %v1609 = vpop.permute.xlu0 %1608
        %1610 = vrot.lane.b32.xlu0 %v1062, 32
        %v1611 = vpop.permute.xlu0 %1610
        %1612 = vrot.lane.b32.xlu0 %v1065, 32
        %v1613 = vpop.permute.xlu0 %1612
        %1614 = vrot.lane.b32.xlu0 %v1068, 32
        %v1615 = vpop.permute.xlu0 %1614
        %1616 = vrot.lane.b32.xlu0 %v1071, 32
        %v1617 = vpop.permute.xlu0 %1616
        %1618 = vrot.lane.b32.xlu0 %v1074, 32
        %v1619 = vpop.permute.xlu0 %1618
        %1620 = vrot.lane.b32.xlu0 %v1077, 32
        %v1621 = vpop.permute.xlu0 %1620
        %1622 = vrot.lane.b32.xlu0 %v1080, 32
        %v1623 = vpop.permute.xlu0 %1622
        %1624 = vrot.lane.b32.xlu0 %v1083, 32
        %v1625 = vpop.permute.xlu0 %1624
        %1626 = vrot.lane.b32.xlu0 %v1086, 32
        %v1627 = vpop.permute.xlu0 %1626
        %1628 = vrot.lane.b32.xlu0 %v1089, 32
        %v1629 = vpop.permute.xlu0 %1628
        %1630 = vrot.lane.b32.xlu0 %v1092, 32
        %v1631 = vpop.permute.xlu0 %1630
        %1632 = vrot.lane.b32.xlu0 %v1095, 32
        %v1633 = vpop.permute.xlu0 %1632
        %1634 = vrot.lane.b32.xlu0 %v1098, 32
        %v1635 = vpop.permute.xlu0 %1634
        %1636 = vrot.lane.b32.xlu0 %v1101, 32
        %v1637 = vpop.permute.xlu0 %1636
        %1638 = vrot.lane.b32.xlu0 %v1339, 32
        %v1639 = vpop.permute.xlu0 %1638
        %1640 = vrot.lane.b32.xlu0 %v1577, 32
        %v1641 = vpop.permute.xlu0 %1640
        %vm1642 = vcmask 31744
        %v1644 = vsel %vm1642, %v428, %v942
        %v1646 = vsel %vm1642, %v429, %v944
        %v1648 = vsel %vm1642, %v430, %v946
        %v1650 = vsel %vm1642, %v431, %v948
        %v1652 = vsel %vm1642, %v432, %v950
        %v1654 = vsel %vm1642, %v433, %v952
        %v1656 = vsel %vm1642, %v434, %v954
        %v1658 = vsel %vm1642, %v435, %v956
        %v1660 = vsel %vm1642, %v436, %v958
        %v1662 = vsel %vm1642, %v437, %v960
        %v1664 = vsel %vm1642, %v438, %v962
        %v1666 = vsel %vm1642, %v439, %v964
        %v1668 = vsel %vm1642, %v440, %v966
        %v1670 = vsel %vm1642, %v441, %v968
        %v1672 = vsel %vm1642, %v442, %v970
        %v1674 = vsel %vm1642, %v443, %v972
        %v1676 = vsel %vm1642, %v444, %v974
        %v1678 = vsel %vm1642, %v445, %v976
        %v1680 = vsel %vm1642, %v446, %v978
        %v1682 = vsel %vm1642, %v447, %v980
        %v1684 = vsel %vm1642, %v448, %v982
        %v1686 = vsel %vm1642, %v449, %v984
        %v1688 = vsel %vm1642, %v450, %v986
        %v1690 = vsel %vm1642, %v451, %v988
        %v1692 = vsel %vm1642, %v452, %v990
        %v1694 = vsel %vm1642, %v453, %v992
        %v1696 = vsel %vm1642, %v454, %v994
        %v1698 = vsel %vm1642, %v455, %v996
        %v1700 = vsel %vm1642, %v456, %v998
        %v1702 = vsel %vm1642, %v457, %v1000
        %v1704 = vsel %vm1642, %v458, %v1002
        %v1706 = vsel %vm1642, %v459, %v1004
        %vm1707 = vcmask 64512
        %v1709 = vsel %vm1707, %v1644, %v1103
        %v1711 = vsel %vm1707, %v1646, %v1105
        %v1713 = vsel %vm1707, %v1648, %v1107
        %v1715 = vsel %vm1707, %v1650, %v1109
        %v1717 = vsel %vm1707, %v1652, %v1111
        %v1719 = vsel %vm1707, %v1654, %v1113
        %v1721 = vsel %vm1707, %v1656, %v1115
        %v1723 = vsel %vm1707, %v1658, %v1117
        %v1725 = vsel %vm1707, %v1660, %v1119
        %v1727 = vsel %vm1707, %v1662, %v1121
        %v1729 = vsel %vm1707, %v1664, %v1123
        %v1731 = vsel %vm1707, %v1666, %v1125
        %v1733 = vsel %vm1707, %v1668, %v1127
        %v1735 = vsel %vm1707, %v1670, %v1129
        %v1737 = vsel %vm1707, %v1672, %v1131
        %v1739 = vsel %vm1707, %v1674, %v1133
        %v1741 = vsel %vm1707, %v1676, %v1135
        %v1743 = vsel %vm1707, %v1678, %v1137
        %v1745 = vsel %vm1707, %v1680, %v1139
        %v1747 = vsel %vm1707, %v1682, %v1141
        %v1749 = vsel %vm1707, %v1684, %v1143
        %v1751 = vsel %vm1707, %v1686, %v1145
        %v1753 = vsel %vm1707, %v1688, %v1147
        %v1755 = vsel %vm1707, %v1690, %v1149
        %v1757 = vsel %vm1707, %v1692, %v1151
        %v1759 = vsel %vm1707, %v1694, %v1153
        %v1761 = vsel %vm1707, %v1696, %v1155
        %v1763 = vsel %vm1707, %v1698, %v1157
        %v1765 = vsel %vm1707, %v1700, %v1159
        %v1767 = vsel %vm1707, %v1702, %v1161
        %v1769 = vsel %vm1707, %v1704, %v1163
        %v1771 = vsel %vm1707, %v1706, %v1165
        %vm1772 = vcmask 97280
        %v1774 = vsel %vm1772, %v1709, %v1177
        %v1776 = vsel %vm1772, %v1711, %v1179
        %v1778 = vsel %vm1772, %v1713, %v1181
        %v1780 = vsel %vm1772, %v1715, %v1183
        %v1782 = vsel %vm1772, %v1717, %v1185
        %v1784 = vsel %vm1772, %v1719, %v1187
        %v1786 = vsel %vm1772, %v1721, %v1189
        %v1788 = vsel %vm1772, %v1723, %v1191
        %v1790 = vsel %vm1772, %v1725, %v1193
        %v1792 = vsel %vm1772, %v1727, %v1195
        %v1794 = vsel %vm1772, %v1729, %v1197
        %v1796 = vsel %vm1772, %v1731, %v1199
        %v1798 = vsel %vm1772, %v1733, %v1201
        %v1800 = vsel %vm1772, %v1735, %v1203
        %v1802 = vsel %vm1772, %v1737, %v1205
        %v1804 = vsel %vm1772, %v1739, %v1207
        %v1806 = vsel %vm1772, %v1741, %v1209
        %v1808 = vsel %vm1772, %v1743, %v1211
        %v1810 = vsel %vm1772, %v1745, %v1213
        %v1812 = vsel %vm1772, %v1747, %v1215
        %v1814 = vsel %vm1772, %v1749, %v1217
        %v1816 = vsel %vm1772, %v1751, %v1219
        %v1818 = vsel %vm1772, %v1753, %v1221
        %v1820 = vsel %vm1772, %v1755, %v1223
        %v1822 = vsel %vm1772, %v1757, %v1225
        %v1824 = vsel %vm1772, %v1759, %v1227
        %v1826 = vsel %vm1772, %v1761, %v1229
        %v1828 = vsel %vm1772, %v1763, %v1231
        %v1830 = vsel %vm1772, %v1765, %v1233
        %v1832 = vsel %vm1772, %v1767, %v1235
        %v1834 = vsel %vm1772, %v1769, %v1237
        %v1836 = vsel %vm1772, %v1771, %v1239
        %vm1837 = vcmask 130048
        %v1839 = vsel %vm1837, %v1774, %v1271
        %v1841 = vsel %vm1837, %v1776, %v1273
        %v1843 = vsel %vm1837, %v1778, %v1275
        %v1845 = vsel %vm1837, %v1780, %v1277
        %v1847 = vsel %vm1837, %v1782, %v1279
        %v1849 = vsel %vm1837, %v1784, %v1281
        %v1851 = vsel %vm1837, %v1786, %v1283
        %v1853 = vsel %vm1837, %v1788, %v1285
        %v1855 = vsel %vm1837, %v1790, %v1287
        %v1857 = vsel %vm1837, %v1792, %v1289
        %v1859 = vsel %vm1837, %v1794, %v1291
        %v1861 = vsel %vm1837, %v1796, %v1293
        %v1863 = vsel %vm1837, %v1798, %v1295
        %v1865 = vsel %vm1837, %v1800, %v1297
        %v1867 = vsel %vm1837, %v1802, %v1299
        %v1869 = vsel %vm1837, %v1804, %v1301
        %v1871 = vsel %vm1837, %v1806, %v1303
        %v1873 = vsel %vm1837, %v1808, %v1305
        %v1875 = vsel %vm1837, %v1810, %v1307
        %v1877 = vsel %vm1837, %v1812, %v1309
        %v1879 = vsel %vm1837, %v1814, %v1311
        %v1881 = vsel %vm1837, %v1816, %v1313
        %v1883 = vsel %vm1837, %v1818, %v1315
        %v1885 = vsel %vm1837, %v1820, %v1317
        %v1887 = vsel %vm1837, %v1822, %v1319
        %v1889 = vsel %vm1837, %v1824, %v1321
        %v1891 = vsel %vm1837, %v1826, %v1323
        %v1893 = vsel %vm1837, %v1828, %v1325
        %v1895 = vsel %vm1837, %v1830, %v1327
        %v1897 = vsel %vm1837, %v1832, %v1329
        %v1899 = vsel %vm1837, %v1834, %v1331
        %v1901 = vsel %vm1837, %v1836, %v1333
        %vm1902 = vcmask 162816
        %v1904 = vsel %vm1902, %v1839, %v1341
        %v1906 = vsel %vm1902, %v1841, %v1343
        %v1908 = vsel %vm1902, %v1843, %v1345
        %v1910 = vsel %vm1902, %v1845, %v1347
        %v1912 = vsel %vm1902, %v1847, %v1349
        %v1914 = vsel %vm1902, %v1849, %v1351
        %v1916 = vsel %vm1902, %v1851, %v1353
        %v1918 = vsel %vm1902, %v1853, %v1355
        %v1920 = vsel %vm1902, %v1855, %v1357
        %v1922 = vsel %vm1902, %v1857, %v1359
        %v1924 = vsel %vm1902, %v1859, %v1361
        %v1926 = vsel %vm1902, %v1861, %v1363
        %v1928 = vsel %vm1902, %v1863, %v1365
        %v1930 = vsel %vm1902, %v1865, %v1367
        %v1932 = vsel %vm1902, %v1867, %v1369
        %v1934 = vsel %vm1902, %v1869, %v1371
        %v1936 = vsel %vm1902, %v1871, %v1373
        %v1938 = vsel %vm1902, %v1873, %v1375
        %v1940 = vsel %vm1902, %v1875, %v1377
        %v1942 = vsel %vm1902, %v1877, %v1379
        %v1944 = vsel %vm1902, %v1879, %v1381
        %v1946 = vsel %vm1902, %v1881, %v1383
        %v1948 = vsel %vm1902, %v1883, %v1385
        %v1950 = vsel %vm1902, %v1885, %v1387
        %v1952 = vsel %vm1902, %v1887, %v1389
        %v1954 = vsel %vm1902, %v1889, %v1391
        %v1956 = vsel %vm1902, %v1891, %v1393
        %v1958 = vsel %vm1902, %v1893, %v1395
        %v1960 = vsel %vm1902, %v1895, %v1397
        %v1962 = vsel %vm1902, %v1897, %v1399
        %v1964 = vsel %vm1902, %v1899, %v1401
        %v1966 = vsel %vm1902, %v1901, %v1403
        %vm1967 = vcmask 195584
        %v1969 = vsel %vm1967, %v1904, %v1415
        %v1971 = vsel %vm1967, %v1906, %v1417
        %v1973 = vsel %vm1967, %v1908, %v1419
        %v1975 = vsel %vm1967, %v1910, %v1421
        %v1977 = vsel %vm1967, %v1912, %v1423
        %v1979 = vsel %vm1967, %v1914, %v1425
        %v1981 = vsel %vm1967, %v1916, %v1427
        %v1983 = vsel %vm1967, %v1918, %v1429
        %v1985 = vsel %vm1967, %v1920, %v1431
        %v1987 = vsel %vm1967, %v1922, %v1433
        %v1989 = vsel %vm1967, %v1924, %v1435
        %v1991 = vsel %vm1967, %v1926, %v1437
        %v1993 = vsel %vm1967, %v1928, %v1439
        %v1995 = vsel %vm1967, %v1930, %v1441
        %v1997 = vsel %vm1967, %v1932, %v1443
        %v1999 = vsel %vm1967, %v1934, %v1445
        %v2001 = vsel %vm1967, %v1936, %v1447
        %v2003 = vsel %vm1967, %v1938, %v1449
        %v2005 = vsel %vm1967, %v1940, %v1451
        %v2007 = vsel %vm1967, %v1942, %v1453
        %v2009 = vsel %vm1967, %v1944, %v1455
        %v2011 = vsel %vm1967, %v1946, %v1457
        %v2013 = vsel %vm1967, %v1948, %v1459
        %v2015 = vsel %vm1967, %v1950, %v1461
        %v2017 = vsel %vm1967, %v1952, %v1463
        %v2019 = vsel %vm1967, %v1954, %v1465
        %v2021 = vsel %vm1967, %v1956, %v1467
        %v2023 = vsel %vm1967, %v1958, %v1469
        %v2025 = vsel %vm1967, %v1960, %v1471
        %v2027 = vsel %vm1967, %v1962, %v1473
        %v2029 = vsel %vm1967, %v1964, %v1475
        %v2031 = vsel %vm1967, %v1966, %v1477
        %vm2032 = vcmask 228352
        %v2034 = vsel %vm2032, %v1969, %v1509
        %v2036 = vsel %vm2032, %v1971, %v1511
        %v2038 = vsel %vm2032, %v1973, %v1513
        %v2040 = vsel %vm2032, %v1975, %v1515
        %v2042 = vsel %vm2032, %v1977, %v1517
        %v2044 = vsel %vm2032, %v1979, %v1519
        %v2046 = vsel %vm2032, %v1981, %v1521
        %v2048 = vsel %vm2032, %v1983, %v1523
        %v2050 = vsel %vm2032, %v1985, %v1525
        %v2052 = vsel %vm2032, %v1987, %v1527
        %v2054 = vsel %vm2032, %v1989, %v1529
        %v2056 = vsel %vm2032, %v1991, %v1531
        %v2058 = vsel %vm2032, %v1993, %v1533
        %v2060 = vsel %vm2032, %v1995, %v1535
        %v2062 = vsel %vm2032, %v1997, %v1537
        %v2064 = vsel %vm2032, %v1999, %v1539
        %v2066 = vsel %vm2032, %v2001, %v1541
        %v2068 = vsel %vm2032, %v2003, %v1543
        %v2070 = vsel %vm2032, %v2005, %v1545
        %v2072 = vsel %vm2032, %v2007, %v1547
        %v2074 = vsel %vm2032, %v2009, %v1549
        %v2076 = vsel %vm2032, %v2011, %v1551
        %v2078 = vsel %vm2032, %v2013, %v1553
        %v2080 = vsel %vm2032, %v2015, %v1555
        %v2082 = vsel %vm2032, %v2017, %v1557
        %v2084 = vsel %vm2032, %v2019, %v1559
        %v2086 = vsel %vm2032, %v2021, %v1561
        %v2088 = vsel %vm2032, %v2023, %v1563
        %v2090 = vsel %vm2032, %v2025, %v1565
        %v2092 = vsel %vm2032, %v2027, %v1567
        %v2094 = vsel %vm2032, %v2029, %v1569
        %v2096 = vsel %vm2032, %v2031, %v1571
        %vm2097 = vcmask 261120
        %v2099 = vsel %vm2097, %v2034, %v1579
        %v2101 = vsel %vm2097, %v2036, %v1581
        %v2103 = vsel %vm2097, %v2038, %v1583
        %v2105 = vsel %vm2097, %v2040, %v1585
        %v2107 = vsel %vm2097, %v2042, %v1587
        %v2109 = vsel %vm2097, %v2044, %v1589
        %v2111 = vsel %vm2097, %v2046, %v1591
        %v2113 = vsel %vm2097, %v2048, %v1593
        %v2115 = vsel %vm2097, %v2050, %v1595
        %v2117 = vsel %vm2097, %v2052, %v1597
        %v2119 = vsel %vm2097, %v2054, %v1599
        %v2121 = vsel %vm2097, %v2056, %v1601
        %v2123 = vsel %vm2097, %v2058, %v1603
        %v2125 = vsel %vm2097, %v2060, %v1605
        %v2127 = vsel %vm2097, %v2062, %v1607
        %v2129 = vsel %vm2097, %v2064, %v1609
        %v2131 = vsel %vm2097, %v2066, %v1611
        %v2133 = vsel %vm2097, %v2068, %v1613
        %v2135 = vsel %vm2097, %v2070, %v1615
        %v2137 = vsel %vm2097, %v2072, %v1617
        %v2139 = vsel %vm2097, %v2074, %v1619
        %v2141 = vsel %vm2097, %v2076, %v1621
        %v2143 = vsel %vm2097, %v2078, %v1623
        %v2145 = vsel %vm2097, %v2080, %v1625
        %v2147 = vsel %vm2097, %v2082, %v1627
        %v2149 = vsel %vm2097, %v2084, %v1629
        %v2151 = vsel %vm2097, %v2086, %v1631
        %v2153 = vsel %vm2097, %v2088, %v1633
        %v2155 = vsel %vm2097, %v2090, %v1635
        %v2157 = vsel %vm2097, %v2092, %v1637
        %v2159 = vsel %vm2097, %v2094, %v1639
        %v2161 = vsel %vm2097, %v2096, %v1641
        %v2162 = vld [vmem:[%s1] sm:$0xf]
        %v2163 = vld [vmem:[%s1 + $0x4] sm:$0xf]
        %v2164 = vld [vmem:[%s1 + $0x8] sm:$0xf]
        %v2165 = vld [vmem:[%s1 + $0xc] sm:$0xf]
        %v2166 = vld [vmem:[%s1 + $0x10] sm:$0x3]
        %v2172 = vunpack.c.l.b16 %v2162
        %v2173 = vunpack.c.l.b16 %v2163
        %v2174 = vunpack.c.l.b16 %v2164
        %v2175 = vunpack.c.l.b16 %v2165
        %v2176 = vunpack.c.l.b16 %v2166
        %v2177 = vpack.c.b16 %v2173, %v2172
        %v2178 = vpack.c.b16 %v2175, %v2174
        %v2179 = vpack.c.b16 %v2176, %v2176
        %vm2182 = vcmask 293888
        %v2183 = vsel %vm2182, %v2099, 0
        %v2185 = vsel %vm2182, %v2101, 0
        %v2187 = vsel %vm2182, %v2103, 0
        %v2189 = vsel %vm2182, %v2105, 0
        %v2191 = vsel %vm2182, %v2107, 0
        %v2193 = vsel %vm2182, %v2109, 0
        %v2195 = vsel %vm2182, %v2111, 0
        %v2197 = vsel %vm2182, %v2113, 0
        %v2199 = vsel %vm2182, %v2115, 0
        %v2201 = vsel %vm2182, %v2117, 0
        %v2203 = vsel %vm2182, %v2119, 0
        %v2205 = vsel %vm2182, %v2121, 0
        %v2207 = vsel %vm2182, %v2123, 0
        %v2209 = vsel %vm2182, %v2125, 0
        %v2211 = vsel %vm2182, %v2127, 0
        %v2213 = vsel %vm2182, %v2129, 0
        %v2215 = vsel %vm2182, %v2131, 0
        %v2217 = vsel %vm2182, %v2133, 0
        %v2219 = vsel %vm2182, %v2135, 0
        %v2221 = vsel %vm2182, %v2137, 0
        %v2223 = vsel %vm2182, %v2139, 0
        %v2225 = vsel %vm2182, %v2141, 0
        %v2227 = vsel %vm2182, %v2143, 0
        %v2229 = vsel %vm2182, %v2145, 0
        %v2231 = vsel %vm2182, %v2147, 0
        %v2233 = vsel %vm2182, %v2149, 0
        %v2235 = vsel %vm2182, %v2151, 0
        %v2237 = vsel %vm2182, %v2153, 0
        %v2239 = vsel %vm2182, %v2155, 0
        %v2241 = vsel %vm2182, %v2157, 0
        %v2243 = vsel %vm2182, %v2159, 0
        %v2245 = vsel %vm2182, %v2161, 0
        %vm2247 = vcmask 1041408
        %v2249 = vsel %vm2247, %v2179, 0
        %2251 = vmatpush.bf16.msra.mxu0 0
        %2252 = vmatpush.bf16.msra.mxu0 0
        %2253 = vmatpush.bf16.msra.mxu0 0
        %2254 = vmatpush.bf16.msra.mxu0 0
        %2255 = vmatpush.bf16.msra.mxu0 0
        %2256 = vmatpush.bf16.msra.mxu0 %v2249
        %2257 = vmatpush.bf16.msra.mxu0 %v2178
        %2258 = vmatpush.bf16.msra.mxu0 %v2177
        %2259 = vmatmul.bf16.gmra.mxu0 %v2183
        %v2260 = vpop.f32.mrf.mxu0
        %v2261 = vadd.f32 0.0, %v2260
        %v2262 = vpop.f32.mrf.mxu0
        %v2263 = vadd.f32 0.0, %v2262
        %2264 = vmatmul.bf16.gmra.mxu0 %v2185
        %v2265 = vpop.f32.mrf.mxu0
        %v2266 = vadd.f32 0.0, %v2265
        %v2267 = vpop.f32.mrf.mxu0
        %v2268 = vadd.f32 0.0, %v2267
        %2269 = vmatmul.bf16.gmra.mxu0 %v2187
        %v2270 = vpop.f32.mrf.mxu0
        %v2271 = vadd.f32 0.0, %v2270
        %v2272 = vpop.f32.mrf.mxu0
        %v2273 = vadd.f32 0.0, %v2272
        %2274 = vmatmul.bf16.gmra.mxu0 %v2189
        %v2275 = vpop.f32.mrf.mxu0
        %v2276 = vadd.f32 0.0, %v2275
        %v2277 = vpop.f32.mrf.mxu0
        %v2278 = vadd.f32 0.0, %v2277
        %2279 = vmatmul.bf16.gmra.mxu0 %v2191
        %v2280 = vpop.f32.mrf.mxu0
        %v2281 = vadd.f32 0.0, %v2280
        %v2282 = vpop.f32.mrf.mxu0
        %v2283 = vadd.f32 0.0, %v2282
        %2284 = vmatmul.bf16.gmra.mxu0 %v2193
        %v2285 = vpop.f32.mrf.mxu0
        %v2286 = vadd.f32 0.0, %v2285
        %v2287 = vpop.f32.mrf.mxu0
        %v2288 = vadd.f32 0.0, %v2287
        %2289 = vmatmul.bf16.gmra.mxu0 %v2195
        %v2290 = vpop.f32.mrf.mxu0
        %v2291 = vadd.f32 0.0, %v2290
        %v2292 = vpop.f32.mrf.mxu0
        %v2293 = vadd.f32 0.0, %v2292
        %2294 = vmatmul.bf16.gmra.mxu0 %v2197
        %v2295 = vpop.f32.mrf.mxu0
        %v2296 = vadd.f32 0.0, %v2295
        %v2297 = vpop.f32.mrf.mxu0
        %v2298 = vadd.f32 0.0, %v2297
        %2299 = vmatmul.bf16.gmra.mxu0 %v2199
        %v2300 = vpop.f32.mrf.mxu0
        %v2301 = vadd.f32 0.0, %v2300
        %v2302 = vpop.f32.mrf.mxu0
        %v2303 = vadd.f32 0.0, %v2302
        %2304 = vmatmul.bf16.gmra.mxu0 %v2201
        %v2305 = vpop.f32.mrf.mxu0
        %v2306 = vadd.f32 0.0, %v2305
        %v2307 = vpop.f32.mrf.mxu0
        %v2308 = vadd.f32 0.0, %v2307
        %2309 = vmatmul.bf16.gmra.mxu0 %v2203
        %v2310 = vpop.f32.mrf.mxu0
        %v2311 = vadd.f32 0.0, %v2310
        %v2312 = vpop.f32.mrf.mxu0
        %v2313 = vadd.f32 0.0, %v2312
        %2314 = vmatmul.bf16.gmra.mxu0 %v2205
        %v2315 = vpop.f32.mrf.mxu0
        %v2316 = vadd.f32 0.0, %v2315
        %v2317 = vpop.f32.mrf.mxu0
        %v2318 = vadd.f32 0.0, %v2317
        %2319 = vmatmul.bf16.gmra.mxu0 %v2207
        %v2320 = vpop.f32.mrf.mxu0
        %v2321 = vadd.f32 0.0, %v2320
        %v2322 = vpop.f32.mrf.mxu0
        %v2323 = vadd.f32 0.0, %v2322
        %2324 = vmatmul.bf16.gmra.mxu0 %v2209
        %v2325 = vpop.f32.mrf.mxu0
        %v2326 = vadd.f32 0.0, %v2325
        %v2327 = vpop.f32.mrf.mxu0
        %v2328 = vadd.f32 0.0, %v2327
        %2329 = vmatmul.bf16.gmra.mxu0 %v2211
        %v2330 = vpop.f32.mrf.mxu0
        %v2331 = vadd.f32 0.0, %v2330
        %v2332 = vpop.f32.mrf.mxu0
        %v2333 = vadd.f32 0.0, %v2332
        %2334 = vmatmul.bf16.gmra.mxu0 %v2213
        %v2335 = vpop.f32.mrf.mxu0
        %v2336 = vadd.f32 0.0, %v2335
        %v2337 = vpop.f32.mrf.mxu0
        %v2338 = vadd.f32 0.0, %v2337
        %2339 = vmatmul.bf16.gmra.mxu0 %v2215
        %v2340 = vpop.f32.mrf.mxu0
        %v2341 = vadd.f32 0.0, %v2340
        %v2342 = vpop.f32.mrf.mxu0
        %v2343 = vadd.f32 0.0, %v2342
        %2344 = vmatmul.bf16.gmra.mxu0 %v2217
        %v2345 = vpop.f32.mrf.mxu0
        %v2346 = vadd.f32 0.0, %v2345
        %v2347 = vpop.f32.mrf.mxu0
        %v2348 = vadd.f32 0.0, %v2347
        %2349 = vmatmul.bf16.gmra.mxu0 %v2219
        %v2350 = vpop.f32.mrf.mxu0
        %v2351 = vadd.f32 0.0, %v2350
        %v2352 = vpop.f32.mrf.mxu0
        %v2353 = vadd.f32 0.0, %v2352
        %2354 = vmatmul.bf16.gmra.mxu0 %v2221
        %v2355 = vpop.f32.mrf.mxu0
        %v2356 = vadd.f32 0.0, %v2355
        %v2357 = vpop.f32.mrf.mxu0
        %v2358 = vadd.f32 0.0, %v2357
        %2359 = vmatmul.bf16.gmra.mxu0 %v2223
        %v2360 = vpop.f32.mrf.mxu0
        %v2361 = vadd.f32 0.0, %v2360
        %v2362 = vpop.f32.mrf.mxu0
        %v2363 = vadd.f32 0.0, %v2362
        %2364 = vmatmul.bf16.gmra.mxu0 %v2225
        %v2365 = vpop.f32.mrf.mxu0
        %v2366 = vadd.f32 0.0, %v2365
        %v2367 = vpop.f32.mrf.mxu0
        %v2368 = vadd.f32 0.0, %v2367
        %2369 = vmatmul.bf16.gmra.mxu0 %v2227
        %v2370 = vpop.f32.mrf.mxu0
        %v2371 = vadd.f32 0.0, %v2370
        %v2372 = vpop.f32.mrf.mxu0
        %v2373 = vadd.f32 0.0, %v2372
        %2374 = vmatmul.bf16.gmra.mxu0 %v2229
        %v2375 = vpop.f32.mrf.mxu0
        %v2376 = vadd.f32 0.0, %v2375
        %v2377 = vpop.f32.mrf.mxu0
        %v2378 = vadd.f32 0.0, %v2377
        %2379 = vmatmul.bf16.gmra.mxu0 %v2231
        %v2380 = vpop.f32.mrf.mxu0
        %v2381 = vadd.f32 0.0, %v2380
        %v2382 = vpop.f32.mrf.mxu0
        %v2383 = vadd.f32 0.0, %v2382
        %2384 = vmatmul.bf16.gmra.mxu0 %v2233
        %v2385 = vpop.f32.mrf.mxu0
        %v2386 = vadd.f32 0.0, %v2385
        %v2387 = vpop.f32.mrf.mxu0
        %v2388 = vadd.f32 0.0, %v2387
        %2389 = vmatmul.bf16.gmra.mxu0 %v2235
        %v2390 = vpop.f32.mrf.mxu0
        %v2391 = vadd.f32 0.0, %v2390
        %v2392 = vpop.f32.mrf.mxu0
        %v2393 = vadd.f32 0.0, %v2392
        %2394 = vmatmul.bf16.gmra.mxu0 %v2237
        %v2395 = vpop.f32.mrf.mxu0
        %v2396 = vadd.f32 0.0, %v2395
        %v2397 = vpop.f32.mrf.mxu0
        %v2398 = vadd.f32 0.0, %v2397
        %2399 = vmatmul.bf16.gmra.mxu0 %v2239
        %v2400 = vpop.f32.mrf.mxu0
        %v2401 = vadd.f32 0.0, %v2400
        %v2402 = vpop.f32.mrf.mxu0
        %v2403 = vadd.f32 0.0, %v2402
        %2404 = vmatmul.bf16.gmra.mxu0 %v2241
        %v2405 = vpop.f32.mrf.mxu0
        %v2406 = vadd.f32 0.0, %v2405
        %v2407 = vpop.f32.mrf.mxu0
        %v2408 = vadd.f32 0.0, %v2407
        %2409 = vmatmul.bf16.gmra.mxu0 %v2243
        %v2410 = vpop.f32.mrf.mxu0
        %v2411 = vadd.f32 0.0, %v2410
        %v2412 = vpop.f32.mrf.mxu0
        %v2413 = vadd.f32 0.0, %v2412
        %2414 = vmatmul.bf16.gmra.mxu0 %v2245
        %v2415 = vpop.f32.mrf.mxu0
        %v2416 = vadd.f32 0.0, %v2415
        %v2417 = vpop.f32.mrf.mxu0
        %v2418 = vadd.f32 0.0, %v2417
        %2419 = vdwg.mxu0
        %v2420 = vld [vmem:[%s179] sm:$0x3]
        %v2421 = vsel %vm1707, %v2261, 0.0
        %v2422 = vsel %vm1707, %v2263, 0.0
        %v2423 = vadd.f32 %v2421, %v2422
        %v2424 = vsel %vm1707, %v2266, 0.0
        %v2425 = vadd.f32 %v2423, %v2424
        %v2426 = vsel %vm1707, %v2268, 0.0
        %v2427 = vadd.f32 %v2425, %v2426
        %v2428 = vsel %vm1707, %v2271, 0.0
        %v2429 = vadd.f32 %v2427, %v2428
        %v2430 = vsel %vm1707, %v2273, 0.0
        %v2431 = vadd.f32 %v2429, %v2430
        %v2432 = vsel %vm1707, %v2276, 0.0
        %v2433 = vadd.f32 %v2431, %v2432
        %v2434 = vsel %vm1707, %v2278, 0.0
        %v2435 = vadd.f32 %v2433, %v2434
        %v2436 = vsel %vm1707, %v2281, 0.0
        %v2437 = vadd.f32 %v2435, %v2436
        %v2438 = vsel %vm1707, %v2283, 0.0
        %v2439 = vadd.f32 %v2437, %v2438
        %v2440 = vsel %vm1707, %v2286, 0.0
        %v2441 = vadd.f32 %v2439, %v2440
        %v2442 = vsel %vm1707, %v2288, 0.0
        %v2443 = vadd.f32 %v2441, %v2442
        %v2444 = vsel %vm1707, %v2291, 0.0
        %v2445 = vadd.f32 %v2443, %v2444
        %v2446 = vsel %vm1707, %v2293, 0.0
        %v2447 = vadd.f32 %v2445, %v2446
        %v2448 = vsel %vm1707, %v2296, 0.0
        %v2449 = vadd.f32 %v2447, %v2448
        %v2450 = vsel %vm1707, %v2298, 0.0
        %v2451 = vadd.f32 %v2449, %v2450
        %v2452 = vsel %vm1707, %v2301, 0.0
        %v2453 = vadd.f32 %v2451, %v2452
        %v2454 = vsel %vm1707, %v2303, 0.0
        %v2455 = vadd.f32 %v2453, %v2454
        %v2456 = vsel %vm1707, %v2306, 0.0
        %v2457 = vadd.f32 %v2455, %v2456
        %v2458 = vsel %vm1707, %v2308, 0.0
        %v2459 = vadd.f32 %v2457, %v2458
        %v2460 = vsel %vm1707, %v2311, 0.0
        %v2461 = vadd.f32 %v2459, %v2460
        %v2462 = vsel %vm1707, %v2313, 0.0
        %v2463 = vadd.f32 %v2461, %v2462
        %v2464 = vsel %vm1707, %v2316, 0.0
        %v2465 = vadd.f32 %v2463, %v2464
        %v2466 = vsel %vm1707, %v2318, 0.0
        %v2467 = vadd.f32 %v2465, %v2466
        %v2468 = vsel %vm1707, %v2321, 0.0
        %v2469 = vadd.f32 %v2467, %v2468
        %v2470 = vsel %vm1707, %v2323, 0.0
        %v2471 = vadd.f32 %v2469, %v2470
        %v2472 = vsel %vm1707, %v2326, 0.0
        %v2473 = vadd.f32 %v2471, %v2472
        %v2474 = vsel %vm1707, %v2328, 0.0
        %v2475 = vadd.f32 %v2473, %v2474
        %v2476 = vsel %vm1707, %v2331, 0.0
        %v2477 = vadd.f32 %v2475, %v2476
        %v2478 = vsel %vm1707, %v2333, 0.0
        %v2479 = vadd.f32 %v2477, %v2478
        %v2480 = vsel %vm1707, %v2336, 0.0
        %v2481 = vadd.f32 %v2479, %v2480
        %v2482 = vsel %vm1707, %v2338, 0.0
        %v2483 = vadd.f32 %v2481, %v2482
        %v2484 = vsel %vm1707, %v2341, 0.0
        %v2485 = vadd.f32 %v2483, %v2484
        %v2486 = vsel %vm1707, %v2343, 0.0
        %v2487 = vadd.f32 %v2485, %v2486
        %v2488 = vsel %vm1707, %v2346, 0.0
        %v2489 = vadd.f32 %v2487, %v2488
        %v2490 = vsel %vm1707, %v2348, 0.0
        %v2491 = vadd.f32 %v2489, %v2490
        %v2492 = vsel %vm1707, %v2351, 0.0
        %v2493 = vadd.f32 %v2491, %v2492
        %v2494 = vsel %vm1707, %v2353, 0.0
        %v2495 = vadd.f32 %v2493, %v2494
        %v2496 = vsel %vm1707, %v2356, 0.0
        %v2497 = vadd.f32 %v2495, %v2496
        %v2498 = vsel %vm1707, %v2358, 0.0
        %v2499 = vadd.f32 %v2497, %v2498
        %v2500 = vsel %vm1707, %v2361, 0.0
        %v2501 = vadd.f32 %v2499, %v2500
        %v2502 = vsel %vm1707, %v2363, 0.0
        %v2503 = vadd.f32 %v2501, %v2502
        %v2504 = vsel %vm1707, %v2366, 0.0
        %v2505 = vadd.f32 %v2503, %v2504
        %v2506 = vsel %vm1707, %v2368, 0.0
        %v2507 = vadd.f32 %v2505, %v2506
        %v2508 = vsel %vm1707, %v2371, 0.0
        %v2509 = vadd.f32 %v2507, %v2508
        %v2510 = vsel %vm1707, %v2373, 0.0
        %v2511 = vadd.f32 %v2509, %v2510
        %v2512 = vsel %vm1707, %v2376, 0.0
        %v2513 = vadd.f32 %v2511, %v2512
        %v2514 = vsel %vm1707, %v2378, 0.0
        %v2515 = vadd.f32 %v2513, %v2514
        %v2516 = vsel %vm1707, %v2381, 0.0
        %v2517 = vadd.f32 %v2515, %v2516
        %v2518 = vsel %vm1707, %v2383, 0.0
        %v2519 = vadd.f32 %v2517, %v2518
        %v2520 = vsel %vm1707, %v2386, 0.0
        %v2521 = vadd.f32 %v2519, %v2520
        %v2522 = vsel %vm1707, %v2388, 0.0
        %v2523 = vadd.f32 %v2521, %v2522
        %v2524 = vsel %vm1707, %v2391, 0.0
        %v2525 = vadd.f32 %v2523, %v2524
        %v2526 = vsel %vm1707, %v2393, 0.0
        %v2527 = vadd.f32 %v2525, %v2526
        %v2528 = vsel %vm1707, %v2396, 0.0
        %v2529 = vadd.f32 %v2527, %v2528
        %v2530 = vsel %vm1707, %v2398, 0.0
        %v2531 = vadd.f32 %v2529, %v2530
        %v2532 = vsel %vm1707, %v2401, 0.0
        %v2533 = vadd.f32 %v2531, %v2532
        %v2534 = vsel %vm1707, %v2403, 0.0
        %v2535 = vadd.f32 %v2533, %v2534
        %v2536 = vsel %vm1707, %v2406, 0.0
        %v2537 = vadd.f32 %v2535, %v2536
        %v2538 = vsel %vm1707, %v2408, 0.0
        %v2539 = vadd.f32 %v2537, %v2538
        %v2540 = vsel %vm1707, %v2411, 0.0
        %v2541 = vadd.f32 %v2539, %v2540
        %v2542 = vsel %vm1707, %v2413, 0.0
        %v2543 = vadd.f32 %v2541, %v2542
        %v2544 = vsel %vm1707, %v2416, 0.0
        %v2545 = vadd.f32 %v2543, %v2544
        %v2546 = vsel %vm1707, %v2418, 0.0
        %v2547 = vadd.f32 %v2545, %v2546
        %v2548 = vrot.slane %v2547, 4
        %v2549 = vadd.f32 %v2547, %v2548
        %v2550 = vrot.slane %v2549, 2
        %v2551 = vadd.f32 %v2549, %v2550
        %v2552 = vrot.slane %v2551, 1
        %v2553 = vadd.f32 %v2551, %v2552
        %v2554 = vmul.f32 %v2261, %v2261
        %v2555 = vmul.f32 %v2263, %v2263
        %v2556 = vmul.f32 %v2266, %v2266
        %v2557 = vmul.f32 %v2268, %v2268
        %v2558 = vmul.f32 %v2271, %v2271
        %v2559 = vmul.f32 %v2273, %v2273
        %v2560 = vmul.f32 %v2276, %v2276
        %v2561 = vmul.f32 %v2278, %v2278
        %v2562 = vmul.f32 %v2281, %v2281
        %v2563 = vmul.f32 %v2283, %v2283
        %v2564 = vmul.f32 %v2286, %v2286
        %v2565 = vmul.f32 %v2288, %v2288
        %v2566 = vmul.f32 %v2291, %v2291
        %v2567 = vmul.f32 %v2293, %v2293
        %v2568 = vmul.f32 %v2296, %v2296
        %v2569 = vmul.f32 %v2298, %v2298
        %v2570 = vmul.f32 %v2301, %v2301
        %v2571 = vmul.f32 %v2303, %v2303
        %v2572 = vmul.f32 %v2306, %v2306
        %v2573 = vmul.f32 %v2308, %v2308
        %v2574 = vmul.f32 %v2311, %v2311
        %v2575 = vmul.f32 %v2313, %v2313
        %v2576 = vmul.f32 %v2316, %v2316
        %v2577 = vmul.f32 %v2318, %v2318
        %v2578 = vmul.f32 %v2321, %v2321
        %v2579 = vmul.f32 %v2323, %v2323
        %v2580 = vmul.f32 %v2326, %v2326
        %v2581 = vmul.f32 %v2328, %v2328
        %v2582 = vmul.f32 %v2331, %v2331
        %v2583 = vmul.f32 %v2333, %v2333
        %v2584 = vmul.f32 %v2336, %v2336
        %v2585 = vmul.f32 %v2338, %v2338
        %v2586 = vmul.f32 %v2341, %v2341
        %v2587 = vmul.f32 %v2343, %v2343
        %v2588 = vmul.f32 %v2346, %v2346
        %v2589 = vmul.f32 %v2348, %v2348
        %v2590 = vmul.f32 %v2351, %v2351
        %v2591 = vmul.f32 %v2353, %v2353
        %v2592 = vmul.f32 %v2356, %v2356
        %v2593 = vmul.f32 %v2358, %v2358
        %v2594 = vmul.f32 %v2361, %v2361
        %v2595 = vmul.f32 %v2363, %v2363
        %v2596 = vmul.f32 %v2366, %v2366
        %v2597 = vmul.f32 %v2368, %v2368
        %v2598 = vmul.f32 %v2371, %v2371
        %v2599 = vmul.f32 %v2373, %v2373
        %v2600 = vmul.f32 %v2376, %v2376
        %v2601 = vmul.f32 %v2378, %v2378
        %v2602 = vmul.f32 %v2381, %v2381
        %v2603 = vmul.f32 %v2383, %v2383
        %v2604 = vmul.f32 %v2386, %v2386
        %v2605 = vmul.f32 %v2388, %v2388
        %v2606 = vmul.f32 %v2391, %v2391
        %v2607 = vmul.f32 %v2393, %v2393
        %v2608 = vmul.f32 %v2396, %v2396
        %v2609 = vmul.f32 %v2398, %v2398
        %v2610 = vmul.f32 %v2401, %v2401
        %v2611 = vmul.f32 %v2403, %v2403
        %v2612 = vmul.f32 %v2406, %v2406
        %v2613 = vmul.f32 %v2408, %v2408
        %v2614 = vmul.f32 %v2411, %v2411
        %v2615 = vmul.f32 %v2413, %v2413
        %v2616 = vmul.f32 %v2416, %v2416
        %v2617 = vmul.f32 %v2418, %v2418
        %v2618 = vsel %vm1707, %v2554, 0.0
        %v2619 = vsel %vm1707, %v2555, 0.0
        %v2620 = vadd.f32 %v2618, %v2619
        %v2621 = vsel %vm1707, %v2556, 0.0
        %v2622 = vadd.f32 %v2620, %v2621
        %v2623 = vsel %vm1707, %v2557, 0.0
        %v2624 = vadd.f32 %v2622, %v2623
        %v2625 = vsel %vm1707, %v2558, 0.0
        %v2626 = vadd.f32 %v2624, %v2625
        %v2627 = vsel %vm1707, %v2559, 0.0
        %v2628 = vadd.f32 %v2626, %v2627
        %v2629 = vsel %vm1707, %v2560, 0.0
        %v2630 = vadd.f32 %v2628, %v2629
        %v2631 = vsel %vm1707, %v2561, 0.0
        %v2632 = vadd.f32 %v2630, %v2631
        %v2633 = vsel %vm1707, %v2562, 0.0
        %v2634 = vadd.f32 %v2632, %v2633
        %v2635 = vsel %vm1707, %v2563, 0.0
        %v2636 = vadd.f32 %v2634, %v2635
        %v2637 = vsel %vm1707, %v2564, 0.0
        %v2638 = vadd.f32 %v2636, %v2637
        %v2639 = vsel %vm1707, %v2565, 0.0
        %v2640 = vadd.f32 %v2638, %v2639
        %v2641 = vsel %vm1707, %v2566, 0.0
        %v2642 = vadd.f32 %v2640, %v2641
        %v2643 = vsel %vm1707, %v2567, 0.0
        %v2644 = vadd.f32 %v2642, %v2643
        %v2645 = vsel %vm1707, %v2568, 0.0
        %v2646 = vadd.f32 %v2644, %v2645
        %v2647 = vsel %vm1707, %v2569, 0.0
        %v2648 = vadd.f32 %v2646, %v2647
        %v2649 = vsel %vm1707, %v2570, 0.0
        %v2650 = vadd.f32 %v2648, %v2649
        %v2651 = vsel %vm1707, %v2571, 0.0
        %v2652 = vadd.f32 %v2650, %v2651
        %v2653 = vsel %vm1707, %v2572, 0.0
        %v2654 = vadd.f32 %v2652, %v2653
        %v2655 = vsel %vm1707, %v2573, 0.0
        %v2656 = vadd.f32 %v2654, %v2655
        %v2657 = vsel %vm1707, %v2574, 0.0
        %v2658 = vadd.f32 %v2656, %v2657
        %v2659 = vsel %vm1707, %v2575, 0.0
        %v2660 = vadd.f32 %v2658, %v2659
        %v2661 = vsel %vm1707, %v2576, 0.0
        %v2662 = vadd.f32 %v2660, %v2661
        %v2663 = vsel %vm1707, %v2577, 0.0
        %v2664 = vadd.f32 %v2662, %v2663
        %v2665 = vsel %vm1707, %v2578, 0.0
        %v2666 = vadd.f32 %v2664, %v2665
        %v2667 = vsel %vm1707, %v2579, 0.0
        %v2668 = vadd.f32 %v2666, %v2667
        %v2669 = vsel %vm1707, %v2580, 0.0
        %v2670 = vadd.f32 %v2668, %v2669
        %v2671 = vsel %vm1707, %v2581, 0.0
        %v2672 = vadd.f32 %v2670, %v2671
        %v2673 = vsel %vm1707, %v2582, 0.0
        %v2674 = vadd.f32 %v2672, %v2673
        %v2675 = vsel %vm1707, %v2583, 0.0
        %v2676 = vadd.f32 %v2674, %v2675
        %v2677 = vsel %vm1707, %v2584, 0.0
        %v2678 = vadd.f32 %v2676, %v2677
        %v2679 = vsel %vm1707, %v2585, 0.0
        %v2680 = vadd.f32 %v2678, %v2679
        %v2681 = vsel %vm1707, %v2586, 0.0
        %v2682 = vadd.f32 %v2680, %v2681
        %v2683 = vsel %vm1707, %v2587, 0.0
        %v2684 = vadd.f32 %v2682, %v2683
        %v2685 = vsel %vm1707, %v2588, 0.0
        %v2686 = vadd.f32 %v2684, %v2685
        %v2687 = vsel %vm1707, %v2589, 0.0
        %v2688 = vadd.f32 %v2686, %v2687
        %v2689 = vsel %vm1707, %v2590, 0.0
        %v2690 = vadd.f32 %v2688, %v2689
        %v2691 = vsel %vm1707, %v2591, 0.0
        %v2692 = vadd.f32 %v2690, %v2691
        %v2693 = vsel %vm1707, %v2592, 0.0
        %v2694 = vadd.f32 %v2692, %v2693
        %v2695 = vsel %vm1707, %v2593, 0.0
        %v2696 = vadd.f32 %v2694, %v2695
        %v2697 = vsel %vm1707, %v2594, 0.0
        %v2698 = vadd.f32 %v2696, %v2697
        %v2699 = vsel %vm1707, %v2595, 0.0
        %v2700 = vadd.f32 %v2698, %v2699
        %v2701 = vsel %vm1707, %v2596, 0.0
        %v2702 = vadd.f32 %v2700, %v2701
        %v2703 = vsel %vm1707, %v2597, 0.0
        %v2704 = vadd.f32 %v2702, %v2703
        %v2705 = vsel %vm1707, %v2598, 0.0
        %v2706 = vadd.f32 %v2704, %v2705
        %v2707 = vsel %vm1707, %v2599, 0.0
        %v2708 = vadd.f32 %v2706, %v2707
        %v2709 = vsel %vm1707, %v2600, 0.0
        %v2710 = vadd.f32 %v2708, %v2709
        %v2711 = vsel %vm1707, %v2601, 0.0
        %v2712 = vadd.f32 %v2710, %v2711
        %v2713 = vsel %vm1707, %v2602, 0.0
        %v2714 = vadd.f32 %v2712, %v2713
        %v2715 = vsel %vm1707, %v2603, 0.0
        %v2716 = vadd.f32 %v2714, %v2715
        %v2717 = vsel %vm1707, %v2604, 0.0
        %v2718 = vadd.f32 %v2716, %v2717
        %v2719 = vsel %vm1707, %v2605, 0.0
        %v2720 = vadd.f32 %v2718, %v2719
        %v2721 = vsel %vm1707, %v2606, 0.0
        %v2722 = vadd.f32 %v2720, %v2721
        %v2723 = vsel %vm1707, %v2607, 0.0
        %v2724 = vadd.f32 %v2722, %v2723
        %v2725 = vsel %vm1707, %v2608, 0.0
        %v2726 = vadd.f32 %v2724, %v2725
        %v2727 = vsel %vm1707, %v2609, 0.0
        %v2728 = vadd.f32 %v2726, %v2727
        %v2729 = vsel %vm1707, %v2610, 0.0
        %v2730 = vadd.f32 %v2728, %v2729
        %v2731 = vsel %vm1707, %v2611, 0.0
        %v2732 = vadd.f32 %v2730, %v2731
        %v2733 = vsel %vm1707, %v2612, 0.0
        %v2734 = vadd.f32 %v2732, %v2733
        %v2735 = vsel %vm1707, %v2613, 0.0
        %v2736 = vadd.f32 %v2734, %v2735
        %v2737 = vsel %vm1707, %v2614, 0.0
        %v2738 = vadd.f32 %v2736, %v2737
        %v2739 = vsel %vm1707, %v2615, 0.0
        %v2740 = vadd.f32 %v2738, %v2739
        %v2741 = vsel %vm1707, %v2616, 0.0
        %v2742 = vadd.f32 %v2740, %v2741
        %v2743 = vsel %vm1707, %v2617, 0.0
        %v2744 = vadd.f32 %v2742, %v2743
        %v2745 = vrot.slane %v2744, 4
        %v2746 = vadd.f32 %v2744, %v2745
        %v2747 = vrot.slane %v2746, 2
        %v2748 = vadd.f32 %v2746, %v2747
        %v2749 = vrot.slane %v2748, 1
        %v2750 = vadd.f32 %v2748, %v2749
        %vm2751 = vcmask 1040384
        %v2752 = vsel %vm2751, %v2553, %v2750
        %v2753 = vadd.f32 %v2420, %v2752
        %vm2754 = vcmask 58368
        %2755 = vst.msk [vmem:[%s179] sm:$0x3] %vm2754, %v2753
      $region36: #{conv_bn_relu_other.2} parent=27 // pred_fallthru
        _
      %p2756 = scmp.lt.s32.totalorder %s17, 1
      %s2757 = scalar_select %p2756, %s17, 1
      %s2758 = smul.addr %s2757, 2
      %s2759 = scalar_lea.vmem %s2, %s2758
      // Predicated region
      $region37: #{conv_bn_relu_other.2} parent=27 // pred_check
        %p2760 = pneg %p96
      $region38: #{conv_bn_relu_other.2} parent=27 // pred_check_branch
        %2762 = sbr.rel (%p2760) target = $region40
      $region39: #{conv_bn_relu_other.2} parent=27 // pred_region
        _
      $region40: #{conv_bn_relu_other.2} parent=27 // pred_fallthru
        _
    $region28: #{conv_bn_relu_other.2} parent=5 // pred_fallthru
      _
    %p2763 = scmp.le.s32.totalorder 2, %s8
    // Predicated region
    $region41: #{conv_bn_relu_other.2} parent=5 // pred_check
      %p2764 = pneg %p2763
    $region42: #{conv_bn_relu_other.2} parent=5 // pred_check_branch
      %2766 = sbr.rel (%p2764) target = $region44
    $region43: #{conv_bn_relu_other.2} parent=5 // pred_region
      %s2767 = ssub.s32 %s8, 2
      // Predicated region
      $region45: #{conv_bn_relu_other.2} parent=43 // pred_check
        %p2768 = pneg %p102
      $region46: #{conv_bn_relu_other.2} parent=43 // pred_check_branch
        %2770 = sbr.rel (%p2768) target = $region48
      $region47: #{conv_bn_relu_other.2} parent=43 // pred_region
        %p2771 = scmp.lt.s32.totalorder %s19, 1
        %s2772 = scalar_select %p2771, %s19, 1
        %s2773 = smul.addr %s2772, 2
        %s2774 = scalar_lea.vmem %s2, %s2773
      $region48: #{conv_bn_relu_other.2} parent=43 // pred_fallthru
        _
    $region44: #{conv_bn_relu_other.2} parent=5 // pred_fallthru
      _
  $region6: #{conv_bn_relu_other.2} parent=0 // loop_footer
    %s12 = sadd.s32 1, %s8
  $region7: #{conv_bn_relu_other.2} parent=0 // loop_footer_branch
    %7 = sbr.rel target = $region3
  $region8: #{conv_bn_relu_other.2} parent=0 // loop_exit
    _

</llo_original>
